<compile_context>
chip_gen: v6e
topology: v6e:2x2x1
jax: 0.10.0
libtpu: 0.0.40
codegen_flags: <defaults>
</compile_context>

<pallas_src>
import jax
import jax.numpy as jnp
from jax.experimental import pallas as pl
from jax.experimental.pallas import tpu as pltpu


# ------------------------------ small helpers -------------------------------

def _round_up(x, m):
    return (x + m - 1) // m * m


def _mish(x):
    # Mish(x) = x * tanh(softplus(x)) = x * ((1+e^x)^2 - 1) / ((1+e^x)^2 + 1)
    # -> one exp + one approx reciprocal (EUP slot) instead of exp + log + tanh.
    # Clamp at 20: for x >= 20 the ratio is exactly 1.0 in f32, so it is exact.
    t = jnp.exp(jnp.minimum(x, 20.0))
    s = (1.0 + t) * (1.0 + t)
    return x * (s - 1.0) * pl.reciprocal(s + 1.0, approx=True)


def _conv3x3_matmul(src, h_out, w_p, w_ref, compute_dtype, split_dy):
    """3x3 'same' conv as im2col MXU matmul(s) on a padded-column slab.

    src: (h_out + 2, w_p, C) in 'padded-column' convention (col 0 = left
    reflect, cols 1..W = original, col W+1 = right reflect, cols >= W+2 junk).
    Returns (h_out * w_p, Cout) f32.  Tap (dy, dx) reads src[i+dy, j+dx-1];
    the circular pltpu.roll wrap-around only contaminates output columns the
    caller discards (col 0 and cols >= W+1).

    split_dy=False: one K=9C matmul (best on v5e/v6e, MRF result path).
    split_dy=True:  three accumulating K=3C matmuls (smaller im2col
                    transients; intended for v7x's 64 MiB VMEM / MRB).
    """
    c = src.shape[-1]
    r = h_out * w_p

    def taps_for(dy):
        sl = src[dy:dy + h_out].reshape(r, c)        # leading-dim slice: cheap
        out = []
        for dx in range(3):
            shift = (1 - dx) % r                     # tap[m] = sl[m + dx - 1]
            tap = sl if shift == 0 else pltpu.roll(sl, shift, axis=0)
            out.append(tap.astype(compute_dtype))
        return out

    if not split_dy:
        p = jnp.concatenate(taps_for(0) + taps_for(1) + taps_for(2), axis=-1)
        return jnp.dot(p, w_ref[...], preferred_element_type=jnp.float32)

    acc = None
    for dy in range(3):
        p_dy = jnp.concatenate(taps_for(dy), axis=-1)          # (r, 3C)
        w_dy = w_ref[3 * dy * c:3 * (dy + 1) * c, :]           # aligned static slice
        part = jnp.dot(p_dy, w_dy, preferred_element_type=jnp.float32)
        acc = part if acc is None else acc + part
    return acc


# --------------------------- VMEM sizing / tiling ----------------------------

def _weight_vmem_bytes(cin_p, cout_p):
    # conv1 + conv2 + shortcut weights, bf16, x2 for the (default) pipeline
    # double-buffer.  TODO(synk): pl.Buffered(1) on the weight specs halves this.
    lo = 2
    return 2 * (9 * cin_p * cout_p + 9 * cout_p * cout_p + cin_p * cout_p) * lo


def _tile_vmem_bytes(th, w_p, cin_p, cout_p, out_itemsize):
    # Rough upper bound on the per-tile VMEM working set (transients included).
    lo, f32 = 2, 4
    slab = 2 * (th + 4) * w_p * cin_p * lo           # double-buffered input slab
    m1 = (th + 4) * w_p * cin_p * f32                # mish(x), f32
    p1 = 2 * (th + 2) * w_p * 9 * cin_p * lo         # conv1 im2col (+roll temps)
    c1 = (th + 2) * w_p * cout_p * f32               # conv1 accumulator
    m2 = (th + 2) * w_p * cout_p * f32               # mish(conv1) scratch
    p2 = 2 * th * w_p * 9 * cout_p * lo              # conv2 im2col (+roll temps)
    acc = th * w_p * cout_p * f32                    # conv2 + shortcut accumulator
    out = 2 * th * w_p * cout_p * out_itemsize       # double-buffered output block
    return slab + m1 + p1 + c1 + m2 + p2 + acc + out


def _vmem_capacity_bytes():
    try:
        cap = getattr(pltpu.get_tpu_info(), "vmem_capacity_bytes", None)
        if cap:
            return int(cap)
    except Exception:
        pass
    return 64 * 1024 * 1024           # conservative fallback (v7x per-core VMEM)


def _choose_tile_h(n, h, w_p, cin_p, cout_p, out_itemsize, budget_bytes,
                   min_grid=2):
    fixed = _weight_vmem_bytes(cin_p, cout_p)
    divisors = [t for t in range(1, h + 1) if h % t == 0]
    fits = [t for t in divisors
            if fixed + _tile_vmem_bytes(t, w_p, cin_p, cout_p, out_itemsize)
            <= budget_bytes]
    if not fits:
        need = fixed + _tile_vmem_bytes(1, w_p, cin_p, cout_p, out_itemsize)
        raise ValueError(
            f"no H-tile fits the VMEM budget ({budget_bytes} B); even TH=1 "
            f"needs ~{need} B — lower channel counts or raise the budget")
    # Prefer >= min_grid grid points so v7x's two TensorCores both get work.
    pref = [t for t in fits if n * (h // t) >= min_grid]
    return max(pref) if pref else max(fits)


# ------------------------------ NHWC forward --------------------------------

def preact_block_nhwc(x, w1_hwio, w2_hwio, ws_io, *, compute_dtype=jnp.bfloat16,
                      tile_h=None, out_dtype=None, vmem_budget_bytes=None,
                      split_k_taps=False):
    """PreActBlock forward, NHWC layout (preferred entry point).

    x:       (N, H, W, Cin)
    w1_hwio: (3, 3, Cin,  Cout)  conv1 weight (already spectrally normalized)
    w2_hwio: (3, 3, Cout, Cout)  conv2 weight (already spectrally normalized)
    ws_io:   (Cin, Cout)         1x1 shortcut weight (no spectral norm)
    Returns (N, H, W, Cout).
    """
    n, h, w, cin = x.shape
    cout = w1_hwio.shape[-1]
    if out_dtype is None:
        out_dtype = x.dtype
    out_itemsize = jnp.dtype(out_dtype).itemsize

    cin_p = _round_up(cin, 128)          # lane-dense channels
    cout_p = _round_up(cout, 128)
    w_p = _round_up(w + 2, 8)            # 1 reflect col each side + pad to 8

    cap = _vmem_capacity_bytes()
    budget = (int(vmem_budget_bytes) if vmem_budget_bytes is not None
              else int(0.8 * cap))

    th = tile_h if tile_h is not None else _choose_tile_h(
        n, h, w_p, cin_p, cout_p, out_itemsize, budget)
    if h % th != 0:
        raise ValueError(f"tile_h={th} must divide H={h}")
    n_h = h // th

    need = (_weight_vmem_bytes(cin_p, cout_p)
            + _tile_vmem_bytes(th, w_p, cin_p, cout_p, out_itemsize))
    vmem_limit = int(min(cap, max(need + (8 << 20), 32 << 20)))

    # ---- input prep: bf16 storage, reflect pad (H, W) by 1 for conv1, one
    #      dummy row top/bottom (uniform halo-DMA offsets), junk cols to w_p,
    #      channels zero-padded.  Shape: (N, H+4, w_p, cin_p). ----
    xq = x.astype(compute_dtype)
    xq = jnp.pad(xq, ((0, 0), (1, 1), (1, 1), (0, 0)), mode="reflect")
    xq = jnp.pad(xq, ((0, 0), (1, 1), (0, w_p - (w + 2)), (0, cin_p - cin)))

    # ---- weight prep: (ky, kx, ci, co) -> (9*Cp, Cp) im2col matrices;
    #      1x1 shortcut kept as a separate (Cin_p, Cout_p) matrix. ----
    w1m = jnp.pad(w1_hwio, ((0, 0), (0, 0), (0, cin_p - cin), (0, cout_p - cout))
                  ).reshape(9 * cin_p, cout_p).astype(compute_dtype)
    w2m = jnp.pad(w2_hwio, ((0, 0), (0, 0), (0, cout_p - cout), (0, cout_p - cout))
                  ).reshape(9 * cout_p, cout_p).astype(compute_dtype)
    wsm = jnp.pad(ws_io, ((0, cin_p - cin), (0, cout_p - cout))
                  ).astype(compute_dtype)

    def kernel(x_hbm, w1_ref, w2_ref, ws_ref, o_ref, slab_ref, m2_ref, sem):
        b = pl.program_id(0)
        t = pl.program_id(1)
        n_t = pl.num_programs(1)
        slot = t % 2
        row0 = pl.multiple_of(t * th, th)

        def issue(row_start, s):
            pltpu.make_async_copy(x_hbm.at[b, pl.ds(row_start, th + 4)],
                                  slab_ref.at[s], sem.at[s]).start()

        # Prime: the first H-tile of each image is fetched synchronously.
        # This is megacore-safe: only the batch axis is "parallel", so
        # whichever core owns batch b always starts it at t == 0.
        @pl.when(t == 0)
        def _():
            issue(row0, slot)

        # Prefetch the next H-tile of the same image into the other slot so
        # its HBM->VMEM copy overlaps this step's two MXU matmuls.
        @pl.when(t + 1 < n_t)
        def _():
            issue(pl.multiple_of((t + 1) * th, th), 1 - slot)

        # Wait for the current tile's slab (prefetched by the previous step,
        # or by the prime above when t == 0).
        pltpu.make_async_copy(x_hbm.at[b, pl.ds(row0, th + 4)],
                              slab_ref.at[slot], sem.at[slot]).wait()
        slab = slab_ref[slot]                                 # (TH+4, w_p, cin_p) bf16

        # conv1(act1(x)): im2col -> MXU matmul(s), f32 accumulation.
        m1 = _mish(slab.astype(jnp.float32))
        c1 = _conv3x3_matmul(m1, th + 2, w_p, w1_ref, compute_dtype, split_k_taps)

        # act2 + reflect fix-ups for conv2's padding (image boundaries only).
        m2_ref[...] = _mish(c1).reshape(th + 2, w_p, cout_p)

        @pl.when(t == 0)                                      # top of the image
        def _():
            m2_ref[0:1] = m2_ref[2:3]

        @pl.when(t == n_t - 1)                                # bottom of the image
        def _():
            m2_ref[th + 1:th + 2] = m2_ref[th - 1:th]

        m2_ref[:, 0:1, :] = m2_ref[:, 2:3, :]                 # left reflect column
        m2_ref[:, w + 1:w + 2, :] = m2_ref[:, w - 1:w, :]     # right reflect column

        # conv2(act2(.)) + 1x1 shortcut(x): two accumulating dots (no concat).
        acc = _conv3x3_matmul(m2_ref[...], th, w_p, w2_ref, compute_dtype,
                              split_k_taps)
        x_sc = slab[2:th + 2].reshape(th * w_p, cin_p)        # raw x tile (bf16)
        acc = acc + jnp.dot(x_sc, ws_ref[...], preferred_element_type=jnp.float32)

        # Full-width, lane-dense store; reflect/junk columns and channel
        # padding are stripped by the wrapper (cheap XLA slice).
        o_ref[0] = acc.reshape(th, w_p, cout_p).astype(o_ref.dtype)

    # Advisory cost estimate so XLA schedules the surrounding pads/slices well.
    rows1, rows2 = (th + 2) * w_p, th * w_p
    flops_tile = (2 * rows1 * 9 * cin_p * cout_p
                  + 2 * rows2 * 9 * cout_p * cout_p
                  + 2 * rows2 * cin_p * cout_p)
    trans_tile = (th + 4) * w_p * cin_p + (th + 2) * w_p * cout_p
    bytes_tile = (th + 4) * w_p * cin_p * 2 + th * w_p * cout_p * out_itemsize
    n_tiles = n * n_h
    cost = pl.CostEstimate(
        flops=int(n_tiles * flops_tile),
        transcendentals=int(2 * n_tiles * trans_tile),
        bytes_accessed=int(n_tiles * bytes_tile
                           + _weight_vmem_bytes(cin_p, cout_p) // 2),
    )

    out = pl.pallas_call(
        kernel,
        out_shape=jax.ShapeDtypeStruct((n, h, w_p, cout_p), out_dtype),
        grid_spec=pltpu.PrefetchScalarGridSpec(
            num_scalar_prefetch=0,
            grid=(n, n_h),
            in_specs=[
                pl.BlockSpec(memory_space=pl.ANY),                        # x (manual halo DMA)
                pl.BlockSpec((9 * cin_p, cout_p), lambda b, t: (0, 0)),   # conv1 weight
                pl.BlockSpec((9 * cout_p, cout_p), lambda b, t: (0, 0)),  # conv2 weight
                pl.BlockSpec((cin_p, cout_p), lambda b, t: (0, 0)),       # 1x1 shortcut
            ],
            out_specs=pl.BlockSpec((1, th, w_p, cout_p), lambda b, t: (b, t, 0, 0)),
            scratch_shapes=[
                pltpu.VMEM((2, th + 4, w_p, cin_p), compute_dtype),  # 2x halo'ed slab
                pltpu.VMEM((th + 2, w_p, cout_p), jnp.float32),      # mish(conv1) + fix-ups
                pltpu.SemaphoreType.DMA((2,)),
            ]),
        compiler_params=pltpu.CompilerParams(
            dimension_semantics=("parallel", "arbitrary"),
            vmem_limit_bytes=vmem_limit),
        cost_estimate=cost,
    )(xq, w1m, w2m, wsm)

    # Strip reflect/junk columns and channel padding outside the kernel (keeps
    # the in-kernel store unmasked and lane-dense).
    return out[:, :, 1:w + 1, :cout]


# --------------------------- PyTorch-layout wrapper --------------------------

def preact_block(x_nchw, w1_oihw, w2_oihw, ws_oihw, **kwargs):
    """PyTorch-layout entry point (NCHW / OIHW).  Prefer preact_block_nhwc to
    avoid the NCHW<->NHWC transposes around the fused kernel."""
    x = jnp.transpose(x_nchw, (0, 2, 3, 1))           # NHWC
    w1 = jnp.transpose(w1_oihw, (2, 3, 1, 0))         # (3, 3, Cin, Cout)
    w2 = jnp.transpose(w2_oihw, (2, 3, 1, 0))         # (3, 3, Cout, Cout)
    ws = jnp.transpose(ws_oihw[:, :, 0, 0], (1, 0))   # (Cin, Cout)
    y = preact_block_nhwc(x, w1, w2, ws, **kwargs)
    return jnp.transpose(y, (0, 3, 1, 2))             # back to NCHW


# --------------------- parameter setup (plain JAX glue) ----------------------

def spectral_normalize(w, n_iter=50):
    # torch spectral_norm effective weight at convergence:
    # W / sigma_max(W.view(Cout, -1)); power iteration done once on the host.
    mat = w.reshape(w.shape[0], -1)
    v = jnp.ones((mat.shape[1],), w.dtype) / jnp.sqrt(mat.shape[1])
    u = jnp.zeros((mat.shape[0],), w.dtype)
    for _ in range(n_iter):
        u = mat @ v
        u = u / (jnp.linalg.norm(u) + 1e-12)
        v = mat.T @ u
        v = v / (jnp.linalg.norm(v) + 1e-12)
    sigma = u @ (mat @ v)
    return w / sigma


def _reference(x, w1, w2, ws, compute_dtype=jnp.bfloat16):
    # Pure-JAX (lax.conv) reference with the same bf16 quantization points as
    # the kernel (bf16 MXU operands, f32 accumulation, f32 Mish).
    def mish(v):
        return v * jnp.tanh(jnp.logaddexp(v, 0.0))

    def conv(v, w_):
        return jax.lax.conv_general_dilated(
            v.astype(compute_dtype), w_.astype(compute_dtype), (1, 1), "VALID",
            dimension_numbers=("NCHW", "OIHW", "NCHW"),
            preferred_element_type=jnp.float32)

    def conv3x3(v, w_):
        vp = jnp.pad(v, ((0, 0), (0, 0), (1, 1), (1, 1)), mode="reflect")
        return conv(vp, w_)

    xq = x.astype(compute_dtype).astype(jnp.float32)
    shortcut = conv(xq, ws)
    h = conv3x3(mish(xq), w1)
    h = conv3x3(mish(h), w2)
    return h + shortcut


if __name__ == "__main__":
    N, Cin, Cout, H, W = 2, 4, 8, 16, 16
    key = jax.random.PRNGKey(0)
    k1, k2, k3, k4 = jax.random.split(key, 4)

    x = jax.random.normal(k1, (N, Cin, H, W), jnp.float32)
    w1 = jax.random.normal(k2, (Cout, Cin, 3, 3), jnp.float32) * 0.1
    w2 = jax.random.normal(k3, (Cout, Cout, 3, 3), jnp.float32) * 0.1
    ws = jax.random.normal(k4, (Cout, Cin, 1, 1), jnp.float32) * 0.1

    # spectral_norm=True applies to conv1 / conv2 only (not the shortcut).
    w1_sn = spectral_normalize(w1)
    w2_sn = spectral_normalize(w2)

    ref = _reference(x, w1_sn, w2_sn, ws)

    # tile_h=8 -> two H-tiles per image: exercises the halo handling, the
    # boundary-reflect fix-ups and the double-buffered slab prefetch.
    out = jax.block_until_ready(preact_block(x, w1_sn, w2_sn, ws, tile_h=8))
    assert out.shape == (N, Cout, H, W)
    err = float(jnp.max(jnp.abs(out - ref)))
    assert jnp.allclose(out, ref, atol=1e-2, rtol=1e-2), f"max abs err {err}"

    # Auto-tiled path (TH chosen from the device's actual VMEM capacity).
    out2 = jax.block_until_ready(preact_block(x, w1_sn, w2_sn, ws))
    err2 = float(jnp.max(jnp.abs(out2 - ref)))
    assert jnp.allclose(out2, ref, atol=1e-2, rtol=1e-2), f"max abs err {err2}"

    print("KERNEL_OK")
</pallas_src>

<mosaic_0001>
module attributes {stable_mosaic.version = 11 : i64} {
  func.func @kernel(%arg0: i32, %arg1: i32, %arg2: memref<2x20x24x128xbf16, #tpu.memory_space<any>>, %arg3: memref<1152x128xbf16, #tpu.memory_space<vmem>>, %arg4: memref<1152x128xbf16, #tpu.memory_space<vmem>>, %arg5: memref<128x128xbf16, #tpu.memory_space<vmem>>, %arg6: memref<1x8x24x128xf32, #tpu.memory_space<vmem>>, %arg7: memref<2x12x24x128xbf16, #tpu.memory_space<vmem>>, %arg8: memref<10x24x128xf32, #tpu.memory_space<vmem>>, %arg9: memref<2x!tpu.dma_semaphore, #tpu.memory_space<semaphore_mem>>) attributes {dimension_semantics = [#tpu.dimension_semantics<parallel>, #tpu.dimension_semantics<arbitrary>], iteration_bounds = array<i64: 2, 2>, scalar_prefetch = 0 : i64, scratch_operands = 3 : i64, tpu.core_type = #tpu.core_type<tc>, window_params = [{}, {pipeline_mode = #tpu.pipeline_mode<synchronous>, transform_indices = @transform_1, window_bounds = array<i64: 1152, 128>}, {pipeline_mode = #tpu.pipeline_mode<synchronous>, transform_indices = @transform_2, window_bounds = array<i64: 1152, 128>}, {pipeline_mode = #tpu.pipeline_mode<synchronous>, transform_indices = @transform_3, window_bounds = array<i64: 128, 128>}, {transform_indices = @transform_4, window_bounds = array<i64: 1, 8, 24, 128>}]} {
    %c2_i32 = arith.constant 2 : i32
    %c0_i32 = arith.constant 0 : i32
    %0 = arith.cmpi eq, %c2_i32, %c0_i32 : i32
    %c1_i32 = arith.constant 1 : i32
    %1 = arith.select %0, %c1_i32, %c2_i32 : i32
    %2 = arith.remsi %arg1, %1 : i32
    %c0_i32_0 = arith.constant 0 : i32
    %3 = arith.cmpi ne, %2, %c0_i32_0 : i32
    %c0_i32_1 = arith.constant 0 : i32
    %4 = arith.cmpi slt, %2, %c0_i32_1 : i32
    %c0_i32_2 = arith.constant 0 : i32
    %5 = arith.cmpi slt, %1, %c0_i32_2 : i32
    %6 = arith.xori %4, %5 : i1
    %7 = arith.andi %6, %3 : i1
    %8 = arith.addi %2, %1 : i32
    %9 = arith.select %7, %8, %2 : i32
    %c8_i32 = arith.constant 8 : i32
    %10 = arith.muli %arg1, %c8_i32 : i32
    %11 = tpu.assume_multiple %10, 8 : i32
    %c0_i32_3 = arith.constant 0 : i32
    %12 = arith.cmpi eq, %arg1, %c0_i32_3 : i32
    %13 = arith.extui %12 : i1 to i32
    %c0_i32_4 = arith.constant 0 : i32
    %14 = arith.cmpi ne, %13, %c0_i32_4 : i32
    scf.if %14 {
      %c0_i32_66 = arith.constant 0 : i32
      %c0_i32_67 = arith.constant 0 : i32
      %129 = tpu.memref_slice %arg2[%arg0, %11, %c0_i32_66, %c0_i32_67] : memref<2x20x24x128xbf16, #tpu.memory_space<any>> -> memref<1x12x24x128xbf16, #tpu.memory_space<any>>
      %130 = tpu.memref_squeeze %129 : memref<1x12x24x128xbf16, #tpu.memory_space<any>> -> memref<12x24x128xbf16, #tpu.memory_space<any>>
      %c0_i32_68 = arith.constant 0 : i32
      %c0_i32_69 = arith.constant 0 : i32
      %c0_i32_70 = arith.constant 0 : i32
      %131 = tpu.memref_slice %arg7[%9, %c0_i32_68, %c0_i32_69, %c0_i32_70] : memref<2x12x24x128xbf16, #tpu.memory_space<vmem>> -> memref<1x12x24x128xbf16, #tpu.memory_space<vmem>>
      %132 = tpu.memref_squeeze %131 : memref<1x12x24x128xbf16, #tpu.memory_space<vmem>> -> memref<12x24x128xbf16, #tpu.memory_space<vmem>>
      %133 = tpu.memref_slice %arg9[%9] : memref<2x!tpu.dma_semaphore, #tpu.memory_space<semaphore_mem>> -> memref<1x!tpu.dma_semaphore, #tpu.memory_space<semaphore_mem>>
      %134 = tpu.memref_squeeze %133 : memref<1x!tpu.dma_semaphore, #tpu.memory_space<semaphore_mem>> -> memref<!tpu.dma_semaphore, #tpu.memory_space<semaphore_mem>>
      tpu.enqueue_dma source(%130 : memref<12x24x128xbf16, #tpu.memory_space<any>>) target(%132 : memref<12x24x128xbf16, #tpu.memory_space<vmem>>) target_semaphore(%134 : memref<!tpu.dma_semaphore, #tpu.memory_space<semaphore_mem>>)
    } else {
    }
    %c1_i32_5 = arith.constant 1 : i32
    %15 = arith.addi %arg1, %c1_i32_5 : i32
    %c2_i32_6 = arith.constant 2 : i32
    %16 = arith.cmpi slt, %15, %c2_i32_6 : i32
    %17 = arith.extui %16 : i1 to i32
    %c0_i32_7 = arith.constant 0 : i32
    %18 = arith.cmpi ne, %17, %c0_i32_7 : i32
    scf.if %18 {
      %c1_i32_66 = arith.constant 1 : i32
      %129 = arith.addi %arg1, %c1_i32_66 : i32
      %c8_i32_67 = arith.constant 8 : i32
      %130 = arith.muli %129, %c8_i32_67 : i32
      %131 = tpu.assume_multiple %130, 8 : i32
      %c1_i32_68 = arith.constant 1 : i32
      %132 = arith.subi %c1_i32_68, %9 : i32
      %c0_i32_69 = arith.constant 0 : i32
      %c0_i32_70 = arith.constant 0 : i32
      %133 = tpu.memref_slice %arg2[%arg0, %131, %c0_i32_69, %c0_i32_70] : memref<2x20x24x128xbf16, #tpu.memory_space<any>> -> memref<1x12x24x128xbf16, #tpu.memory_space<any>>
      %134 = tpu.memref_squeeze %133 : memref<1x12x24x128xbf16, #tpu.memory_space<any>> -> memref<12x24x128xbf16, #tpu.memory_space<any>>
      %c0_i32_71 = arith.constant 0 : i32
      %c0_i32_72 = arith.constant 0 : i32
      %c0_i32_73 = arith.constant 0 : i32
      %135 = tpu.memref_slice %arg7[%132, %c0_i32_71, %c0_i32_72, %c0_i32_73] : memref<2x12x24x128xbf16, #tpu.memory_space<vmem>> -> memref<1x12x24x128xbf16, #tpu.memory_space<vmem>>
      %136 = tpu.memref_squeeze %135 : memref<1x12x24x128xbf16, #tpu.memory_space<vmem>> -> memref<12x24x128xbf16, #tpu.memory_space<vmem>>
      %137 = tpu.memref_slice %arg9[%132] : memref<2x!tpu.dma_semaphore, #tpu.memory_space<semaphore_mem>> -> memref<1x!tpu.dma_semaphore, #tpu.memory_space<semaphore_mem>>
      %138 = tpu.memref_squeeze %137 : memref<1x!tpu.dma_semaphore, #tpu.memory_space<semaphore_mem>> -> memref<!tpu.dma_semaphore, #tpu.memory_space<semaphore_mem>>
      tpu.enqueue_dma source(%134 : memref<12x24x128xbf16, #tpu.memory_space<any>>) target(%136 : memref<12x24x128xbf16, #tpu.memory_space<vmem>>) target_semaphore(%138 : memref<!tpu.dma_semaphore, #tpu.memory_space<semaphore_mem>>)
    } else {
    }
    %c0_i32_8 = arith.constant 0 : i32
    %c0_i32_9 = arith.constant 0 : i32
    %19 = tpu.memref_slice %arg2[%arg0, %11, %c0_i32_8, %c0_i32_9] : memref<2x20x24x128xbf16, #tpu.memory_space<any>> -> memref<1x12x24x128xbf16, #tpu.memory_space<any>>
    %20 = tpu.memref_squeeze %19 : memref<1x12x24x128xbf16, #tpu.memory_space<any>> -> memref<12x24x128xbf16, #tpu.memory_space<any>>
    %c0_i32_10 = arith.constant 0 : i32
    %c0_i32_11 = arith.constant 0 : i32
    %c0_i32_12 = arith.constant 0 : i32
    %21 = tpu.memref_slice %arg7[%9, %c0_i32_10, %c0_i32_11, %c0_i32_12] : memref<2x12x24x128xbf16, #tpu.memory_space<vmem>> -> memref<1x12x24x128xbf16, #tpu.memory_space<vmem>>
    %22 = tpu.memref_squeeze %21 : memref<1x12x24x128xbf16, #tpu.memory_space<vmem>> -> memref<12x24x128xbf16, #tpu.memory_space<vmem>>
    %23 = tpu.memref_slice %arg9[%9] : memref<2x!tpu.dma_semaphore, #tpu.memory_space<semaphore_mem>> -> memref<1x!tpu.dma_semaphore, #tpu.memory_space<semaphore_mem>>
    %24 = tpu.memref_squeeze %23 : memref<1x!tpu.dma_semaphore, #tpu.memory_space<semaphore_mem>> -> memref<!tpu.dma_semaphore, #tpu.memory_space<semaphore_mem>>
    tpu.wait_dma2 semaphore(%24 : memref<!tpu.dma_semaphore, #tpu.memory_space<semaphore_mem>>) src(%20 : memref<12x24x128xbf16, #tpu.memory_space<any>>) dst(%22 : memref<12x24x128xbf16, #tpu.memory_space<vmem>>)
    %25 = arith.index_cast %9 : i32 to index
    %c0 = arith.constant 0 : index
    %c0_13 = arith.constant 0 : index
    %c0_14 = arith.constant 0 : index
    %26 = vector.load %arg7[%25, %c0, %c0_13, %c0_14] : memref<2x12x24x128xbf16, #tpu.memory_space<vmem>>, vector<1x12x24x128xbf16>
    %27 = vector.shape_cast %26 : vector<1x12x24x128xbf16> to vector<12x24x128xbf16>
    %28 = arith.extf %27 : vector<12x24x128xbf16> to vector<12x24x128xf32>
    %cst = arith.constant 2.000000e+01 : f32
    %29 = vector.broadcast %cst : f32 to vector<12x24x128xf32>
    %30 = arith.minimumf %28, %29 : vector<12x24x128xf32>
    %31 = math.exp %30 : vector<12x24x128xf32>
    %cst_15 = arith.constant 1.000000e+00 : f32
    %32 = vector.broadcast %cst_15 : f32 to vector<12x24x128xf32>
    %33 = arith.addf %32, %31 : vector<12x24x128xf32>
    %cst_16 = arith.constant 1.000000e+00 : f32
    %34 = vector.broadcast %cst_16 : f32 to vector<12x24x128xf32>
    %35 = arith.addf %34, %31 : vector<12x24x128xf32>
    %36 = arith.mulf %33, %35 : vector<12x24x128xf32>
    %cst_17 = arith.constant 1.000000e+00 : f32
    %37 = vector.broadcast %cst_17 : f32 to vector<12x24x128xf32>
    %38 = arith.subf %36, %37 : vector<12x24x128xf32>
    %39 = arith.mulf %28, %38 : vector<12x24x128xf32>
    %cst_18 = arith.constant 1.000000e+00 : f32
    %40 = vector.broadcast %cst_18 : f32 to vector<12x24x128xf32>
    %41 = arith.addf %36, %40 : vector<12x24x128xf32>
    %42 = tpu.reciprocal %41 {approx = true} : vector<12x24x128xf32> -> vector<12x24x128xf32>
    %43 = arith.mulf %39, %42 : vector<12x24x128xf32>
    %44 = vector.extract_strided_slice %43 {offsets = [0, 0, 0], sizes = [10, 24, 128], strides = [1, 1, 1]} : vector<12x24x128xf32> to vector<10x24x128xf32>
    %45 = vector.shape_cast %44 : vector<10x24x128xf32> to vector<240x128xf32>
    %c1_i32_19 = arith.constant 1 : i32
    %46 = tpu.dynamic_rotate %45 by %c1_i32_19 dim 0 : vector<240x128xf32>, i32 -> vector<240x128xf32>
    %47 = arith.truncf %46 : vector<240x128xf32> to vector<240x128xbf16>
    %48 = arith.truncf %45 : vector<240x128xf32> to vector<240x128xbf16>
    %c239_i32 = arith.constant 239 : i32
    %49 = tpu.dynamic_rotate %45 by %c239_i32 dim 0 : vector<240x128xf32>, i32 -> vector<240x128xf32>
    %50 = arith.truncf %49 : vector<240x128xf32> to vector<240x128xbf16>
    %51 = vector.extract_strided_slice %43 {offsets = [1, 0, 0], sizes = [10, 24, 128], strides = [1, 1, 1]} : vector<12x24x128xf32> to vector<10x24x128xf32>
    %52 = vector.shape_cast %51 : vector<10x24x128xf32> to vector<240x128xf32>
    %c1_i32_20 = arith.constant 1 : i32
    %53 = tpu.dynamic_rotate %52 by %c1_i32_20 dim 0 : vector<240x128xf32>, i32 -> vector<240x128xf32>
    %54 = arith.truncf %53 : vector<240x128xf32> to vector<240x128xbf16>
    %55 = arith.truncf %52 : vector<240x128xf32> to vector<240x128xbf16>
    %c239_i32_21 = arith.constant 239 : i32
    %56 = tpu.dynamic_rotate %52 by %c239_i32_21 dim 0 : vector<240x128xf32>, i32 -> vector<240x128xf32>
    %57 = arith.truncf %56 : vector<240x128xf32> to vector<240x128xbf16>
    %58 = vector.extract_strided_slice %43 {offsets = [2, 0, 0], sizes = [10, 24, 128], strides = [1, 1, 1]} : vector<12x24x128xf32> to vector<10x24x128xf32>
    %59 = vector.shape_cast %58 : vector<10x24x128xf32> to vector<240x128xf32>
    %c1_i32_22 = arith.constant 1 : i32
    %60 = tpu.dynamic_rotate %59 by %c1_i32_22 dim 0 : vector<240x128xf32>, i32 -> vector<240x128xf32>
    %61 = arith.truncf %60 : vector<240x128xf32> to vector<240x128xbf16>
    %62 = arith.truncf %59 : vector<240x128xf32> to vector<240x128xbf16>
    %c239_i32_23 = arith.constant 239 : i32
    %63 = tpu.dynamic_rotate %59 by %c239_i32_23 dim 0 : vector<240x128xf32>, i32 -> vector<240x128xf32>
    %64 = arith.truncf %63 : vector<240x128xf32> to vector<240x128xbf16>
    %65 = tpu.concatenate %47, %48, %50, %54, %55, %57, %61, %62, %64 in 1 : vector<240x128xbf16>, vector<240x128xbf16>, vector<240x128xbf16>, vector<240x128xbf16>, vector<240x128xbf16>, vector<240x128xbf16>, vector<240x128xbf16>, vector<240x128xbf16>, vector<240x128xbf16> -> vector<240x1152xbf16>
    %c0_24 = arith.constant 0 : index
    %c0_25 = arith.constant 0 : index
    %66 = vector.load %arg3[%c0_24, %c0_25] : memref<1152x128xbf16, #tpu.memory_space<vmem>>, vector<1152x128xbf16>
    %cst_26 = arith.constant dense<0.000000e+00> : vector<240x128xf32>
    %67 = tpu.matmul %65, %66, %cst_26 {dimension_numbers = #tpu.dot_dimension_numbers<[1], [0], [0], [1], [0, 0, 1, 1], [], []>} : vector<240x1152xbf16>, vector<1152x128xbf16>, vector<240x128xf32> -> vector<240x128xf32>
    %cst_27 = arith.constant 2.000000e+01 : f32
    %68 = vector.broadcast %cst_27 : f32 to vector<240x128xf32>
    %69 = arith.minimumf %67, %68 : vector<240x128xf32>
    %70 = math.exp %69 : vector<240x128xf32>
    %cst_28 = arith.constant 1.000000e+00 : f32
    %71 = vector.broadcast %cst_28 : f32 to vector<240x128xf32>
    %72 = arith.addf %71, %70 : vector<240x128xf32>
    %cst_29 = arith.constant 1.000000e+00 : f32
    %73 = vector.broadcast %cst_29 : f32 to vector<240x128xf32>
    %74 = arith.addf %73, %70 : vector<240x128xf32>
    %75 = arith.mulf %72, %74 : vector<240x128xf32>
    %cst_30 = arith.constant 1.000000e+00 : f32
    %76 = vector.broadcast %cst_30 : f32 to vector<240x128xf32>
    %77 = arith.subf %75, %76 : vector<240x128xf32>
    %78 = arith.mulf %67, %77 : vector<240x128xf32>
    %cst_31 = arith.constant 1.000000e+00 : f32
    %79 = vector.broadcast %cst_31 : f32 to vector<240x128xf32>
    %80 = arith.addf %75, %79 : vector<240x128xf32>
    %81 = tpu.reciprocal %80 {approx = true} : vector<240x128xf32> -> vector<240x128xf32>
    %82 = arith.mulf %78, %81 : vector<240x128xf32>
    %83 = vector.shape_cast %82 : vector<240x128xf32> to vector<10x24x128xf32>
    %c0_32 = arith.constant 0 : index
    %c0_33 = arith.constant 0 : index
    %c0_34 = arith.constant 0 : index
    %84 = vector.load %arg8[%c0_32, %c0_33, %c0_34] : memref<10x24x128xf32, #tpu.memory_space<vmem>>, vector<10x24x128xf32>
    tpu.vector_store %arg8[%c0_32, %c0_33, %c0_34], %83 {strides = array<i32>} : memref<10x24x128xf32, #tpu.memory_space<vmem>>, vector<10x24x128xf32>,
    %c0_i32_35 = arith.constant 0 : i32
    %85 = arith.cmpi eq, %arg1, %c0_i32_35 : i32
    %86 = arith.extui %85 : i1 to i32
    %c0_i32_36 = arith.constant 0 : i32
    %87 = arith.cmpi ne, %86, %c0_i32_36 : i32
    scf.if %87 {
      %c2_66 = arith.constant 2 : index
      %c0_67 = arith.constant 0 : index
      %c0_68 = arith.constant 0 : index
      %129 = vector.load %arg8[%c2_66, %c0_67, %c0_68] : memref<10x24x128xf32, #tpu.memory_space<vmem>>, vector<1x24x128xf32>
      %c0_69 = arith.constant 0 : index
      %c0_70 = arith.constant 0 : index
      %c0_71 = arith.constant 0 : index
      %130 = vector.load %arg8[%c0_69, %c0_70, %c0_71] : memref<10x24x128xf32, #tpu.memory_space<vmem>>, vector<1x24x128xf32>
      tpu.vector_store %arg8[%c0_69, %c0_70, %c0_71], %129 {strides = array<i32>} : memref<10x24x128xf32, #tpu.memory_space<vmem>>, vector<1x24x128xf32>,
    } else {
    }
    %c1_i32_37 = arith.constant 1 : i32
    %88 = arith.cmpi eq, %arg1, %c1_i32_37 : i32
    %89 = arith.extui %88 : i1 to i32
    %c0_i32_38 = arith.constant 0 : i32
    %90 = arith.cmpi ne, %89, %c0_i32_38 : i32
    scf.if %90 {
      %c7 = arith.constant 7 : index
      %c0_66 = arith.constant 0 : index
      %c0_67 = arith.constant 0 : index
      %129 = vector.load %arg8[%c7, %c0_66, %c0_67] : memref<10x24x128xf32, #tpu.memory_space<vmem>>, vector<1x24x128xf32>
      %c9 = arith.constant 9 : index
      %c0_68 = arith.constant 0 : index
      %c0_69 = arith.constant 0 : index
      %130 = vector.load %arg8[%c9, %c0_68, %c0_69] : memref<10x24x128xf32, #tpu.memory_space<vmem>>, vector<1x24x128xf32>
      tpu.vector_store %arg8[%c9, %c0_68, %c0_69], %129 {strides = array<i32>} : memref<10x24x128xf32, #tpu.memory_space<vmem>>, vector<1x24x128xf32>,
    } else {
    }
    %c0_39 = arith.constant 0 : index
    %c2 = arith.constant 2 : index
    %c0_40 = arith.constant 0 : index
    %91 = vector.load %arg8[%c0_39, %c2, %c0_40] : memref<10x24x128xf32, #tpu.memory_space<vmem>>, vector<10x1x128xf32>
    %c0_41 = arith.constant 0 : index
    %c0_42 = arith.constant 0 : index
    %c0_43 = arith.constant 0 : index
    %92 = vector.load %arg8[%c0_41, %c0_42, %c0_43] : memref<10x24x128xf32, #tpu.memory_space<vmem>>, vector<10x1x128xf32>
    tpu.vector_store %arg8[%c0_41, %c0_42, %c0_43], %91 {strides = array<i32>} : memref<10x24x128xf32, #tpu.memory_space<vmem>>, vector<10x1x128xf32>,
    %c0_44 = arith.constant 0 : index
    %c15 = arith.constant 15 : index
    %c0_45 = arith.constant 0 : index
    %93 = vector.load %arg8[%c0_44, %c15, %c0_45] : memref<10x24x128xf32, #tpu.memory_space<vmem>>, vector<10x1x128xf32>
    %c0_46 = arith.constant 0 : index
    %c17 = arith.constant 17 : index
    %c0_47 = arith.constant 0 : index
    %94 = vector.load %arg8[%c0_46, %c17, %c0_47] : memref<10x24x128xf32, #tpu.memory_space<vmem>>, vector<10x1x128xf32>
    tpu.vector_store %arg8[%c0_46, %c17, %c0_47], %93 {strides = array<i32>} : memref<10x24x128xf32, #tpu.memory_space<vmem>>, vector<10x1x128xf32>,
    %c0_48 = arith.constant 0 : index
    %c0_49 = arith.constant 0 : index
    %c0_50 = arith.constant 0 : index
    %95 = vector.load %arg8[%c0_48, %c0_49, %c0_50] : memref<10x24x128xf32, #tpu.memory_space<vmem>>, vector<10x24x128xf32>
    %96 = vector.extract_strided_slice %95 {offsets = [0, 0, 0], sizes = [8, 24, 128], strides = [1, 1, 1]} : vector<10x24x128xf32> to vector<8x24x128xf32>
    %97 = vector.shape_cast %96 : vector<8x24x128xf32> to vector<192x128xf32>
    %c1_i32_51 = arith.constant 1 : i32
    %98 = tpu.dynamic_rotate %97 by %c1_i32_51 dim 0 : vector<192x128xf32>, i32 -> vector<192x128xf32>
    %99 = arith.truncf %98 : vector<192x128xf32> to vector<192x128xbf16>
    %100 = arith.truncf %97 : vector<192x128xf32> to vector<192x128xbf16>
    %c191_i32 = arith.constant 191 : i32
    %101 = tpu.dynamic_rotate %97 by %c191_i32 dim 0 : vector<192x128xf32>, i32 -> vector<192x128xf32>
    %102 = arith.truncf %101 : vector<192x128xf32> to vector<192x128xbf16>
    %103 = vector.extract_strided_slice %95 {offsets = [1, 0, 0], sizes = [8, 24, 128], strides = [1, 1, 1]} : vector<10x24x128xf32> to vector<8x24x128xf32>
    %104 = vector.shape_cast %103 : vector<8x24x128xf32> to vector<192x128xf32>
    %c1_i32_52 = arith.constant 1 : i32
    %105 = tpu.dynamic_rotate %104 by %c1_i32_52 dim 0 : vector<192x128xf32>, i32 -> vector<192x128xf32>
    %106 = arith.truncf %105 : vector<192x128xf32> to vector<192x128xbf16>
    %107 = arith.truncf %104 : vector<192x128xf32> to vector<192x128xbf16>
    %c191_i32_53 = arith.constant 191 : i32
    %108 = tpu.dynamic_rotate %104 by %c191_i32_53 dim 0 : vector<192x128xf32>, i32 -> vector<192x128xf32>
    %109 = arith.truncf %108 : vector<192x128xf32> to vector<192x128xbf16>
    %110 = vector.extract_strided_slice %95 {offsets = [2, 0, 0], sizes = [8, 24, 128], strides = [1, 1, 1]} : vector<10x24x128xf32> to vector<8x24x128xf32>
    %111 = vector.shape_cast %110 : vector<8x24x128xf32> to vector<192x128xf32>
    %c1_i32_54 = arith.constant 1 : i32
    %112 = tpu.dynamic_rotate %111 by %c1_i32_54 dim 0 : vector<192x128xf32>, i32 -> vector<192x128xf32>
    %113 = arith.truncf %112 : vector<192x128xf32> to vector<192x128xbf16>
    %114 = arith.truncf %111 : vector<192x128xf32> to vector<192x128xbf16>
    %c191_i32_55 = arith.constant 191 : i32
    %115 = tpu.dynamic_rotate %111 by %c191_i32_55 dim 0 : vector<192x128xf32>, i32 -> vector<192x128xf32>
    %116 = arith.truncf %115 : vector<192x128xf32> to vector<192x128xbf16>
    %117 = tpu.concatenate %99, %100, %102, %106, %107, %109, %113, %114, %116 in 1 : vector<192x128xbf16>, vector<192x128xbf16>, vector<192x128xbf16>, vector<192x128xbf16>, vector<192x128xbf16>, vector<192x128xbf16>, vector<192x128xbf16>, vector<192x128xbf16>, vector<192x128xbf16> -> vector<192x1152xbf16>
    %c0_56 = arith.constant 0 : index
    %c0_57 = arith.constant 0 : index
    %118 = vector.load %arg4[%c0_56, %c0_57] : memref<1152x128xbf16, #tpu.memory_space<vmem>>, vector<1152x128xbf16>
    %cst_58 = arith.constant dense<0.000000e+00> : vector<192x128xf32>
    %119 = tpu.matmul %117, %118, %cst_58 {dimension_numbers = #tpu.dot_dimension_numbers<[1], [0], [0], [1], [0, 0, 1, 1], [], []>} : vector<192x1152xbf16>, vector<1152x128xbf16>, vector<192x128xf32> -> vector<192x128xf32>
    %120 = vector.extract_strided_slice %27 {offsets = [2, 0, 0], sizes = [8, 24, 128], strides = [1, 1, 1]} : vector<12x24x128xbf16> to vector<8x24x128xbf16>
    %121 = vector.shape_cast %120 : vector<8x24x128xbf16> to vector<192x128xbf16>
    %c0_59 = arith.constant 0 : index
    %c0_60 = arith.constant 0 : index
    %122 = vector.load %arg5[%c0_59, %c0_60] : memref<128x128xbf16, #tpu.memory_space<vmem>>, vector<128x128xbf16>
    %cst_61 = arith.constant dense<0.000000e+00> : vector<192x128xf32>
    %123 = tpu.matmul %121, %122, %cst_61 {dimension_numbers = #tpu.dot_dimension_numbers<[1], [0], [0], [1], [0, 0, 1, 1], [], []>} : vector<192x128xbf16>, vector<128x128xbf16>, vector<192x128xf32> -> vector<192x128xf32>
    %124 = arith.addf %119, %123 : vector<192x128xf32>
    %125 = vector.shape_cast %124 : vector<192x128xf32> to vector<8x24x128xf32>
    %c0_62 = arith.constant 0 : index
    %c0_63 = arith.constant 0 : index
    %c0_64 = arith.constant 0 : index
    %c0_65 = arith.constant 0 : index
    %126 = vector.load %arg6[%c0_62, %c0_63, %c0_64, %c0_65] : memref<1x8x24x128xf32, #tpu.memory_space<vmem>>, vector<1x8x24x128xf32>
    %127 = vector.shape_cast %126 : vector<1x8x24x128xf32> to vector<8x24x128xf32>
    %128 = vector.shape_cast %125 : vector<8x24x128xf32> to vector<1x8x24x128xf32>
    tpu.vector_store %arg6[%c0_62, %c0_63, %c0_64, %c0_65], %128 {strides = array<i32>} : memref<1x8x24x128xf32, #tpu.memory_space<vmem>>, vector<1x8x24x128xf32>,
    return
  }
  func.func @transform_1(%arg0: i32, %arg1: i32) -> (i32, i32) {
    %c0_i32 = arith.constant 0 : i32
    %c0_i32_0 = arith.constant 0 : i32
    %c0_i32_1 = arith.constant 0 : i32
    return %c0_i32, %c0_i32_0 : i32, i32
  }
  func.func @transform_2(%arg0: i32, %arg1: i32) -> (i32, i32) {
    %c0_i32 = arith.constant 0 : i32
    %c0_i32_0 = arith.constant 0 : i32
    %c0_i32_1 = arith.constant 0 : i32
    return %c0_i32, %c0_i32_0 : i32, i32
  }
  func.func @transform_3(%arg0: i32, %arg1: i32) -> (i32, i32) {
    %c0_i32 = arith.constant 0 : i32
    %c0_i32_0 = arith.constant 0 : i32
    %c0_i32_1 = arith.constant 0 : i32
    return %c0_i32, %c0_i32_0 : i32, i32
  }
  func.func @transform_4(%arg0: i32, %arg1: i32) -> (i32, i32, i32, i32) {
    %c0_i32 = arith.constant 0 : i32
    %c0_i32_0 = arith.constant 0 : i32
    %c0_i32_1 = arith.constant 0 : i32
    return %arg0, %arg1, %c0_i32, %c0_i32_0 : i32, i32, i32, i32
  }
}

</mosaic_0001>

<llo_original>
// kernel: tpu_custom_call.1
$region0: #{tpu_custom_call.1}
  #allocation0 [shape = 'u32[]', space=smem, size = 0x4, offset = 0x4, fixed_abs, tag = 'smem constant byte address 0x4 - core index']
  #allocation1 [shape = 'u32[144,128]{1,0:T(1,128)}', space=vmem, size = 0x12000, scoped, tag = 'internal scratch']
  #allocation2 [shape = 'bf16[2,12,24,128]{3,2,1,0:T(8,128)(2,1)}', space=vmem, size = 0x24000, scoped, tag = 'scratch operand']
  #allocation3 [shape = 'f32[10,24,128]{2,1,0:T(8,128)}', space=vmem, size = 0x1e000, scoped, tag = 'scratch operand']
  #allocation4 [shape = 's32[2]{0}', space=sflag, size = 0x8, scoped, tag = 'scratch operand']
  #allocation12 [shape = 's32[]', space=sflag, size = 0x4, offset = 0, fixed_abs, tag = 'sflag constant byte address 0x0 - dummy sync flag']
  #allocation13 [shape = 's32[]', space=sflag, size = 0x4, offset = 0, fixed_abs, tag = 'sflag constant byte address 0x0 - dummy sync flag']
  #allocation14 [shape = 'u32[]', space=smem, size = 0x4, offset = 0x44, fixed_abs, tag = 'smem constant byte address 0x44 - assertion arg 0']
  #allocation15 [shape = 'u32[]', space=smem, size = 0x4, offset = 0x48, fixed_abs, tag = 'smem constant byte address 0x48 - assertion arg 1']
  #allocation16 [shape = 's32[]', space=sflag, size = 0x4, offset = 0, fixed_abs, tag = 'sflag constant byte address 0x0 - dummy sync flag']
  #allocation17 [shape = 's32[]', space=sflag, size = 0x4, offset = 0, fixed_abs, tag = 'sflag constant byte address 0x0 - dummy sync flag']
  %s0 = inlined_call_operand.hbm [shape: bf16[2,20,24,128], index: 0, kind: input, shape index: {}]
  %s1 = inlined_call_operand.hbm [shape: bf16[1152,128], index: 1, kind: input, shape index: {}]
  %s2 = inlined_call_operand.hbm [shape: bf16[1152,128], index: 2, kind: input, shape index: {}]
  %s3 = inlined_call_operand.hbm [shape: bf16[128,128], index: 3, kind: input, shape index: {}]
  %s4 = inlined_call_operand.hbm [shape: f32[2,16,24,128], index: 4, kind: output, shape index: {}]
  %s5 = sld [smem:[#allocation0]]
  $region81: #{tpu_custom_call.1} parent=0
    _
  %s7 = ssub.s32 1, %s5
  %s8 = scalar_select 0, %s7, %s5
  $region1: #{tpu_custom_call.1} parent=0
    #allocation5 [shape = 'u8[294912]{0}', space=vmem, size = 0x48000, scoped, tag = 'input window, operand 1, single buffered']
    #allocation6 [shape = 's32[2]{0}', space=sflag, size = 0x8, scoped, tag = 'scoped memory for tpu_custom_call.1']
    #allocation7 [shape = 's32[2]{0}', space=sflag, size = 0x8, scoped, tag = 'scoped memory for tpu_custom_call.1']
    #allocation8 [shape = 'u8[294912]{0}', space=vmem, size = 0x48000, scoped, tag = 'input window, operand 2, single buffered']
    #allocation9 [shape = 's32[1]{0}', space=sflag, size = 0x4, scoped, tag = 'scoped memory for tpu_custom_call.1']
    #allocation10 [shape = 'u8[32768]{0}', space=vmem, size = 0x8000, scoped, tag = 'input window, operand 3, single buffered']
    #allocation11 [shape = 'u8[196608]{0}', space=vmem, size = 0x30000, scoped, tag = 'output window, operand 0']
    %9 = vsyncpa [#allocation6], 0
    %10 = vsyncpa [#allocation9], 0
    %11 = vsyncpa [#allocation7], 0
    %s12 = scalar_lea.sflag [#allocation7], 1
    %13 = vsyncpa %s12, 0
    loop: start=0, step=1, limit=6
    $region2: #{tpu_custom_call.1} parent=1 // loop_pre_header
      _
    $region3: #{tpu_custom_call.1} parent=1 // loop_header
      %s15 = sphi 0, %s19
      %p16 = scmp.ge.s32.totalorder %s15, 6
      %s22 = sphi 0, %s34
      %s23 = sphi 0, %s30
      %s24 = sphi 0, %s22
      %s25 = sphi 0, %s23
      %s26 = sphi 0, %s24
      %s27 = sphi 0, %s25
      %s35 = sphi 0, %s35
      %s37 = sphi 0, %s35
      %s38 = sphi 0, %s37
      %s52 = sphi 0, %s38
      %s56 = sphi 0, %s56
      %s58 = sphi 0, %s56
      %s59 = sphi 0, %s58
      %s73 = sphi 0, %s59
      %s77 = sphi 0, %s77
      %s79 = sphi 0, %s77
      %s80 = sphi 0, %s79
      %s94 = sphi 0, %s80
      %s102 = sphi 0, %s104
      %s105 = sphi 0, %s102
      %s106 = sphi 0, %s105
      %s122 = sphi 0, %s106
    $region4: #{tpu_custom_call.1} parent=1 // loop_header_branch
      %18 = sbr.rel (%p16) target = $region8
    $region5: #{tpu_custom_call.1} parent=1 // loop_body
      %s20 = ssub.s32 %s15, 1
      %s21 = ssub.s32 %s15, 2
      %s28 = sadd.s32 1, %s23
      %p29 = scmp.ge.s32.totalorder %s28, 2
      %s30 = scalar_select %p29, 0, %s28
      %s31 = sadd.s32 1, %s22
      %s32 = scalar_select %p29, %s31, %s22
      %p33 = scmp.ge.s32.totalorder %s32, 2
      %s34 = scalar_select %p33, 0, %s32
      %s36 = sadd.s32 %s35, 1
      %p39 = scmp.eq.s32.totalorder %s15, 3
      %p40 = scmp.ne.s32.totalorder %s35, %s37
      %p41 = scmp.eq.s32.totalorder %s15, 0
      %p42 = por %p40, %p41
      %p43 = scmp.ne.s32.totalorder %s35, %s37
      %p44 = scmp.eq.s32.totalorder %s20, 3
      %p45 = por %p43, %p44
      %p46 = scmp.ne.s32.totalorder %s37, %s38
      %p47 = scmp.eq.s32.totalorder %s20, 0
      %p48 = por %p46, %p47
      %p49 = scmp.ne.s32.totalorder %s37, %s38
      %p50 = scmp.eq.s32.totalorder %s21, 3
      %p51 = por %p49, %p50
      %p53 = scmp.ne.s32.totalorder %s38, %s52
      %p54 = scmp.eq.s32.totalorder %s21, 0
      %p55 = por %p53, %p54
      %s57 = sadd.s32 %s56, 1
      %p60 = scmp.eq.s32.totalorder %s15, 3
      %p61 = scmp.ne.s32.totalorder %s56, %s58
      %p62 = scmp.eq.s32.totalorder %s15, 0
      %p63 = por %p61, %p62
      %p64 = scmp.ne.s32.totalorder %s56, %s58
      %p65 = scmp.eq.s32.totalorder %s20, 3
      %p66 = por %p64, %p65
      %p67 = scmp.ne.s32.totalorder %s58, %s59
      %p68 = scmp.eq.s32.totalorder %s20, 0
      %p69 = por %p67, %p68
      %p70 = scmp.ne.s32.totalorder %s58, %s59
      %p71 = scmp.eq.s32.totalorder %s21, 3
      %p72 = por %p70, %p71
      %p74 = scmp.ne.s32.totalorder %s59, %s73
      %p75 = scmp.eq.s32.totalorder %s21, 0
      %p76 = por %p74, %p75
      %s78 = sadd.s32 %s77, 1
      %p81 = scmp.eq.s32.totalorder %s15, 3
      %p82 = scmp.ne.s32.totalorder %s77, %s79
      %p83 = scmp.eq.s32.totalorder %s15, 0
      %p84 = por %p82, %p83
      %p85 = scmp.ne.s32.totalorder %s77, %s79
      %p86 = scmp.eq.s32.totalorder %s20, 3
      %p87 = por %p85, %p86
      %p88 = scmp.ne.s32.totalorder %s79, %s80
      %p89 = scmp.eq.s32.totalorder %s20, 0
      %p90 = por %p88, %p89
      %p91 = scmp.ne.s32.totalorder %s79, %s80
      %p92 = scmp.eq.s32.totalorder %s21, 3
      %p93 = por %p91, %p92
      %p95 = scmp.ne.s32.totalorder %s80, %s94
      %p96 = scmp.eq.s32.totalorder %s21, 0
      %p97 = por %p95, %p96
      %s98 = ssub.s32 %s22, %s34
      %s99 = ssub.s32 %s23, %s30
      %s100 = sor.u32 %s98, %s99
      %p101 = scmp.eq.s32.totalorder %s100, 0
      %s103 = sadd.s32 %s102, 1
      %s104 = scalar_select %p101, %s102, %s103
      %p107 = pneg %p101
      %p108 = scmp.eq.s32.totalorder %s15, 3
      %p109 = por %p107, %p108
      %p110 = scmp.ne.s32.totalorder %s102, %s105
      %p111 = scmp.eq.s32.totalorder %s15, 0
      %p112 = por %p110, %p111
      %p113 = scmp.ne.s32.totalorder %s102, %s105
      %p114 = scmp.eq.s32.totalorder %s20, 3
      %p115 = por %p113, %p114
      %p116 = scmp.ne.s32.totalorder %s105, %s106
      %p117 = scmp.eq.s32.totalorder %s20, 0
      %p118 = por %p116, %p117
      %p119 = scmp.ne.s32.totalorder %s105, %s106
      %p120 = scmp.eq.s32.totalorder %s21, 3
      %p121 = por %p119, %p120
      %p123 = scmp.ne.s32.totalorder %s106, %s122
      %p124 = scmp.eq.s32.totalorder %s21, 0
      %p125 = por %p123, %p124
      %p126 = scmp.le.s32.totalorder 1, %s15
      %p127 = scmp.lt.s32.totalorder %s15, 5
      %p128 = pnand %p126, %p127
      %p129 = pneg %p128
      // Predicated region
      $region9: #{tpu_custom_call.1} parent=5 // pred_check
        _
      $region10: #{tpu_custom_call.1} parent=5 // pred_check_branch
        %131 = sbr.rel (%p128) target = $region12
      $region11: #{tpu_custom_call.1} parent=5 // pred_region
        %s132 = ssub.s32 %s15, 1
        // Predicated region
        $region13: #{tpu_custom_call.1} parent=11 // pred_check
          %p133 = pneg %p48
        $region14: #{tpu_custom_call.1} parent=11 // pred_check_branch
          %135 = sbr.rel (%p133) target = $region16
        $region15: #{tpu_custom_call.1} parent=11 // pred_region
          %s137 = ssub.s32 9216, 9216
          %138 = vsyncadd [#allocation6], %s137
          %s139 = sshll.u32 [#allocation5], 4
          %s140 = int_to_ptr.vmem [resolvable:$true] %s139
          %145 = dma.hbm_to_vmem [thread:$0]  %s1, 9216, %s140, [#allocation6], 64, 64, 4
        $region16: #{tpu_custom_call.1} parent=11 // pred_fallthru
          _
        // Predicated region
        $region17: #{tpu_custom_call.1} parent=11 // pred_check
          %p146 = pneg %p69
        $region18: #{tpu_custom_call.1} parent=11 // pred_check_branch
          %148 = sbr.rel (%p146) target = $region20
        $region19: #{tpu_custom_call.1} parent=11 // pred_region
          %s150 = ssub.s32 9216, 9216
          %151 = vsyncadd [#allocation9], %s150
          %s152 = sshll.u32 [#allocation8], 4
          %s153 = int_to_ptr.vmem [resolvable:$true] %s152
          %158 = dma.hbm_to_vmem [thread:$0]  %s2, 9216, %s153, [#allocation9], 64, 64, 4
        $region20: #{tpu_custom_call.1} parent=11 // pred_fallthru
          _
        // Predicated region
        $region21: #{tpu_custom_call.1} parent=11 // pred_check
          %p159 = pneg %p90
        $region22: #{tpu_custom_call.1} parent=11 // pred_check_branch
          %161 = sbr.rel (%p159) target = $region24
        $region23: #{tpu_custom_call.1} parent=11 // pred_region
          %s163 = ssub.s32 1024, 1024
          %164 = vsyncadd [#allocation9], %s163
          %s165 = sshll.u32 [#allocation10], 4
          %s166 = int_to_ptr.vmem [resolvable:$true] %s165
          %171 = dma.hbm_to_vmem [thread:$0]  %s3, 1024, %s166, [#allocation9], 64, 64, 4
        $region24: #{tpu_custom_call.1} parent=11 // pred_fallthru
          _
      $region12: #{tpu_custom_call.1} parent=5 // pred_fallthru
        _
      %p172 = scmp.lt.s32.totalorder %s15, 4
      // Predicated region
      $region25: #{tpu_custom_call.1} parent=5 // pred_check
        %p173 = pneg %p172
      $region26: #{tpu_custom_call.1} parent=5 // pred_check_branch
        %175 = sbr.rel (%p173) target = $region28
      $region27: #{tpu_custom_call.1} parent=5 // pred_region
        _
      $region28: #{tpu_custom_call.1} parent=5 // pred_fallthru
        _
      %p176 = scmp.le.s32.totalorder 1, %s15
      %p177 = scmp.lt.s32.totalorder %s15, 5
      %p178 = pnand %p176, %p177
      %p179 = pneg %p178
      // Predicated region
      $region29: #{tpu_custom_call.1} parent=5 // pred_check
        _
      $region30: #{tpu_custom_call.1} parent=5 // pred_check_branch
        %181 = sbr.rel (%p178) target = $region32
      $region31: #{tpu_custom_call.1} parent=5 // pred_region
        %s182 = ssub.s32 %s15, 1
        // Predicated region
        $region33: #{tpu_custom_call.1} parent=31 // pred_check
          %p183 = pneg %p48
        $region34: #{tpu_custom_call.1} parent=31 // pred_check_branch
          %185 = sbr.rel (%p183) target = $region36
        $region35: #{tpu_custom_call.1} parent=31 // pred_region
          %186 = dma.done [#allocation6], 9216
        $region36: #{tpu_custom_call.1} parent=31 // pred_fallthru
          _
        // Predicated region
        $region37: #{tpu_custom_call.1} parent=31 // pred_check
          %p187 = pneg %p69
        $region38: #{tpu_custom_call.1} parent=31 // pred_check_branch
          %189 = sbr.rel (%p187) target = $region40
        $region39: #{tpu_custom_call.1} parent=31 // pred_region
          %190 = dma.done [#allocation9], 9216
        $region40: #{tpu_custom_call.1} parent=31 // pred_fallthru
          _
        // Predicated region
        $region41: #{tpu_custom_call.1} parent=31 // pred_check
          %p191 = pneg %p90
        $region42: #{tpu_custom_call.1} parent=31 // pred_check_branch
          %193 = sbr.rel (%p191) target = $region44
        $region43: #{tpu_custom_call.1} parent=31 // pred_region
          %194 = dma.done [#allocation9], 1024
        $region44: #{tpu_custom_call.1} parent=31 // pred_fallthru
          _
        %p195 = pneg %p48
        %p196 = pneg %p45
        %p197 = pneg %p69
        %p198 = pneg %p66
        %p199 = pneg %p90
        %p200 = pneg %p87
        %p201 = pneg %p118
        %p202 = pneg %p115
        %s203 = sand.u32 %s105, 1
        %s204 = scalar_lea.sflag [#allocation7], %s203
        %s205 = sand.u32 %s105, 1
        %s206 = smul.addr %s205, 192
        %s207 = scalar_lea.vmem [#allocation11], %s206
        %s208 = smul.u32 8, %s25
        %p210 = scmp.lt.s32.totalorder %s25, 0
        %s211 = ssub.s32 0, %s25
        %s212 = scalar_select %p210, %s211, %s25
        %s213 = sand.u32 %s212, 1
        %s214 = ssub.s32 0, %s213
        %s215 = scalar_select %p210, %s214, %s213
        %p216 = scmp.ne.s32.totalorder %s215, 0
        %p217 = scmp.lt.s32.totalorder %s215, 0
        %p218 = pnand %p217, %p216
        %p219 = pneg %p218
        %s220 = sadd.s32 %s215, 2
        %s221 = scalar_select %p219, %s220, %s215
        %s222 = smul.u32 %s25, 8
        %p223 = scmp.eq.s32.totalorder %s25, 0
        // Predicated region
        $region45: #{tpu_custom_call.1} parent=31 // pred_check
          %p224 = pneg %p223
        $region46: #{tpu_custom_call.1} parent=31 // pred_check_branch
          %226 = sbr.rel (%p224) target = $region48
        $region47: #{tpu_custom_call.1} parent=31 // pred_region
          %s227 = smul.u32 %s222, 3
          %s228 = smul.u32 %s24, 60
          %s229 = sadd.s32 %s227, %s228
          %s230 = smul.addr %s229, 64
          %s231 = scalar_lea.hbm %s0, %s230
          %s232 = smul.u32 %s221, 36
          %s233 = smul.addr %s232, 4
          %s234 = scalar_lea.vmem [#allocation2], %s233
          %s235 = scalar_lea.sflag [#allocation4], %s221
          // Predicated region
          $region49: #{tpu_custom_call.1} parent=47 // pred_check
            _
          $region50: #{tpu_custom_call.1} parent=47 // pred_check_branch
            %237 = sbr.rel target = $region52
          $region51: #{tpu_custom_call.1} parent=47 // pred_region
            %238 = sst [smem:[#allocation14]] [#allocation13]
            %239 = sst [smem:[#allocation15]] [#allocation12]
          $region52: #{tpu_custom_call.1} parent=47 // pred_fallthru
            _
          %241 = shalt.err (0)
          %s243 = sshll.u32 %s234, 4
          %s244 = int_to_ptr.vmem [resolvable:$true] %s243
          %246 = dma.hbm_to_vmem [thread:$0]  %s231, 2304, %s244, %s235
        $region48: #{tpu_custom_call.1} parent=31 // pred_fallthru
          _
        %s247 = sadd.s32 %s25, 1
        %p248 = scmp.lt.s32.totalorder %s247, 2
        // Predicated region
        $region53: #{tpu_custom_call.1} parent=31 // pred_check
          %p249 = pneg %p248
        $region54: #{tpu_custom_call.1} parent=31 // pred_check_branch
          %251 = sbr.rel (%p249) target = $region56
        $region55: #{tpu_custom_call.1} parent=31 // pred_region
          %s252 = smul.u32 %s247, 8
          %s253 = ssub.s32 1, %s221
          %s254 = smul.u32 %s252, 3
          %s255 = smul.u32 %s24, 60
          %s256 = sadd.s32 %s254, %s255
          %s257 = smul.addr %s256, 64
          %s258 = scalar_lea.hbm %s0, %s257
          %s259 = smul.u32 %s253, 36
          %s260 = smul.addr %s259, 4
          %s261 = scalar_lea.vmem [#allocation2], %s260
          %s262 = scalar_lea.sflag [#allocation4], %s253
          // Predicated region
          $region57: #{tpu_custom_call.1} parent=55 // pred_check
            _
          $region58: #{tpu_custom_call.1} parent=55 // pred_check_branch
            %264 = sbr.rel target = $region60
          $region59: #{tpu_custom_call.1} parent=55 // pred_region
            %265 = sst [smem:[#allocation14]] [#allocation17]
            %266 = sst [smem:[#allocation15]] [#allocation16]
          $region60: #{tpu_custom_call.1} parent=55 // pred_fallthru
            _
          %268 = shalt.err (0)
          %s270 = sshll.u32 %s261, 4
          %s271 = int_to_ptr.vmem [resolvable:$true] %s270
          %273 = dma.hbm_to_vmem [thread:$0]  %s258, 2304, %s271, %s262
        $region56: #{tpu_custom_call.1} parent=31 // pred_fallthru
          _
        %s274 = smul.u32 %s221, 36
        %s275 = smul.addr %s274, 4
        %s276 = scalar_lea.vmem [#allocation2], %s275
        %s277 = scalar_lea.sflag [#allocation4], %s221
        %s278 = smul.u32 4, 12
        %s279 = smul.u32 %s278, 3
        %s280 = smul.u32 %s279, 1
        %s281 = sshll.u32 %s280, 4
        %282 = dma.done %s277, %s281
        %v283 = vld [vmem:[%s276] sm:$0xf]
        %v284 = vld [vmem:[%s276 + $0x4] sm:$0xf]
        %v285 = vld [vmem:[%s276 + $0x8] sm:$0xf]
        %v286 = vld [vmem:[%s276 + $0xc] sm:$0xf]
        %v287 = vld [vmem:[%s276 + $0x10] sm:$0xf]
        %v288 = vld [vmem:[%s276 + $0x14] sm:$0xf]
        %v289 = vld [vmem:[%s276 + $0x18] sm:$0xf]
        %v290 = vld [vmem:[%s276 + $0x1c] sm:$0xf]
        %v291 = vld [vmem:[%s276 + $0x20] sm:$0xf]
        %v292 = vld [vmem:[%s276 + $0x24] sm:$0xf]
        %v293 = vld [vmem:[%s276 + $0x28] sm:$0xf]
        %v294 = vld [vmem:[%s276 + $0x2c] sm:$0xf]
        %v295 = vld [vmem:[%s276 + $0x30] sm:$0xf]
        %v296 = vld [vmem:[%s276 + $0x34] sm:$0xf]
        %v297 = vld [vmem:[%s276 + $0x38] sm:$0xf]
        %v298 = vld [vmem:[%s276 + $0x3c] sm:$0xf]
        %v299 = vld [vmem:[%s276 + $0x40] sm:$0xf]
        %v300 = vld [vmem:[%s276 + $0x44] sm:$0xf]
        %v301 = vld [vmem:[%s276 + $0x48] sm:$0xf]
        %v302 = vld [vmem:[%s276 + $0x4c] sm:$0xf]
        %v303 = vld [vmem:[%s276 + $0x50] sm:$0xf]
        %v304 = vld [vmem:[%s276 + $0x54] sm:$0xf]
        %v305 = vld [vmem:[%s276 + $0x58] sm:$0xf]
        %v306 = vld [vmem:[%s276 + $0x5c] sm:$0xf]
        %v307 = vld [vmem:[%s276 + $0x60] sm:$0xf]
        %v308 = vld [vmem:[%s276 + $0x64] sm:$0xf]
        %v309 = vld [vmem:[%s276 + $0x68] sm:$0xf]
        %v310 = vld [vmem:[%s276 + $0x6c] sm:$0xf]
        %v311 = vld [vmem:[%s276 + $0x70] sm:$0xf]
        %v312 = vld [vmem:[%s276 + $0x74] sm:$0xf]
        %v313 = vld [vmem:[%s276 + $0x78] sm:$0xf]
        %v314 = vld [vmem:[%s276 + $0x7c] sm:$0xf]
        %v315 = vld [vmem:[%s276 + $0x80] sm:$0xf]
        %v316 = vld [vmem:[%s276 + $0x84] sm:$0xf]
        %v317 = vld [vmem:[%s276 + $0x88] sm:$0xf]
        %v318 = vld [vmem:[%s276 + $0x8c] sm:$0xf]
        %v319 = vunpack.c.l.bf16 %v283
        %v320 = vunpack.c.l.bf16 %v284
        %v321 = vunpack.c.l.bf16 %v285
        %v322 = vunpack.c.l.bf16 %v286
        %v323 = vunpack.c.l.bf16 %v287
        %v324 = vunpack.c.l.bf16 %v288
        %v325 = vunpack.c.l.bf16 %v289
        %v326 = vunpack.c.l.bf16 %v290
        %v327 = vunpack.c.l.bf16 %v291
        %v328 = vunpack.c.l.bf16 %v292
        %v329 = vunpack.c.l.bf16 %v293
        %v330 = vunpack.c.l.bf16 %v294
        %v331 = vunpack.c.l.bf16 %v295
        %v332 = vunpack.c.l.bf16 %v296
        %v333 = vunpack.c.l.bf16 %v297
        %v334 = vunpack.c.l.bf16 %v298
        %v335 = vunpack.c.l.bf16 %v299
        %v336 = vunpack.c.l.bf16 %v300
        %v337 = vunpack.c.l.bf16 %v301
        %v338 = vunpack.c.l.bf16 %v302
        %v339 = vunpack.c.l.bf16 %v303
        %v340 = vunpack.c.l.bf16 %v304
        %v341 = vunpack.c.l.bf16 %v305
        %v342 = vunpack.c.l.bf16 %v306
        %v343 = vunpack.c.l.bf16 %v307
        %v344 = vunpack.c.l.bf16 %v308
        %v345 = vunpack.c.l.bf16 %v309
        %v346 = vunpack.c.l.bf16 %v310
        %v347 = vunpack.c.l.bf16 %v311
        %v348 = vunpack.c.l.bf16 %v312
        %v349 = vunpack.c.l.bf16 %v313
        %v350 = vunpack.c.l.bf16 %v314
        %v351 = vunpack.c.l.bf16 %v315
        %v352 = vunpack.c.l.bf16 %v316
        %v353 = vunpack.c.l.bf16 %v317
        %v354 = vunpack.c.l.bf16 %v318
        %v355 = vmin.f32 %v319, 20.0
        %v356 = vmin.f32 %v320, 20.0
        %v357 = vmin.f32 %v321, 20.0
        %v358 = vmin.f32 %v322, 20.0
        %v359 = vmin.f32 %v323, 20.0
        %v360 = vmin.f32 %v324, 20.0
        %v361 = vmin.f32 %v325, 20.0
        %v362 = vmin.f32 %v326, 20.0
        %v363 = vmin.f32 %v327, 20.0
        %v364 = vmin.f32 %v328, 20.0
        %v365 = vmin.f32 %v329, 20.0
        %v366 = vmin.f32 %v330, 20.0
        %v367 = vmin.f32 %v331, 20.0
        %v368 = vmin.f32 %v332, 20.0
        %v369 = vmin.f32 %v333, 20.0
        %v370 = vmin.f32 %v334, 20.0
        %v371 = vmin.f32 %v335, 20.0
        %v372 = vmin.f32 %v336, 20.0
        %v373 = vmin.f32 %v337, 20.0
        %v374 = vmin.f32 %v338, 20.0
        %v375 = vmin.f32 %v339, 20.0
        %v376 = vmin.f32 %v340, 20.0
        %v377 = vmin.f32 %v341, 20.0
        %v378 = vmin.f32 %v342, 20.0
        %v379 = vmin.f32 %v343, 20.0
        %v380 = vmin.f32 %v344, 20.0
        %v381 = vmin.f32 %v345, 20.0
        %v382 = vmin.f32 %v346, 20.0
        %v383 = vmin.f32 %v347, 20.0
        %v384 = vmin.f32 %v348, 20.0
        %v385 = vmin.f32 %v349, 20.0
        %v386 = vmin.f32 %v350, 20.0
        %v387 = vmin.f32 %v351, 20.0
        %v388 = vmin.f32 %v352, 20.0
        %v389 = vmin.f32 %v353, 20.0
        %v390 = vmin.f32 %v354, 20.0
        %v391 = vmul.f32 %v355, 1.442695
        %v392 = vpow.pop %v391
        %v393 = vmul.f32 %v356, 1.442695
        %v394 = vpow.pop %v393
        %v395 = vmul.f32 %v357, 1.442695
        %v396 = vpow.pop %v395
        %v397 = vmul.f32 %v358, 1.442695
        %v398 = vpow.pop %v397
        %v399 = vmul.f32 %v359, 1.442695
        %v400 = vpow.pop %v399
        %v401 = vmul.f32 %v360, 1.442695
        %v402 = vpow.pop %v401
        %v403 = vmul.f32 %v361, 1.442695
        %v404 = vpow.pop %v403
        %v405 = vmul.f32 %v362, 1.442695
        %v406 = vpow.pop %v405
        %v407 = vmul.f32 %v363, 1.442695
        %v408 = vpow.pop %v407
        %v409 = vmul.f32 %v364, 1.442695
        %v410 = vpow.pop %v409
        %v411 = vmul.f32 %v365, 1.442695
        %v412 = vpow.pop %v411
        %v413 = vmul.f32 %v366, 1.442695
        %v414 = vpow.pop %v413
        %v415 = vmul.f32 %v367, 1.442695
        %v416 = vpow.pop %v415
        %v417 = vmul.f32 %v368, 1.442695
        %v418 = vpow.pop %v417
        %v419 = vmul.f32 %v369, 1.442695
        %v420 = vpow.pop %v419
        %v421 = vmul.f32 %v370, 1.442695
        %v422 = vpow.pop %v421
        %v423 = vmul.f32 %v371, 1.442695
        %v424 = vpow.pop %v423
        %v425 = vmul.f32 %v372, 1.442695
        %v426 = vpow.pop %v425
        %v427 = vmul.f32 %v373, 1.442695
        %v428 = vpow.pop %v427
        %v429 = vmul.f32 %v374, 1.442695
        %v430 = vpow.pop %v429
        %v431 = vmul.f32 %v375, 1.442695
        %v432 = vpow.pop %v431
        %v433 = vmul.f32 %v376, 1.442695
        %v434 = vpow.pop %v433
        %v435 = vmul.f32 %v377, 1.442695
        %v436 = vpow.pop %v435
        %v437 = vmul.f32 %v378, 1.442695
        %v438 = vpow.pop %v437
        %v439 = vmul.f32 %v379, 1.442695
        %v440 = vpow.pop %v439
        %v441 = vmul.f32 %v380, 1.442695
        %v442 = vpow.pop %v441
        %v443 = vmul.f32 %v381, 1.442695
        %v444 = vpow.pop %v443
        %v445 = vmul.f32 %v382, 1.442695
        %v446 = vpow.pop %v445
        %v447 = vmul.f32 %v383, 1.442695
        %v448 = vpow.pop %v447
        %v449 = vmul.f32 %v384, 1.442695
        %v450 = vpow.pop %v449
        %v451 = vmul.f32 %v385, 1.442695
        %v452 = vpow.pop %v451
        %v453 = vmul.f32 %v386, 1.442695
        %v454 = vpow.pop %v453
        %v455 = vmul.f32 %v387, 1.442695
        %v456 = vpow.pop %v455
        %v457 = vmul.f32 %v388, 1.442695
        %v458 = vpow.pop %v457
        %v459 = vmul.f32 %v389, 1.442695
        %v460 = vpow.pop %v459
        %v461 = vmul.f32 %v390, 1.442695
        %v462 = vpow.pop %v461
        %v463 = vadd.f32 %v392, 1.0
        %v464 = vadd.f32 %v394, 1.0
        %v465 = vadd.f32 %v396, 1.0
        %v466 = vadd.f32 %v398, 1.0
        %v467 = vadd.f32 %v400, 1.0
        %v468 = vadd.f32 %v402, 1.0
        %v469 = vadd.f32 %v404, 1.0
        %v470 = vadd.f32 %v406, 1.0
        %v471 = vadd.f32 %v408, 1.0
        %v472 = vadd.f32 %v410, 1.0
        %v473 = vadd.f32 %v412, 1.0
        %v474 = vadd.f32 %v414, 1.0
        %v475 = vadd.f32 %v416, 1.0
        %v476 = vadd.f32 %v418, 1.0
        %v477 = vadd.f32 %v420, 1.0
        %v478 = vadd.f32 %v422, 1.0
        %v479 = vadd.f32 %v424, 1.0
        %v480 = vadd.f32 %v426, 1.0
        %v481 = vadd.f32 %v428, 1.0
        %v482 = vadd.f32 %v430, 1.0
        %v483 = vadd.f32 %v432, 1.0
        %v484 = vadd.f32 %v434, 1.0
        %v485 = vadd.f32 %v436, 1.0
        %v486 = vadd.f32 %v438, 1.0
        %v487 = vadd.f32 %v440, 1.0
        %v488 = vadd.f32 %v442, 1.0
        %v489 = vadd.f32 %v444, 1.0
        %v490 = vadd.f32 %v446, 1.0
        %v491 = vadd.f32 %v448, 1.0
        %v492 = vadd.f32 %v450, 1.0
        %v493 = vadd.f32 %v452, 1.0
        %v494 = vadd.f32 %v454, 1.0
        %v495 = vadd.f32 %v456, 1.0
        %v496 = vadd.f32 %v458, 1.0
        %v497 = vadd.f32 %v460, 1.0
        %v498 = vadd.f32 %v462, 1.0
        %v499 = vmul.f32 %v463, %v463
        %v500 = vmul.f32 %v464, %v464
        %v501 = vmul.f32 %v465, %v465
        %v502 = vmul.f32 %v466, %v466
        %v503 = vmul.f32 %v467, %v467
        %v504 = vmul.f32 %v468, %v468
        %v505 = vmul.f32 %v469, %v469
        %v506 = vmul.f32 %v470, %v470
        %v507 = vmul.f32 %v471, %v471
        %v508 = vmul.f32 %v472, %v472
        %v509 = vmul.f32 %v473, %v473
        %v510 = vmul.f32 %v474, %v474
        %v511 = vmul.f32 %v475, %v475
        %v512 = vmul.f32 %v476, %v476
        %v513 = vmul.f32 %v477, %v477
        %v514 = vmul.f32 %v478, %v478
        %v515 = vmul.f32 %v479, %v479
        %v516 = vmul.f32 %v480, %v480
        %v517 = vmul.f32 %v481, %v481
        %v518 = vmul.f32 %v482, %v482
        %v519 = vmul.f32 %v483, %v483
        %v520 = vmul.f32 %v484, %v484
        %v521 = vmul.f32 %v485, %v485
        %v522 = vmul.f32 %v486, %v486
        %v523 = vmul.f32 %v487, %v487
        %v524 = vmul.f32 %v488, %v488
        %v525 = vmul.f32 %v489, %v489
        %v526 = vmul.f32 %v490, %v490
        %v527 = vmul.f32 %v491, %v491
        %v528 = vmul.f32 %v492, %v492
        %v529 = vmul.f32 %v493, %v493
        %v530 = vmul.f32 %v494, %v494
        %v531 = vmul.f32 %v495, %v495
        %v532 = vmul.f32 %v496, %v496
        %v533 = vmul.f32 %v497, %v497
        %v534 = vmul.f32 %v498, %v498
        %v535 = vsub.f32 %v499, 1.0
        %v536 = vsub.f32 %v500, 1.0
        %v537 = vsub.f32 %v501, 1.0
        %v538 = vsub.f32 %v502, 1.0
        %v539 = vsub.f32 %v503, 1.0
        %v540 = vsub.f32 %v504, 1.0
        %v541 = vsub.f32 %v505, 1.0
        %v542 = vsub.f32 %v506, 1.0
        %v543 = vsub.f32 %v507, 1.0
        %v544 = vsub.f32 %v508, 1.0
        %v545 = vsub.f32 %v509, 1.0
        %v546 = vsub.f32 %v510, 1.0
        %v547 = vsub.f32 %v511, 1.0
        %v548 = vsub.f32 %v512, 1.0
        %v549 = vsub.f32 %v513, 1.0
        %v550 = vsub.f32 %v514, 1.0
        %v551 = vsub.f32 %v515, 1.0
        %v552 = vsub.f32 %v516, 1.0
        %v553 = vsub.f32 %v517, 1.0
        %v554 = vsub.f32 %v518, 1.0
        %v555 = vsub.f32 %v519, 1.0
        %v556 = vsub.f32 %v520, 1.0
        %v557 = vsub.f32 %v521, 1.0
        %v558 = vsub.f32 %v522, 1.0
        %v559 = vsub.f32 %v523, 1.0
        %v560 = vsub.f32 %v524, 1.0
        %v561 = vsub.f32 %v525, 1.0
        %v562 = vsub.f32 %v526, 1.0
        %v563 = vsub.f32 %v527, 1.0
        %v564 = vsub.f32 %v528, 1.0
        %v565 = vsub.f32 %v529, 1.0
        %v566 = vsub.f32 %v530, 1.0
        %v567 = vsub.f32 %v531, 1.0
        %v568 = vsub.f32 %v532, 1.0
        %v569 = vsub.f32 %v533, 1.0
        %v570 = vsub.f32 %v534, 1.0
        %v571 = vmul.f32 %v319, %v535
        %v572 = vmul.f32 %v320, %v536
        %v573 = vmul.f32 %v321, %v537
        %v574 = vmul.f32 %v322, %v538
        %v575 = vmul.f32 %v323, %v539
        %v576 = vmul.f32 %v324, %v540
        %v577 = vmul.f32 %v325, %v541
        %v578 = vmul.f32 %v326, %v542
        %v579 = vmul.f32 %v327, %v543
        %v580 = vmul.f32 %v328, %v544
        %v581 = vmul.f32 %v329, %v545
        %v582 = vmul.f32 %v330, %v546
        %v583 = vmul.f32 %v331, %v547
        %v584 = vmul.f32 %v332, %v548
        %v585 = vmul.f32 %v333, %v549
        %v586 = vmul.f32 %v334, %v550
        %v587 = vmul.f32 %v335, %v551
        %v588 = vmul.f32 %v336, %v552
        %v589 = vmul.f32 %v337, %v553
        %v590 = vmul.f32 %v338, %v554
        %v591 = vmul.f32 %v339, %v555
        %v592 = vmul.f32 %v340, %v556
        %v593 = vmul.f32 %v341, %v557
        %v594 = vmul.f32 %v342, %v558
        %v595 = vmul.f32 %v343, %v559
        %v596 = vmul.f32 %v344, %v560
        %v597 = vmul.f32 %v345, %v561
        %v598 = vmul.f32 %v346, %v562
        %v599 = vmul.f32 %v347, %v563
        %v600 = vmul.f32 %v348, %v564
        %v601 = vmul.f32 %v349, %v565
        %v602 = vmul.f32 %v350, %v566
        %v603 = vmul.f32 %v351, %v567
        %v604 = vmul.f32 %v352, %v568
        %v605 = vmul.f32 %v353, %v569
        %v606 = vmul.f32 %v354, %v570
        %v607 = vadd.f32 %v499, 1.0
        %v608 = vadd.f32 %v500, 1.0
        %v609 = vadd.f32 %v501, 1.0
        %v610 = vadd.f32 %v502, 1.0
        %v611 = vadd.f32 %v503, 1.0
        %v612 = vadd.f32 %v504, 1.0
        %v613 = vadd.f32 %v505, 1.0
        %v614 = vadd.f32 %v506, 1.0
        %v615 = vadd.f32 %v507, 1.0
        %v616 = vadd.f32 %v508, 1.0
        %v617 = vadd.f32 %v509, 1.0
        %v618 = vadd.f32 %v510, 1.0
        %v619 = vadd.f32 %v511, 1.0
        %v620 = vadd.f32 %v512, 1.0
        %v621 = vadd.f32 %v513, 1.0
        %v622 = vadd.f32 %v514, 1.0
        %v623 = vadd.f32 %v515, 1.0
        %v624 = vadd.f32 %v516, 1.0
        %v625 = vadd.f32 %v517, 1.0
        %v626 = vadd.f32 %v518, 1.0
        %v627 = vadd.f32 %v519, 1.0
        %v628 = vadd.f32 %v520, 1.0
        %v629 = vadd.f32 %v521, 1.0
        %v630 = vadd.f32 %v522, 1.0
        %v631 = vadd.f32 %v523, 1.0
        %v632 = vadd.f32 %v524, 1.0
        %v633 = vadd.f32 %v525, 1.0
        %v634 = vadd.f32 %v526, 1.0
        %v635 = vadd.f32 %v527, 1.0
        %v636 = vadd.f32 %v528, 1.0
        %v637 = vadd.f32 %v529, 1.0
        %v638 = vadd.f32 %v530, 1.0
        %v639 = vadd.f32 %v531, 1.0
        %v640 = vadd.f32 %v532, 1.0
        %v641 = vadd.f32 %v533, 1.0
        %v642 = vadd.f32 %v534, 1.0
        %v643 = vrcp.pop %v607
        %v644 = vrcp.pop %v608
        %v645 = vrcp.pop %v609
        %v646 = vrcp.pop %v610
        %v647 = vrcp.pop %v611
        %v648 = vrcp.pop %v612
        %v649 = vrcp.pop %v613
        %v650 = vrcp.pop %v614
        %v651 = vrcp.pop %v615
        %v652 = vrcp.pop %v616
        %v653 = vrcp.pop %v617
        %v654 = vrcp.pop %v618
        %v655 = vrcp.pop %v619
        %v656 = vrcp.pop %v620
        %v657 = vrcp.pop %v621
        %v658 = vrcp.pop %v622
        %v659 = vrcp.pop %v623
        %v660 = vrcp.pop %v624
        %v661 = vrcp.pop %v625
        %v662 = vrcp.pop %v626
        %v663 = vrcp.pop %v627
        %v664 = vrcp.pop %v628
        %v665 = vrcp.pop %v629
        %v666 = vrcp.pop %v630
        %v667 = vrcp.pop %v631
        %v668 = vrcp.pop %v632
        %v669 = vrcp.pop %v633
        %v670 = vrcp.pop %v634
        %v671 = vrcp.pop %v635
        %v672 = vrcp.pop %v636
        %v673 = vrcp.pop %v637
        %v674 = vrcp.pop %v638
        %v675 = vrcp.pop %v639
        %v676 = vrcp.pop %v640
        %v677 = vrcp.pop %v641
        %v678 = vrcp.pop %v642
        %v679 = vmul.f32 %v571, %v643
        %v680 = vmul.f32 %v572, %v644
        %v681 = vmul.f32 %v573, %v645
        %v682 = vmul.f32 %v574, %v646
        %v683 = vmul.f32 %v575, %v647
        %v684 = vmul.f32 %v576, %v648
        %v685 = vmul.f32 %v577, %v649
        %v686 = vmul.f32 %v578, %v650
        %v687 = vmul.f32 %v579, %v651
        %v688 = vmul.f32 %v580, %v652
        %v689 = vmul.f32 %v581, %v653
        %v690 = vmul.f32 %v582, %v654
        %v691 = vmul.f32 %v583, %v655
        %v692 = vmul.f32 %v584, %v656
        %v693 = vmul.f32 %v585, %v657
        %v694 = vmul.f32 %v586, %v658
        %v695 = vmul.f32 %v587, %v659
        %v696 = vmul.f32 %v588, %v660
        %v697 = vmul.f32 %v589, %v661
        %v698 = vmul.f32 %v590, %v662
        %v699 = vmul.f32 %v591, %v663
        %v700 = vmul.f32 %v592, %v664
        %v701 = vmul.f32 %v593, %v665
        %v702 = vmul.f32 %v594, %v666
        %v703 = vmul.f32 %v595, %v667
        %v704 = vmul.f32 %v596, %v668
        %v705 = vmul.f32 %v597, %v669
        %v706 = vmul.f32 %v598, %v670
        %v707 = vmul.f32 %v599, %v671
        %v708 = vmul.f32 %v600, %v672
        %v709 = vmul.f32 %v601, %v673
        %v710 = vmul.f32 %v602, %v674
        %v711 = vmul.f32 %v603, %v675
        %v712 = vmul.f32 %v604, %v676
        %v713 = vmul.f32 %v605, %v677
        %v714 = vmul.f32 %v606, %v678
        %v715 = vrot.slane %v679, 7
        %v716 = vrot.slane %v680, 7
        %v717 = vrot.slane %v681, 7
        %v718 = vrot.slane %v682, 7
        %v719 = vrot.slane %v683, 7
        %v720 = vrot.slane %v684, 7
        %v721 = vrot.slane %v685, 7
        %v722 = vrot.slane %v686, 7
        %v723 = vrot.slane %v687, 7
        %v724 = vrot.slane %v688, 7
        %v725 = vrot.slane %v689, 7
        %v726 = vrot.slane %v690, 7
        %v727 = vrot.slane %v691, 7
        %v728 = vrot.slane %v692, 7
        %v729 = vrot.slane %v693, 7
        %v730 = vrot.slane %v694, 7
        %v731 = vrot.slane %v695, 7
        %v732 = vrot.slane %v696, 7
        %v733 = vrot.slane %v697, 7
        %v734 = vrot.slane %v698, 7
        %v735 = vrot.slane %v699, 7
        %v736 = vrot.slane %v700, 7
        %v737 = vrot.slane %v701, 7
        %v738 = vrot.slane %v702, 7
        %v739 = vrot.slane %v703, 7
        %v740 = vrot.slane %v704, 7
        %v741 = vrot.slane %v705, 7
        %v742 = vrot.slane %v706, 7
        %v743 = vrot.slane %v707, 7
        %v744 = vrot.slane %v708, 7
        %v745 = vlaneseq
        %v746 = vshrl.u32 %v745, 7
        %vm747 = vcmp.lt.s32.totalorder %v746, 1
        %v748 = vsel %vm747, %v743, %v744
        %v749 = vsel %vm747, %v742, %v743
        %v750 = vsel %vm747, %v741, %v742
        %v751 = vsel %vm747, %v740, %v741
        %v752 = vsel %vm747, %v739, %v740
        %v753 = vsel %vm747, %v738, %v739
        %v754 = vsel %vm747, %v737, %v738
        %v755 = vsel %vm747, %v736, %v737
        %v756 = vsel %vm747, %v735, %v736
        %v757 = vsel %vm747, %v734, %v735
        %v758 = vsel %vm747, %v733, %v734
        %v759 = vsel %vm747, %v732, %v733
        %v760 = vsel %vm747, %v731, %v732
        %v761 = vsel %vm747, %v730, %v731
        %v762 = vsel %vm747, %v729, %v730
        %v763 = vsel %vm747, %v728, %v729
        %v764 = vsel %vm747, %v727, %v728
        %v765 = vsel %vm747, %v726, %v727
        %v766 = vsel %vm747, %v725, %v726
        %v767 = vsel %vm747, %v724, %v725
        %v768 = vsel %vm747, %v723, %v724
        %v769 = vsel %vm747, %v722, %v723
        %v770 = vsel %vm747, %v721, %v722
        %v771 = vsel %vm747, %v720, %v721
        %v772 = vsel %vm747, %v719, %v720
        %v773 = vsel %vm747, %v718, %v719
        %v774 = vsel %vm747, %v717, %v718
        %v775 = vsel %vm747, %v716, %v717
        %v776 = vsel %vm747, %v715, %v716
        %v777 = vsel %vm747, %v744, %v715
        %v778 = vpack.c.bf16 %v776, %v777
        %v779 = vpack.c.bf16 %v774, %v775
        %v780 = vpack.c.bf16 %v772, %v773
        %v781 = vpack.c.bf16 %v770, %v771
        %v782 = vpack.c.bf16 %v768, %v769
        %v783 = vpack.c.bf16 %v766, %v767
        %v784 = vpack.c.bf16 %v764, %v765
        %v785 = vpack.c.bf16 %v762, %v763
        %v786 = vpack.c.bf16 %v760, %v761
        %v787 = vpack.c.bf16 %v758, %v759
        %v788 = vpack.c.bf16 %v756, %v757
        %v789 = vpack.c.bf16 %v754, %v755
        %v790 = vpack.c.bf16 %v752, %v753
        %v791 = vpack.c.bf16 %v750, %v751
        %v792 = vpack.c.bf16 %v748, %v749
        %v793 = vpack.c.bf16 %v680, %v679
        %v794 = vpack.c.bf16 %v682, %v681
        %v795 = vpack.c.bf16 %v684, %v683
        %v796 = vpack.c.bf16 %v686, %v685
        %v797 = vpack.c.bf16 %v688, %v687
        %v798 = vpack.c.bf16 %v690, %v689
        %v799 = vpack.c.bf16 %v692, %v691
        %v800 = vpack.c.bf16 %v694, %v693
        %v801 = vpack.c.bf16 %v696, %v695
        %v802 = vpack.c.bf16 %v698, %v697
        %v803 = vpack.c.bf16 %v700, %v699
        %v804 = vpack.c.bf16 %v702, %v701
        %v805 = vpack.c.bf16 %v704, %v703
        %v806 = vpack.c.bf16 %v706, %v705
        %v807 = vpack.c.bf16 %v708, %v707
        %v808 = vrot.slane %v679, 1
        %v809 = vrot.slane %v680, 1
        %v810 = vrot.slane %v681, 1
        %v811 = vrot.slane %v682, 1
        %v812 = vrot.slane %v683, 1
        %v813 = vrot.slane %v684, 1
        %v814 = vrot.slane %v685, 1
        %v815 = vrot.slane %v686, 1
        %v816 = vrot.slane %v687, 1
        %v817 = vrot.slane %v688, 1
        %v818 = vrot.slane %v689, 1
        %v819 = vrot.slane %v690, 1
        %v820 = vrot.slane %v691, 1
        %v821 = vrot.slane %v692, 1
        %v822 = vrot.slane %v693, 1
        %v823 = vrot.slane %v694, 1
        %v824 = vrot.slane %v695, 1
        %v825 = vrot.slane %v696, 1
        %v826 = vrot.slane %v697, 1
        %v827 = vrot.slane %v698, 1
        %v828 = vrot.slane %v699, 1
        %v829 = vrot.slane %v700, 1
        %v830 = vrot.slane %v701, 1
        %v831 = vrot.slane %v702, 1
        %v832 = vrot.slane %v703, 1
        %v833 = vrot.slane %v704, 1
        %v834 = vrot.slane %v705, 1
        %v835 = vrot.slane %v706, 1
        %v836 = vrot.slane %v707, 1
        %v837 = vrot.slane %v708, 1
        %vm838 = vcmp.lt.s32.totalorder %v746, 7
        %v839 = vsel %vm838, %v836, %v837
        %v840 = vsel %vm838, %v835, %v836
        %v841 = vsel %vm838, %v834, %v835
        %v842 = vsel %vm838, %v833, %v834
        %v843 = vsel %vm838, %v832, %v833
        %v844 = vsel %vm838, %v831, %v832
        %v845 = vsel %vm838, %v830, %v831
        %v846 = vsel %vm838, %v829, %v830
        %v847 = vsel %vm838, %v828, %v829
        %v848 = vsel %vm838, %v827, %v828
        %v849 = vsel %vm838, %v826, %v827
        %v850 = vsel %vm838, %v825, %v826
        %v851 = vsel %vm838, %v824, %v825
        %v852 = vsel %vm838, %v823, %v824
        %v853 = vsel %vm838, %v822, %v823
        %v854 = vsel %vm838, %v821, %v822
        %v855 = vsel %vm838, %v820, %v821
        %v856 = vsel %vm838, %v819, %v820
        %v857 = vsel %vm838, %v818, %v819
        %v858 = vsel %vm838, %v817, %v818
        %v859 = vsel %vm838, %v816, %v817
        %v860 = vsel %vm838, %v815, %v816
        %v861 = vsel %vm838, %v814, %v815
        %v862 = vsel %vm838, %v813, %v814
        %v863 = vsel %vm838, %v812, %v813
        %v864 = vsel %vm838, %v811, %v812
        %v865 = vsel %vm838, %v810, %v811
        %v866 = vsel %vm838, %v809, %v810
        %v867 = vsel %vm838, %v808, %v809
        %v868 = vsel %vm838, %v837, %v808
        %v869 = vpack.c.bf16 %v866, %v867
        %v870 = vpack.c.bf16 %v864, %v865
        %v871 = vpack.c.bf16 %v862, %v863
        %v872 = vpack.c.bf16 %v860, %v861
        %v873 = vpack.c.bf16 %v858, %v859
        %v874 = vpack.c.bf16 %v856, %v857
        %v875 = vpack.c.bf16 %v854, %v855
        %v876 = vpack.c.bf16 %v852, %v853
        %v877 = vpack.c.bf16 %v850, %v851
        %v878 = vpack.c.bf16 %v848, %v849
        %v879 = vpack.c.bf16 %v846, %v847
        %v880 = vpack.c.bf16 %v844, %v845
        %v881 = vpack.c.bf16 %v842, %v843
        %v882 = vpack.c.bf16 %v840, %v841
        %v883 = vpack.c.bf16 %v868, %v839
        %v884 = vrot.slane %v709, 7
        %v885 = vrot.slane %v710, 7
        %v886 = vrot.slane %v711, 7
        %v887 = vsel %vm747, %v885, %v886
        %v888 = vsel %vm747, %v884, %v885
        %v889 = vsel %vm747, %v744, %v884
        %v890 = vsel %vm747, %v886, %v718
        %v891 = vpack.c.bf16 %v773, %v890
        %v892 = vpack.c.bf16 %v771, %v772
        %v893 = vpack.c.bf16 %v769, %v770
        %v894 = vpack.c.bf16 %v767, %v768
        %v895 = vpack.c.bf16 %v765, %v766
        %v896 = vpack.c.bf16 %v763, %v764
        %v897 = vpack.c.bf16 %v761, %v762
        %v898 = vpack.c.bf16 %v759, %v760
        %v899 = vpack.c.bf16 %v757, %v758
        %v900 = vpack.c.bf16 %v755, %v756
        %v901 = vpack.c.bf16 %v753, %v754
        %v902 = vpack.c.bf16 %v751, %v752
        %v903 = vpack.c.bf16 %v749, %v750
        %v904 = vpack.c.bf16 %v889, %v748
        %v905 = vpack.c.bf16 %v887, %v888
        %v906 = vpack.c.bf16 %v683, %v682
        %v907 = vpack.c.bf16 %v685, %v684
        %v908 = vpack.c.bf16 %v687, %v686
        %v909 = vpack.c.bf16 %v689, %v688
        %v910 = vpack.c.bf16 %v691, %v690
        %v911 = vpack.c.bf16 %v693, %v692
        %v912 = vpack.c.bf16 %v695, %v694
        %v913 = vpack.c.bf16 %v697, %v696
        %v914 = vpack.c.bf16 %v699, %v698
        %v915 = vpack.c.bf16 %v701, %v700
        %v916 = vpack.c.bf16 %v703, %v702
        %v917 = vpack.c.bf16 %v705, %v704
        %v918 = vpack.c.bf16 %v707, %v706
        %v919 = vpack.c.bf16 %v709, %v708
        %v920 = vpack.c.bf16 %v711, %v710
        %v921 = vrot.slane %v709, 1
        %v922 = vrot.slane %v710, 1
        %v923 = vrot.slane %v711, 1
        %v924 = vsel %vm838, %v922, %v923
        %v925 = vsel %vm838, %v921, %v922
        %v926 = vsel %vm838, %v837, %v921
        %v927 = vsel %vm838, %v923, %v811
        %v928 = vpack.c.bf16 %v863, %v864
        %v929 = vpack.c.bf16 %v861, %v862
        %v930 = vpack.c.bf16 %v859, %v860
        %v931 = vpack.c.bf16 %v857, %v858
        %v932 = vpack.c.bf16 %v855, %v856
        %v933 = vpack.c.bf16 %v853, %v854
        %v934 = vpack.c.bf16 %v851, %v852
        %v935 = vpack.c.bf16 %v849, %v850
        %v936 = vpack.c.bf16 %v847, %v848
        %v937 = vpack.c.bf16 %v845, %v846
        %v938 = vpack.c.bf16 %v843, %v844
        %v939 = vpack.c.bf16 %v841, %v842
        %v940 = vpack.c.bf16 %v839, %v840
        %v941 = vpack.c.bf16 %v925, %v926
        %v942 = vpack.c.bf16 %v927, %v924
        %v943 = vrot.slane %v712, 7
        %v944 = vrot.slane %v713, 7
        %v945 = vrot.slane %v714, 7
        %v946 = vsel %vm747, %v944, %v945
        %v947 = vsel %vm747, %v943, %v944
        %v948 = vsel %vm747, %v886, %v943
        %v949 = vsel %vm747, %v945, %v721
        %v950 = vpack.c.bf16 %v770, %v949
        %v951 = vpack.c.bf16 %v888, %v889
        %v952 = vpack.c.bf16 %v948, %v887
        %v953 = vpack.c.bf16 %v946, %v947
        %v954 = vpack.c.bf16 %v710, %v709
        %v955 = vpack.c.bf16 %v712, %v711
        %v956 = vpack.c.bf16 %v714, %v713
        %v957 = vrot.slane %v712, 1
        %v958 = vrot.slane %v713, 1
        %v959 = vrot.slane %v714, 1
        %v960 = vsel %vm838, %v958, %v959
        %v961 = vsel %vm838, %v957, %v958
        %v962 = vsel %vm838, %v923, %v957
        %v963 = vsel %vm838, %v959, %v814
        %v964 = vpack.c.bf16 %v926, %v839
        %v965 = vpack.c.bf16 %v924, %v925
        %v966 = vpack.c.bf16 %v961, %v962
        %v967 = vpack.c.bf16 %v963, %v960
        %v968 = vld [vmem:[#allocation5] sm:$0xf]
        %v969 = vld [vmem:[#allocation5 + $0x4] sm:$0xf]
        %v970 = vld [vmem:[#allocation5 + $0x8] sm:$0xf]
        %v971 = vld [vmem:[#allocation5 + $0xc] sm:$0xf]
        %v972 = vld [vmem:[#allocation5 + $0x10] sm:$0xf]
        %v973 = vld [vmem:[#allocation5 + $0x14] sm:$0xf]
        %v974 = vld [vmem:[#allocation5 + $0x18] sm:$0xf]
        %v975 = vld [vmem:[#allocation5 + $0x1c] sm:$0xf]
        %v976 = vld [vmem:[#allocation5 + $0x20] sm:$0xf]
        %v977 = vld [vmem:[#allocation5 + $0x24] sm:$0xf]
        %v978 = vld [vmem:[#allocation5 + $0x28] sm:$0xf]
        %v979 = vld [vmem:[#allocation5 + $0x2c] sm:$0xf]
        %v980 = vld [vmem:[#allocation5 + $0x30] sm:$0xf]
        %v981 = vld [vmem:[#allocation5 + $0x34] sm:$0xf]
        %v982 = vld [vmem:[#allocation5 + $0x38] sm:$0xf]
        %v983 = vld [vmem:[#allocation5 + $0x3c] sm:$0xf]
        %v984 = vld [vmem:[#allocation5 + $0x40] sm:$0xf]
        %v985 = vld [vmem:[#allocation5 + $0x44] sm:$0xf]
        %v986 = vld [vmem:[#allocation5 + $0x48] sm:$0xf]
        %v987 = vld [vmem:[#allocation5 + $0x4c] sm:$0xf]
        %v988 = vld [vmem:[#allocation5 + $0x50] sm:$0xf]
        %v989 = vld [vmem:[#allocation5 + $0x54] sm:$0xf]
        %v990 = vld [vmem:[#allocation5 + $0x58] sm:$0xf]
        %v991 = vld [vmem:[#allocation5 + $0x5c] sm:$0xf]
        %v992 = vld [vmem:[#allocation5 + $0x60] sm:$0xf]
        %v993 = vld [vmem:[#allocation5 + $0x64] sm:$0xf]
        %v994 = vld [vmem:[#allocation5 + $0x68] sm:$0xf]
        %v995 = vld [vmem:[#allocation5 + $0x6c] sm:$0xf]
        %v996 = vld [vmem:[#allocation5 + $0x70] sm:$0xf]
        %v997 = vld [vmem:[#allocation5 + $0x74] sm:$0xf]
        %v998 = vld [vmem:[#allocation5 + $0x78] sm:$0xf]
        %v999 = vld [vmem:[#allocation5 + $0x7c] sm:$0xf]
        %v1000 = vld [vmem:[#allocation5 + $0x80] sm:$0xf]
        %v1001 = vld [vmem:[#allocation5 + $0x84] sm:$0xf]
        %v1002 = vld [vmem:[#allocation5 + $0x88] sm:$0xf]
        %v1003 = vld [vmem:[#allocation5 + $0x8c] sm:$0xf]
        %v1004 = vld [vmem:[#allocation5 + $0x90] sm:$0xf]
        %v1005 = vld [vmem:[#allocation5 + $0x94] sm:$0xf]
        %v1006 = vld [vmem:[#allocation5 + $0x98] sm:$0xf]
        %v1007 = vld [vmem:[#allocation5 + $0x9c] sm:$0xf]
        %v1008 = vld [vmem:[#allocation5 + $0xa0] sm:$0xf]
        %v1009 = vld [vmem:[#allocation5 + $0xa4] sm:$0xf]
        %v1010 = vld [vmem:[#allocation5 + $0xa8] sm:$0xf]
        %v1011 = vld [vmem:[#allocation5 + $0xac] sm:$0xf]
        %v1012 = vld [vmem:[#allocation5 + $0xb0] sm:$0xf]
        %v1013 = vld [vmem:[#allocation5 + $0xb4] sm:$0xf]
        %v1014 = vld [vmem:[#allocation5 + $0xb8] sm:$0xf]
        %v1015 = vld [vmem:[#allocation5 + $0xbc] sm:$0xf]
        %v1016 = vld [vmem:[#allocation5 + $0xc0] sm:$0xf]
        %v1017 = vld [vmem:[#allocation5 + $0xc4] sm:$0xf]
        %v1018 = vld [vmem:[#allocation5 + $0xc8] sm:$0xf]
        %v1019 = vld [vmem:[#allocation5 + $0xcc] sm:$0xf]
        %v1020 = vld [vmem:[#allocation5 + $0xd0] sm:$0xf]
        %v1021 = vld [vmem:[#allocation5 + $0xd4] sm:$0xf]
        %v1022 = vld [vmem:[#allocation5 + $0xd8] sm:$0xf]
        %v1023 = vld [vmem:[#allocation5 + $0xdc] sm:$0xf]
        %v1024 = vld [vmem:[#allocation5 + $0xe0] sm:$0xf]
        %v1025 = vld [vmem:[#allocation5 + $0xe4] sm:$0xf]
        %v1026 = vld [vmem:[#allocation5 + $0xe8] sm:$0xf]
        %v1027 = vld [vmem:[#allocation5 + $0xec] sm:$0xf]
        %v1028 = vld [vmem:[#allocation5 + $0xf0] sm:$0xf]
        %v1029 = vld [vmem:[#allocation5 + $0xf4] sm:$0xf]
        %v1030 = vld [vmem:[#allocation5 + $0xf8] sm:$0xf]
        %v1031 = vld [vmem:[#allocation5 + $0xfc] sm:$0xf]
        %v1032 = vld [vmem:[#allocation5 + $0x100] sm:$0xf]
        %v1033 = vld [vmem:[#allocation5 + $0x104] sm:$0xf]
        %v1034 = vld [vmem:[#allocation5 + $0x108] sm:$0xf]
        %v1035 = vld [vmem:[#allocation5 + $0x10c] sm:$0xf]
        %v1036 = vld [vmem:[#allocation5 + $0x110] sm:$0xf]
        %v1037 = vld [vmem:[#allocation5 + $0x114] sm:$0xf]
        %v1038 = vld [vmem:[#allocation5 + $0x118] sm:$0xf]
        %v1039 = vld [vmem:[#allocation5 + $0x11c] sm:$0xf]
        %v1040 = vld [vmem:[#allocation5 + $0x120] sm:$0xf]
        %v1041 = vld [vmem:[#allocation5 + $0x124] sm:$0xf]
        %v1042 = vld [vmem:[#allocation5 + $0x128] sm:$0xf]
        %v1043 = vld [vmem:[#allocation5 + $0x12c] sm:$0xf]
        %v1044 = vld [vmem:[#allocation5 + $0x130] sm:$0xf]
        %v1045 = vld [vmem:[#allocation5 + $0x134] sm:$0xf]
        %v1046 = vld [vmem:[#allocation5 + $0x138] sm:$0xf]
        %v1047 = vld [vmem:[#allocation5 + $0x13c] sm:$0xf]
        %v1048 = vld [vmem:[#allocation5 + $0x140] sm:$0xf]
        %v1049 = vld [vmem:[#allocation5 + $0x144] sm:$0xf]
        %v1050 = vld [vmem:[#allocation5 + $0x148] sm:$0xf]
        %v1051 = vld [vmem:[#allocation5 + $0x14c] sm:$0xf]
        %v1052 = vld [vmem:[#allocation5 + $0x150] sm:$0xf]
        %v1053 = vld [vmem:[#allocation5 + $0x154] sm:$0xf]
        %v1054 = vld [vmem:[#allocation5 + $0x158] sm:$0xf]
        %v1055 = vld [vmem:[#allocation5 + $0x15c] sm:$0xf]
        %v1056 = vld [vmem:[#allocation5 + $0x160] sm:$0xf]
        %v1057 = vld [vmem:[#allocation5 + $0x164] sm:$0xf]
        %v1058 = vld [vmem:[#allocation5 + $0x168] sm:$0xf]
        %v1059 = vld [vmem:[#allocation5 + $0x16c] sm:$0xf]
        %v1060 = vld [vmem:[#allocation5 + $0x170] sm:$0xf]
        %v1061 = vld [vmem:[#allocation5 + $0x174] sm:$0xf]
        %v1062 = vld [vmem:[#allocation5 + $0x178] sm:$0xf]
        %v1063 = vld [vmem:[#allocation5 + $0x17c] sm:$0xf]
        %v1064 = vld [vmem:[#allocation5 + $0x180] sm:$0xf]
        %v1065 = vld [vmem:[#allocation5 + $0x184] sm:$0xf]
        %v1066 = vld [vmem:[#allocation5 + $0x188] sm:$0xf]
        %v1067 = vld [vmem:[#allocation5 + $0x18c] sm:$0xf]
        %v1068 = vld [vmem:[#allocation5 + $0x190] sm:$0xf]
        %v1069 = vld [vmem:[#allocation5 + $0x194] sm:$0xf]
        %v1070 = vld [vmem:[#allocation5 + $0x198] sm:$0xf]
        %v1071 = vld [vmem:[#allocation5 + $0x19c] sm:$0xf]
        %v1072 = vld [vmem:[#allocation5 + $0x1a0] sm:$0xf]
        %v1073 = vld [vmem:[#allocation5 + $0x1a4] sm:$0xf]
        %v1074 = vld [vmem:[#allocation5 + $0x1a8] sm:$0xf]
        %v1075 = vld [vmem:[#allocation5 + $0x1ac] sm:$0xf]
        %v1076 = vld [vmem:[#allocation5 + $0x1b0] sm:$0xf]
        %v1077 = vld [vmem:[#allocation5 + $0x1b4] sm:$0xf]
        %v1078 = vld [vmem:[#allocation5 + $0x1b8] sm:$0xf]
        %v1079 = vld [vmem:[#allocation5 + $0x1bc] sm:$0xf]
        %v1080 = vld [vmem:[#allocation5 + $0x1c0] sm:$0xf]
        %v1081 = vld [vmem:[#allocation5 + $0x1c4] sm:$0xf]
        %v1082 = vld [vmem:[#allocation5 + $0x1c8] sm:$0xf]
        %v1083 = vld [vmem:[#allocation5 + $0x1cc] sm:$0xf]
        %v1084 = vld [vmem:[#allocation5 + $0x1d0] sm:$0xf]
        %v1085 = vld [vmem:[#allocation5 + $0x1d4] sm:$0xf]
        %v1086 = vld [vmem:[#allocation5 + $0x1d8] sm:$0xf]
        %v1087 = vld [vmem:[#allocation5 + $0x1dc] sm:$0xf]
        %v1088 = vld [vmem:[#allocation5 + $0x1e0] sm:$0xf]
        %v1089 = vld [vmem:[#allocation5 + $0x1e4] sm:$0xf]
        %v1090 = vld [vmem:[#allocation5 + $0x1e8] sm:$0xf]
        %v1091 = vld [vmem:[#allocation5 + $0x1ec] sm:$0xf]
        %v1092 = vld [vmem:[#allocation5 + $0x1f0] sm:$0xf]
        %v1093 = vld [vmem:[#allocation5 + $0x1f4] sm:$0xf]
        %v1094 = vld [vmem:[#allocation5 + $0x1f8] sm:$0xf]
        %v1095 = vld [vmem:[#allocation5 + $0x1fc] sm:$0xf]
        %v1096 = vld [vmem:[#allocation5 + $0x200] sm:$0xf]
        %v1097 = vld [vmem:[#allocation5 + $0x204] sm:$0xf]
        %v1098 = vld [vmem:[#allocation5 + $0x208] sm:$0xf]
        %v1099 = vld [vmem:[#allocation5 + $0x20c] sm:$0xf]
        %v1100 = vld [vmem:[#allocation5 + $0x210] sm:$0xf]
        %v1101 = vld [vmem:[#allocation5 + $0x214] sm:$0xf]
        %v1102 = vld [vmem:[#allocation5 + $0x218] sm:$0xf]
        %v1103 = vld [vmem:[#allocation5 + $0x21c] sm:$0xf]
        %v1104 = vld [vmem:[#allocation5 + $0x220] sm:$0xf]
        %v1105 = vld [vmem:[#allocation5 + $0x224] sm:$0xf]
        %v1106 = vld [vmem:[#allocation5 + $0x228] sm:$0xf]
        %v1107 = vld [vmem:[#allocation5 + $0x22c] sm:$0xf]
        %v1108 = vld [vmem:[#allocation5 + $0x230] sm:$0xf]
        %v1109 = vld [vmem:[#allocation5 + $0x234] sm:$0xf]
        %v1110 = vld [vmem:[#allocation5 + $0x238] sm:$0xf]
        %v1111 = vld [vmem:[#allocation5 + $0x23c] sm:$0xf]
        %v1256 = vunpack.c.l.b16 %v968
        %v1257 = vunpack.c.l.b16 %v969
        %v1258 = vunpack.c.l.b16 %v970
        %v1259 = vunpack.c.l.b16 %v971
        %v1260 = vunpack.c.l.b16 %v972
        %v1261 = vunpack.c.l.b16 %v973
        %v1262 = vunpack.c.l.b16 %v974
        %v1263 = vunpack.c.l.b16 %v975
        %v1264 = vunpack.c.l.b16 %v976
        %v1265 = vunpack.c.l.b16 %v977
        %v1266 = vunpack.c.l.b16 %v978
        %v1267 = vunpack.c.l.b16 %v979
        %v1268 = vunpack.c.l.b16 %v980
        %v1269 = vunpack.c.l.b16 %v981
        %v1270 = vunpack.c.l.b16 %v982
        %v1271 = vunpack.c.l.b16 %v983
        %v1272 = vunpack.c.l.b16 %v984
        %v1273 = vunpack.c.l.b16 %v985
        %v1274 = vunpack.c.l.b16 %v986
        %v1275 = vunpack.c.l.b16 %v987
        %v1276 = vunpack.c.l.b16 %v988
        %v1277 = vunpack.c.l.b16 %v989
        %v1278 = vunpack.c.l.b16 %v990
        %v1279 = vunpack.c.l.b16 %v991
        %v1280 = vunpack.c.l.b16 %v992
        %v1281 = vunpack.c.l.b16 %v993
        %v1282 = vunpack.c.l.b16 %v994
        %v1283 = vunpack.c.l.b16 %v995
        %v1284 = vunpack.c.l.b16 %v996
        %v1285 = vunpack.c.l.b16 %v997
        %v1286 = vunpack.c.l.b16 %v998
        %v1287 = vunpack.c.l.b16 %v999
        %v1288 = vunpack.c.l.b16 %v1000
        %v1289 = vunpack.c.l.b16 %v1001
        %v1290 = vunpack.c.l.b16 %v1002
        %v1291 = vunpack.c.l.b16 %v1003
        %v1292 = vunpack.c.l.b16 %v1004
        %v1293 = vunpack.c.l.b16 %v1005
        %v1294 = vunpack.c.l.b16 %v1006
        %v1295 = vunpack.c.l.b16 %v1007
        %v1296 = vunpack.c.l.b16 %v1008
        %v1297 = vunpack.c.l.b16 %v1009
        %v1298 = vunpack.c.l.b16 %v1010
        %v1299 = vunpack.c.l.b16 %v1011
        %v1300 = vunpack.c.l.b16 %v1012
        %v1301 = vunpack.c.l.b16 %v1013
        %v1302 = vunpack.c.l.b16 %v1014
        %v1303 = vunpack.c.l.b16 %v1015
        %v1304 = vunpack.c.l.b16 %v1016
        %v1305 = vunpack.c.l.b16 %v1017
        %v1306 = vunpack.c.l.b16 %v1018
        %v1307 = vunpack.c.l.b16 %v1019
        %v1308 = vunpack.c.l.b16 %v1020
        %v1309 = vunpack.c.l.b16 %v1021
        %v1310 = vunpack.c.l.b16 %v1022
        %v1311 = vunpack.c.l.b16 %v1023
        %v1312 = vunpack.c.l.b16 %v1024
        %v1313 = vunpack.c.l.b16 %v1025
        %v1314 = vunpack.c.l.b16 %v1026
        %v1315 = vunpack.c.l.b16 %v1027
        %v1316 = vunpack.c.l.b16 %v1028
        %v1317 = vunpack.c.l.b16 %v1029
        %v1318 = vunpack.c.l.b16 %v1030
        %v1319 = vunpack.c.l.b16 %v1031
        %v1320 = vunpack.c.l.b16 %v1032
        %v1321 = vunpack.c.l.b16 %v1033
        %v1322 = vunpack.c.l.b16 %v1034
        %v1323 = vunpack.c.l.b16 %v1035
        %v1324 = vunpack.c.l.b16 %v1036
        %v1325 = vunpack.c.l.b16 %v1037
        %v1326 = vunpack.c.l.b16 %v1038
        %v1327 = vunpack.c.l.b16 %v1039
        %v1328 = vunpack.c.l.b16 %v1040
        %v1329 = vunpack.c.l.b16 %v1041
        %v1330 = vunpack.c.l.b16 %v1042
        %v1331 = vunpack.c.l.b16 %v1043
        %v1332 = vunpack.c.l.b16 %v1044
        %v1333 = vunpack.c.l.b16 %v1045
        %v1334 = vunpack.c.l.b16 %v1046
        %v1335 = vunpack.c.l.b16 %v1047
        %v1336 = vunpack.c.l.b16 %v1048
        %v1337 = vunpack.c.l.b16 %v1049
        %v1338 = vunpack.c.l.b16 %v1050
        %v1339 = vunpack.c.l.b16 %v1051
        %v1340 = vunpack.c.l.b16 %v1052
        %v1341 = vunpack.c.l.b16 %v1053
        %v1342 = vunpack.c.l.b16 %v1054
        %v1343 = vunpack.c.l.b16 %v1055
        %v1344 = vunpack.c.l.b16 %v1056
        %v1345 = vunpack.c.l.b16 %v1057
        %v1346 = vunpack.c.l.b16 %v1058
        %v1347 = vunpack.c.l.b16 %v1059
        %v1348 = vunpack.c.l.b16 %v1060
        %v1349 = vunpack.c.l.b16 %v1061
        %v1350 = vunpack.c.l.b16 %v1062
        %v1351 = vunpack.c.l.b16 %v1063
        %v1352 = vunpack.c.l.b16 %v1064
        %v1353 = vunpack.c.l.b16 %v1065
        %v1354 = vunpack.c.l.b16 %v1066
        %v1355 = vunpack.c.l.b16 %v1067
        %v1356 = vunpack.c.l.b16 %v1068
        %v1357 = vunpack.c.l.b16 %v1069
        %v1358 = vunpack.c.l.b16 %v1070
        %v1359 = vunpack.c.l.b16 %v1071
        %v1360 = vunpack.c.l.b16 %v1072
        %v1361 = vunpack.c.l.b16 %v1073
        %v1362 = vunpack.c.l.b16 %v1074
        %v1363 = vunpack.c.l.b16 %v1075
        %v1364 = vunpack.c.l.b16 %v1076
        %v1365 = vunpack.c.l.b16 %v1077
        %v1366 = vunpack.c.l.b16 %v1078
        %v1367 = vunpack.c.l.b16 %v1079
        %v1368 = vunpack.c.l.b16 %v1080
        %v1369 = vunpack.c.l.b16 %v1081
        %v1370 = vunpack.c.l.b16 %v1082
        %v1371 = vunpack.c.l.b16 %v1083
        %v1372 = vunpack.c.l.b16 %v1084
        %v1373 = vunpack.c.l.b16 %v1085
        %v1374 = vunpack.c.l.b16 %v1086
        %v1375 = vunpack.c.l.b16 %v1087
        %v1376 = vunpack.c.l.b16 %v1088
        %v1377 = vunpack.c.l.b16 %v1089
        %v1378 = vunpack.c.l.b16 %v1090
        %v1379 = vunpack.c.l.b16 %v1091
        %v1380 = vunpack.c.l.b16 %v1092
        %v1381 = vunpack.c.l.b16 %v1093
        %v1382 = vunpack.c.l.b16 %v1094
        %v1383 = vunpack.c.l.b16 %v1095
        %v1384 = vunpack.c.l.b16 %v1096
        %v1385 = vunpack.c.l.b16 %v1097
        %v1386 = vunpack.c.l.b16 %v1098
        %v1387 = vunpack.c.l.b16 %v1099
        %v1388 = vunpack.c.l.b16 %v1100
        %v1389 = vunpack.c.l.b16 %v1101
        %v1390 = vunpack.c.l.b16 %v1102
        %v1391 = vunpack.c.l.b16 %v1103
        %v1392 = vunpack.c.l.b16 %v1104
        %v1393 = vunpack.c.l.b16 %v1105
        %v1394 = vunpack.c.l.b16 %v1106
        %v1395 = vunpack.c.l.b16 %v1107
        %v1396 = vunpack.c.l.b16 %v1108
        %v1397 = vunpack.c.l.b16 %v1109
        %v1398 = vunpack.c.l.b16 %v1110
        %v1399 = vunpack.c.l.b16 %v1111
        %v1400 = vpack.c.b16 %v1257, %v1256
        %v1401 = vpack.c.b16 %v1259, %v1258
        %v1402 = vpack.c.b16 %v1261, %v1260
        %v1403 = vpack.c.b16 %v1263, %v1262
        %v1404 = vpack.c.b16 %v1265, %v1264
        %v1405 = vpack.c.b16 %v1267, %v1266
        %v1406 = vpack.c.b16 %v1269, %v1268
        %v1407 = vpack.c.b16 %v1271, %v1270
        %v1408 = vpack.c.b16 %v1273, %v1272
        %v1409 = vpack.c.b16 %v1275, %v1274
        %v1410 = vpack.c.b16 %v1277, %v1276
        %v1411 = vpack.c.b16 %v1279, %v1278
        %v1412 = vpack.c.b16 %v1281, %v1280
        %v1413 = vpack.c.b16 %v1283, %v1282
        %v1414 = vpack.c.b16 %v1285, %v1284
        %v1415 = vpack.c.b16 %v1287, %v1286
        %v1416 = vpack.c.b16 %v1289, %v1288
        %v1417 = vpack.c.b16 %v1291, %v1290
        %v1418 = vpack.c.b16 %v1293, %v1292
        %v1419 = vpack.c.b16 %v1295, %v1294
        %v1420 = vpack.c.b16 %v1297, %v1296
        %v1421 = vpack.c.b16 %v1299, %v1298
        %v1422 = vpack.c.b16 %v1301, %v1300
        %v1423 = vpack.c.b16 %v1303, %v1302
        %v1424 = vpack.c.b16 %v1305, %v1304
        %v1425 = vpack.c.b16 %v1307, %v1306
        %v1426 = vpack.c.b16 %v1309, %v1308
        %v1427 = vpack.c.b16 %v1311, %v1310
        %v1428 = vpack.c.b16 %v1313, %v1312
        %v1429 = vpack.c.b16 %v1315, %v1314
        %v1430 = vpack.c.b16 %v1317, %v1316
        %v1431 = vpack.c.b16 %v1319, %v1318
        %v1432 = vpack.c.b16 %v1321, %v1320
        %v1433 = vpack.c.b16 %v1323, %v1322
        %v1434 = vpack.c.b16 %v1325, %v1324
        %v1435 = vpack.c.b16 %v1327, %v1326
        %v1436 = vpack.c.b16 %v1329, %v1328
        %v1437 = vpack.c.b16 %v1331, %v1330
        %v1438 = vpack.c.b16 %v1333, %v1332
        %v1439 = vpack.c.b16 %v1335, %v1334
        %v1440 = vpack.c.b16 %v1337, %v1336
        %v1441 = vpack.c.b16 %v1339, %v1338
        %v1442 = vpack.c.b16 %v1341, %v1340
        %v1443 = vpack.c.b16 %v1343, %v1342
        %v1444 = vpack.c.b16 %v1345, %v1344
        %v1445 = vpack.c.b16 %v1347, %v1346
        %v1446 = vpack.c.b16 %v1349, %v1348
        %v1447 = vpack.c.b16 %v1351, %v1350
        %v1448 = vpack.c.b16 %v1353, %v1352
        %v1449 = vpack.c.b16 %v1355, %v1354
        %v1450 = vpack.c.b16 %v1357, %v1356
        %v1451 = vpack.c.b16 %v1359, %v1358
        %v1452 = vpack.c.b16 %v1361, %v1360
        %v1453 = vpack.c.b16 %v1363, %v1362
        %v1454 = vpack.c.b16 %v1365, %v1364
        %v1455 = vpack.c.b16 %v1367, %v1366
        %v1456 = vpack.c.b16 %v1369, %v1368
        %v1457 = vpack.c.b16 %v1371, %v1370
        %v1458 = vpack.c.b16 %v1373, %v1372
        %v1459 = vpack.c.b16 %v1375, %v1374
        %v1460 = vpack.c.b16 %v1377, %v1376
        %v1461 = vpack.c.b16 %v1379, %v1378
        %v1462 = vpack.c.b16 %v1381, %v1380
        %v1463 = vpack.c.b16 %v1383, %v1382
        %v1464 = vpack.c.b16 %v1385, %v1384
        %v1465 = vpack.c.b16 %v1387, %v1386
        %v1466 = vpack.c.b16 %v1389, %v1388
        %v1467 = vpack.c.b16 %v1391, %v1390
        %v1468 = vpack.c.b16 %v1393, %v1392
        %v1469 = vpack.c.b16 %v1395, %v1394
        %v1470 = vpack.c.b16 %v1397, %v1396
        %v1471 = vpack.c.b16 %v1399, %v1398
        %1544 = vmatprep.subr.bf16.mxu0 0
        %1545 = vmatpush1.bf16.msra.mxu0 %v1407
        %1546 = vmatprep.subr.bf16.mxu0 0
        %1547 = vmatpush1.bf16.msra.mxu0 %v1406
        %1548 = vmatprep.subr.bf16.mxu0 0
        %1549 = vmatpush1.bf16.msra.mxu0 %v1405
        %1550 = vmatprep.subr.bf16.mxu0 0
        %1551 = vmatpush1.bf16.msra.mxu0 %v1404
        %1552 = vmatprep.subr.bf16.mxu0 0
        %1553 = vmatpush1.bf16.msra.mxu0 %v1403
        %1554 = vmatprep.subr.bf16.mxu0 0
        %1555 = vmatpush1.bf16.msra.mxu0 %v1402
        %1556 = vmatprep.subr.bf16.mxu0 0
        %1557 = vmatpush1.bf16.msra.mxu0 %v1401
        %1558 = vmatprep.subr.bf16.mxu0 0
        %1559 = vmatpush1.bf16.msra.mxu0 %v1400
        %1560 = vmatprep.subr.bf16.mxu0 0
        %1561 = vmatpush2.bf16.msra.mxu0 %v1415
        %1562 = vmatprep.subr.bf16.mxu0 0
        %1563 = vmatpush2.bf16.msra.mxu0 %v1414
        %1564 = vmatprep.subr.bf16.mxu0 0
        %1565 = vmatpush2.bf16.msra.mxu0 %v1413
        %1566 = vmatprep.subr.bf16.mxu0 0
        %1567 = vmatpush2.bf16.msra.mxu0 %v1412
        %1568 = vmatprep.subr.bf16.mxu0 0
        %1569 = vmatpush2.bf16.msra.mxu0 %v1411
        %1570 = vmatprep.subr.bf16.mxu0 0
        %1571 = vmatpush2.bf16.msra.mxu0 %v1410
        %1572 = vmatprep.subr.bf16.mxu0 0
        %1573 = vmatpush2.bf16.msra.mxu0 %v1409
        %1574 = vmatprep.subr.bf16.mxu0 0
        %1575 = vmatpush2.bf16.msra.mxu0 %v1408
        %1576 = vmatprep.mubr.bf16.mxu0 %v793
        %1577 = vmatmul.mubr.bf16.gmra.mxu0 %v778
        %v1578 = vpop.f32.mrf.mxu0
        %v1579 = vadd.f32 0.0, %v1578
        %v1580 = vpop.f32.mrf.mxu0
        %v1581 = vpop.f32.mrf.mxu0
        %v1582 = vadd.f32 0.0, %v1581
        %v1583 = vpop.f32.mrf.mxu0
        %1584 = vmatprep.mubr.bf16.mxu0 %v794
        %1585 = vmatmul.mubr.bf16.gmra.mxu0 %v779
        %v1586 = vpop.f32.mrf.mxu0
        %v1587 = vadd.f32 0.0, %v1586
        %v1588 = vpop.f32.mrf.mxu0
        %v1589 = vpop.f32.mrf.mxu0
        %v1590 = vadd.f32 0.0, %v1589
        %v1591 = vpop.f32.mrf.mxu0
        %1592 = vmatprep.mubr.bf16.mxu0 %v795
        %1593 = vmatmul.mubr.bf16.gmra.mxu0 %v780
        %v1594 = vpop.f32.mrf.mxu0
        %v1595 = vadd.f32 0.0, %v1594
        %v1596 = vpop.f32.mrf.mxu0
        %v1597 = vpop.f32.mrf.mxu0
        %v1598 = vadd.f32 0.0, %v1597
        %v1599 = vpop.f32.mrf.mxu0
        %1600 = vmatprep.mubr.bf16.mxu0 %v796
        %1601 = vmatmul.mubr.bf16.gmra.mxu0 %v781
        %v1602 = vpop.f32.mrf.mxu0
        %v1603 = vadd.f32 0.0, %v1602
        %v1604 = vpop.f32.mrf.mxu0
        %v1605 = vpop.f32.mrf.mxu0
        %v1606 = vadd.f32 0.0, %v1605
        %v1607 = vpop.f32.mrf.mxu0
        %1608 = vmatprep.mubr.bf16.mxu0 %v797
        %1609 = vmatmul.mubr.bf16.gmra.mxu0 %v782
        %v1610 = vpop.f32.mrf.mxu0
        %v1611 = vadd.f32 0.0, %v1610
        %v1612 = vpop.f32.mrf.mxu0
        %v1613 = vpop.f32.mrf.mxu0
        %v1614 = vadd.f32 0.0, %v1613
        %v1615 = vpop.f32.mrf.mxu0
        %1616 = vmatprep.mubr.bf16.mxu0 %v798
        %1617 = vmatmul.mubr.bf16.gmra.mxu0 %v783
        %v1618 = vpop.f32.mrf.mxu0
        %v1619 = vadd.f32 0.0, %v1618
        %v1620 = vpop.f32.mrf.mxu0
        %v1621 = vpop.f32.mrf.mxu0
        %v1622 = vadd.f32 0.0, %v1621
        %v1623 = vpop.f32.mrf.mxu0
        %1624 = vmatprep.mubr.bf16.mxu0 %v799
        %1625 = vmatmul.mubr.bf16.gmra.mxu0 %v784
        %v1626 = vpop.f32.mrf.mxu0
        %v1627 = vadd.f32 0.0, %v1626
        %v1628 = vpop.f32.mrf.mxu0
        %v1629 = vpop.f32.mrf.mxu0
        %v1630 = vadd.f32 0.0, %v1629
        %v1631 = vpop.f32.mrf.mxu0
        %1632 = vmatprep.mubr.bf16.mxu0 %v800
        %1633 = vmatmul.mubr.bf16.gmra.mxu0 %v785
        %v1634 = vpop.f32.mrf.mxu0
        %v1635 = vadd.f32 0.0, %v1634
        %v1636 = vpop.f32.mrf.mxu0
        %v1637 = vpop.f32.mrf.mxu0
        %v1638 = vadd.f32 0.0, %v1637
        %v1639 = vpop.f32.mrf.mxu0
        %1640 = vmatprep.mubr.bf16.mxu0 %v801
        %1641 = vmatmul.mubr.bf16.gmra.mxu0 %v786
        %v1642 = vpop.f32.mrf.mxu0
        %v1643 = vadd.f32 0.0, %v1642
        %v1644 = vpop.f32.mrf.mxu0
        %v1645 = vpop.f32.mrf.mxu0
        %v1646 = vadd.f32 0.0, %v1645
        %v1647 = vpop.f32.mrf.mxu0
        %1648 = vmatprep.mubr.bf16.mxu0 %v802
        %1649 = vmatmul.mubr.bf16.gmra.mxu0 %v787
        %v1650 = vpop.f32.mrf.mxu0
        %v1651 = vadd.f32 0.0, %v1650
        %v1652 = vpop.f32.mrf.mxu0
        %v1653 = vpop.f32.mrf.mxu0
        %v1654 = vadd.f32 0.0, %v1653
        %v1655 = vpop.f32.mrf.mxu0
        %1656 = vmatprep.mubr.bf16.mxu0 %v803
        %1657 = vmatmul.mubr.bf16.gmra.mxu0 %v788
        %v1658 = vpop.f32.mrf.mxu0
        %v1659 = vadd.f32 0.0, %v1658
        %v1660 = vpop.f32.mrf.mxu0
        %v1661 = vpop.f32.mrf.mxu0
        %v1662 = vadd.f32 0.0, %v1661
        %v1663 = vpop.f32.mrf.mxu0
        %1664 = vmatprep.mubr.bf16.mxu0 %v804
        %1665 = vmatmul.mubr.bf16.gmra.mxu0 %v789
        %v1666 = vpop.f32.mrf.mxu0
        %v1667 = vadd.f32 0.0, %v1666
        %v1668 = vpop.f32.mrf.mxu0
        %v1669 = vpop.f32.mrf.mxu0
        %v1670 = vadd.f32 0.0, %v1669
        %v1671 = vpop.f32.mrf.mxu0
        %1672 = vmatprep.mubr.bf16.mxu0 %v805
        %1673 = vmatmul.mubr.bf16.gmra.mxu0 %v790
        %v1674 = vpop.f32.mrf.mxu0
        %v1675 = vadd.f32 0.0, %v1674
        %v1676 = vpop.f32.mrf.mxu0
        %v1677 = vpop.f32.mrf.mxu0
        %v1678 = vadd.f32 0.0, %v1677
        %v1679 = vpop.f32.mrf.mxu0
        %1680 = vmatprep.mubr.bf16.mxu0 %v806
        %1681 = vmatmul.mubr.bf16.gmra.mxu0 %v791
        %v1682 = vpop.f32.mrf.mxu0
        %v1683 = vadd.f32 0.0, %v1682
        %v1684 = vpop.f32.mrf.mxu0
        %v1685 = vpop.f32.mrf.mxu0
        %v1686 = vadd.f32 0.0, %v1685
        %v1687 = vpop.f32.mrf.mxu0
        %1688 = vmatprep.mubr.bf16.mxu0 %v807
        %1689 = vmatmul.mubr.bf16.gmra.mxu0 %v792
        %v1690 = vpop.f32.mrf.mxu0
        %v1691 = vadd.f32 0.0, %v1690
        %v1692 = vpop.f32.mrf.mxu0
        %v1693 = vpop.f32.mrf.mxu0
        %v1694 = vadd.f32 0.0, %v1693
        %v1695 = vpop.f32.mrf.mxu0
        %1696 = vdwg.mxu0
        %1697 = vmatprep.subr.bf16.mxu0 0
        %1698 = vmatpush1.bf16.msra.mxu0 %v1423
        %1699 = vmatprep.subr.bf16.mxu0 0
        %1700 = vmatpush1.bf16.msra.mxu0 %v1422
        %1701 = vmatprep.subr.bf16.mxu0 0
        %1702 = vmatpush1.bf16.msra.mxu0 %v1421
        %1703 = vmatprep.subr.bf16.mxu0 0
        %1704 = vmatpush1.bf16.msra.mxu0 %v1420
        %1705 = vmatprep.subr.bf16.mxu0 0
        %1706 = vmatpush1.bf16.msra.mxu0 %v1419
        %1707 = vmatprep.subr.bf16.mxu0 0
        %1708 = vmatpush1.bf16.msra.mxu0 %v1418
        %1709 = vmatprep.subr.bf16.mxu0 0
        %1710 = vmatpush1.bf16.msra.mxu0 %v1417
        %1711 = vmatprep.subr.bf16.mxu0 0
        %1712 = vmatpush1.bf16.msra.mxu0 %v1416
        %1713 = vmatprep.subr.bf16.mxu0 0
        %1714 = vmatpush2.bf16.msra.mxu0 %v1431
        %1715 = vmatprep.subr.bf16.mxu0 0
        %1716 = vmatpush2.bf16.msra.mxu0 %v1430
        %1717 = vmatprep.subr.bf16.mxu0 0
        %1718 = vmatpush2.bf16.msra.mxu0 %v1429
        %1719 = vmatprep.subr.bf16.mxu0 0
        %1720 = vmatpush2.bf16.msra.mxu0 %v1428
        %1721 = vmatprep.subr.bf16.mxu0 0
        %1722 = vmatpush2.bf16.msra.mxu0 %v1427
        %1723 = vmatprep.subr.bf16.mxu0 0
        %1724 = vmatpush2.bf16.msra.mxu0 %v1426
        %1725 = vmatprep.subr.bf16.mxu0 0
        %1726 = vmatpush2.bf16.msra.mxu0 %v1425
        %1727 = vmatprep.subr.bf16.mxu0 0
        %1728 = vmatpush2.bf16.msra.mxu0 %v1424
        %1729 = vmatprep.mubr.bf16.mxu0 %v891
        %1730 = vmatmul.mubr.bf16.gmra.mxu0 %v869
        %v1731 = vpop.f32.mrf.mxu0
        %v1732 = vadd.f32 %v1579, %v1731
        %v1733 = vpop.f32.mrf.mxu0
        %v1734 = vpop.f32.mrf.mxu0
        %v1735 = vadd.f32 %v1582, %v1734
        %v1736 = vpop.f32.mrf.mxu0
        %1737 = vmatprep.mubr.bf16.mxu0 %v892
        %1738 = vmatmul.mubr.bf16.gmra.mxu0 %v870
        %v1739 = vpop.f32.mrf.mxu0
        %v1740 = vadd.f32 %v1587, %v1739
        %v1741 = vpop.f32.mrf.mxu0
        %v1742 = vpop.f32.mrf.mxu0
        %v1743 = vadd.f32 %v1590, %v1742
        %v1744 = vpop.f32.mrf.mxu0
        %1745 = vmatprep.mubr.bf16.mxu0 %v893
        %1746 = vmatmul.mubr.bf16.gmra.mxu0 %v871
        %v1747 = vpop.f32.mrf.mxu0
        %v1748 = vadd.f32 %v1595, %v1747
        %v1749 = vpop.f32.mrf.mxu0
        %v1750 = vpop.f32.mrf.mxu0
        %v1751 = vadd.f32 %v1598, %v1750
        %v1752 = vpop.f32.mrf.mxu0
        %1753 = vmatprep.mubr.bf16.mxu0 %v894
        %1754 = vmatmul.mubr.bf16.gmra.mxu0 %v872
        %v1755 = vpop.f32.mrf.mxu0
        %v1756 = vadd.f32 %v1603, %v1755
        %v1757 = vpop.f32.mrf.mxu0
        %v1758 = vpop.f32.mrf.mxu0
        %v1759 = vadd.f32 %v1606, %v1758
        %v1760 = vpop.f32.mrf.mxu0
        %1761 = vmatprep.mubr.bf16.mxu0 %v895
        %1762 = vmatmul.mubr.bf16.gmra.mxu0 %v873
        %v1763 = vpop.f32.mrf.mxu0
        %v1764 = vadd.f32 %v1611, %v1763
        %v1765 = vpop.f32.mrf.mxu0
        %v1766 = vpop.f32.mrf.mxu0
        %v1767 = vadd.f32 %v1614, %v1766
        %v1768 = vpop.f32.mrf.mxu0
        %1769 = vmatprep.mubr.bf16.mxu0 %v896
        %1770 = vmatmul.mubr.bf16.gmra.mxu0 %v874
        %v1771 = vpop.f32.mrf.mxu0
        %v1772 = vadd.f32 %v1619, %v1771
        %v1773 = vpop.f32.mrf.mxu0
        %v1774 = vpop.f32.mrf.mxu0
        %v1775 = vadd.f32 %v1622, %v1774
        %v1776 = vpop.f32.mrf.mxu0
        %1777 = vmatprep.mubr.bf16.mxu0 %v897
        %1778 = vmatmul.mubr.bf16.gmra.mxu0 %v875
        %v1779 = vpop.f32.mrf.mxu0
        %v1780 = vadd.f32 %v1627, %v1779
        %v1781 = vpop.f32.mrf.mxu0
        %v1782 = vpop.f32.mrf.mxu0
        %v1783 = vadd.f32 %v1630, %v1782
        %v1784 = vpop.f32.mrf.mxu0
        %1785 = vmatprep.mubr.bf16.mxu0 %v898
        %1786 = vmatmul.mubr.bf16.gmra.mxu0 %v876
        %v1787 = vpop.f32.mrf.mxu0
        %v1788 = vadd.f32 %v1635, %v1787
        %v1789 = vpop.f32.mrf.mxu0
        %v1790 = vpop.f32.mrf.mxu0
        %v1791 = vadd.f32 %v1638, %v1790
        %v1792 = vpop.f32.mrf.mxu0
        %1793 = vmatprep.mubr.bf16.mxu0 %v899
        %1794 = vmatmul.mubr.bf16.gmra.mxu0 %v877
        %v1795 = vpop.f32.mrf.mxu0
        %v1796 = vadd.f32 %v1643, %v1795
        %v1797 = vpop.f32.mrf.mxu0
        %v1798 = vpop.f32.mrf.mxu0
        %v1799 = vadd.f32 %v1646, %v1798
        %v1800 = vpop.f32.mrf.mxu0
        %1801 = vmatprep.mubr.bf16.mxu0 %v900
        %1802 = vmatmul.mubr.bf16.gmra.mxu0 %v878
        %v1803 = vpop.f32.mrf.mxu0
        %v1804 = vadd.f32 %v1651, %v1803
        %v1805 = vpop.f32.mrf.mxu0
        %v1806 = vpop.f32.mrf.mxu0
        %v1807 = vadd.f32 %v1654, %v1806
        %v1808 = vpop.f32.mrf.mxu0
        %1809 = vmatprep.mubr.bf16.mxu0 %v901
        %1810 = vmatmul.mubr.bf16.gmra.mxu0 %v879
        %v1811 = vpop.f32.mrf.mxu0
        %v1812 = vadd.f32 %v1659, %v1811
        %v1813 = vpop.f32.mrf.mxu0
        %v1814 = vpop.f32.mrf.mxu0
        %v1815 = vadd.f32 %v1662, %v1814
        %v1816 = vpop.f32.mrf.mxu0
        %1817 = vmatprep.mubr.bf16.mxu0 %v902
        %1818 = vmatmul.mubr.bf16.gmra.mxu0 %v880
        %v1819 = vpop.f32.mrf.mxu0
        %v1820 = vadd.f32 %v1667, %v1819
        %v1821 = vpop.f32.mrf.mxu0
        %v1822 = vpop.f32.mrf.mxu0
        %v1823 = vadd.f32 %v1670, %v1822
        %v1824 = vpop.f32.mrf.mxu0
        %1825 = vmatprep.mubr.bf16.mxu0 %v903
        %1826 = vmatmul.mubr.bf16.gmra.mxu0 %v881
        %v1827 = vpop.f32.mrf.mxu0
        %v1828 = vadd.f32 %v1675, %v1827
        %v1829 = vpop.f32.mrf.mxu0
        %v1830 = vpop.f32.mrf.mxu0
        %v1831 = vadd.f32 %v1678, %v1830
        %v1832 = vpop.f32.mrf.mxu0
        %1833 = vmatprep.mubr.bf16.mxu0 %v904
        %1834 = vmatmul.mubr.bf16.gmra.mxu0 %v882
        %v1835 = vpop.f32.mrf.mxu0
        %v1836 = vadd.f32 %v1683, %v1835
        %v1837 = vpop.f32.mrf.mxu0
        %v1838 = vpop.f32.mrf.mxu0
        %v1839 = vadd.f32 %v1686, %v1838
        %v1840 = vpop.f32.mrf.mxu0
        %1841 = vmatprep.mubr.bf16.mxu0 %v905
        %1842 = vmatmul.mubr.bf16.gmra.mxu0 %v883
        %v1843 = vpop.f32.mrf.mxu0
        %v1844 = vadd.f32 %v1691, %v1843
        %v1845 = vpop.f32.mrf.mxu0
        %v1846 = vpop.f32.mrf.mxu0
        %v1847 = vadd.f32 %v1694, %v1846
        %v1848 = vpop.f32.mrf.mxu0
        %1849 = vdwg.mxu0
        %1850 = vmatprep.subr.bf16.mxu0 0
        %1851 = vmatpush1.bf16.msra.mxu0 %v1439
        %1852 = vmatprep.subr.bf16.mxu0 0
        %1853 = vmatpush1.bf16.msra.mxu0 %v1438
        %1854 = vmatprep.subr.bf16.mxu0 0
        %1855 = vmatpush1.bf16.msra.mxu0 %v1437
        %1856 = vmatprep.subr.bf16.mxu0 0
        %1857 = vmatpush1.bf16.msra.mxu0 %v1436
        %1858 = vmatprep.subr.bf16.mxu0 0
        %1859 = vmatpush1.bf16.msra.mxu0 %v1435
        %1860 = vmatprep.subr.bf16.mxu0 0
        %1861 = vmatpush1.bf16.msra.mxu0 %v1434
        %1862 = vmatprep.subr.bf16.mxu0 0
        %1863 = vmatpush1.bf16.msra.mxu0 %v1433
        %1864 = vmatprep.subr.bf16.mxu0 0
        %1865 = vmatpush1.bf16.msra.mxu0 %v1432
        %1866 = vmatprep.subr.bf16.mxu0 0
        %1867 = vmatpush2.bf16.msra.mxu0 %v1447
        %1868 = vmatprep.subr.bf16.mxu0 0
        %1869 = vmatpush2.bf16.msra.mxu0 %v1446
        %1870 = vmatprep.subr.bf16.mxu0 0
        %1871 = vmatpush2.bf16.msra.mxu0 %v1445
        %1872 = vmatprep.subr.bf16.mxu0 0
        %1873 = vmatpush2.bf16.msra.mxu0 %v1444
        %1874 = vmatprep.subr.bf16.mxu0 0
        %1875 = vmatpush2.bf16.msra.mxu0 %v1443
        %1876 = vmatprep.subr.bf16.mxu0 0
        %1877 = vmatpush2.bf16.msra.mxu0 %v1442
        %1878 = vmatprep.subr.bf16.mxu0 0
        %1879 = vmatpush2.bf16.msra.mxu0 %v1441
        %1880 = vmatprep.subr.bf16.mxu0 0
        %1881 = vmatpush2.bf16.msra.mxu0 %v1440
        %1882 = vmatprep.mubr.bf16.mxu0 %v928
        %1883 = vmatmul.mubr.bf16.gmra.mxu0 %v906
        %v1884 = vpop.f32.mrf.mxu0
        %v1885 = vadd.f32 %v1732, %v1884
        %v1886 = vpop.f32.mrf.mxu0
        %v1887 = vpop.f32.mrf.mxu0
        %v1888 = vadd.f32 %v1735, %v1887
        %v1889 = vpop.f32.mrf.mxu0
        %1890 = vmatprep.mubr.bf16.mxu0 %v929
        %1891 = vmatmul.mubr.bf16.gmra.mxu0 %v907
        %v1892 = vpop.f32.mrf.mxu0
        %v1893 = vadd.f32 %v1740, %v1892
        %v1894 = vpop.f32.mrf.mxu0
        %v1895 = vpop.f32.mrf.mxu0
        %v1896 = vadd.f32 %v1743, %v1895
        %v1897 = vpop.f32.mrf.mxu0
        %1898 = vmatprep.mubr.bf16.mxu0 %v930
        %1899 = vmatmul.mubr.bf16.gmra.mxu0 %v908
        %v1900 = vpop.f32.mrf.mxu0
        %v1901 = vadd.f32 %v1748, %v1900
        %v1902 = vpop.f32.mrf.mxu0
        %v1903 = vpop.f32.mrf.mxu0
        %v1904 = vadd.f32 %v1751, %v1903
        %v1905 = vpop.f32.mrf.mxu0
        %1906 = vmatprep.mubr.bf16.mxu0 %v931
        %1907 = vmatmul.mubr.bf16.gmra.mxu0 %v909
        %v1908 = vpop.f32.mrf.mxu0
        %v1909 = vadd.f32 %v1756, %v1908
        %v1910 = vpop.f32.mrf.mxu0
        %v1911 = vpop.f32.mrf.mxu0
        %v1912 = vadd.f32 %v1759, %v1911
        %v1913 = vpop.f32.mrf.mxu0
        %1914 = vmatprep.mubr.bf16.mxu0 %v932
        %1915 = vmatmul.mubr.bf16.gmra.mxu0 %v910
        %v1916 = vpop.f32.mrf.mxu0
        %v1917 = vadd.f32 %v1764, %v1916
        %v1918 = vpop.f32.mrf.mxu0
        %v1919 = vpop.f32.mrf.mxu0
        %v1920 = vadd.f32 %v1767, %v1919
        %v1921 = vpop.f32.mrf.mxu0
        %1922 = vmatprep.mubr.bf16.mxu0 %v933
        %1923 = vmatmul.mubr.bf16.gmra.mxu0 %v911
        %v1924 = vpop.f32.mrf.mxu0
        %v1925 = vadd.f32 %v1772, %v1924
        %v1926 = vpop.f32.mrf.mxu0
        %v1927 = vpop.f32.mrf.mxu0
        %v1928 = vadd.f32 %v1775, %v1927
        %v1929 = vpop.f32.mrf.mxu0
        %1930 = vmatprep.mubr.bf16.mxu0 %v934
        %1931 = vmatmul.mubr.bf16.gmra.mxu0 %v912
        %v1932 = vpop.f32.mrf.mxu0
        %v1933 = vadd.f32 %v1780, %v1932
        %v1934 = vpop.f32.mrf.mxu0
        %v1935 = vpop.f32.mrf.mxu0
        %v1936 = vadd.f32 %v1783, %v1935
        %v1937 = vpop.f32.mrf.mxu0
        %1938 = vmatprep.mubr.bf16.mxu0 %v935
        %1939 = vmatmul.mubr.bf16.gmra.mxu0 %v913
        %v1940 = vpop.f32.mrf.mxu0
        %v1941 = vadd.f32 %v1788, %v1940
        %v1942 = vpop.f32.mrf.mxu0
        %v1943 = vpop.f32.mrf.mxu0
        %v1944 = vadd.f32 %v1791, %v1943
        %v1945 = vpop.f32.mrf.mxu0
        %1946 = vmatprep.mubr.bf16.mxu0 %v936
        %1947 = vmatmul.mubr.bf16.gmra.mxu0 %v914
        %v1948 = vpop.f32.mrf.mxu0
        %v1949 = vadd.f32 %v1796, %v1948
        %v1950 = vpop.f32.mrf.mxu0
        %v1951 = vpop.f32.mrf.mxu0
        %v1952 = vadd.f32 %v1799, %v1951
        %v1953 = vpop.f32.mrf.mxu0
        %1954 = vmatprep.mubr.bf16.mxu0 %v937
        %1955 = vmatmul.mubr.bf16.gmra.mxu0 %v915
        %v1956 = vpop.f32.mrf.mxu0
        %v1957 = vadd.f32 %v1804, %v1956
        %v1958 = vpop.f32.mrf.mxu0
        %v1959 = vpop.f32.mrf.mxu0
        %v1960 = vadd.f32 %v1807, %v1959
        %v1961 = vpop.f32.mrf.mxu0
        %1962 = vmatprep.mubr.bf16.mxu0 %v938
        %1963 = vmatmul.mubr.bf16.gmra.mxu0 %v916
        %v1964 = vpop.f32.mrf.mxu0
        %v1965 = vadd.f32 %v1812, %v1964
        %v1966 = vpop.f32.mrf.mxu0
        %v1967 = vpop.f32.mrf.mxu0
        %v1968 = vadd.f32 %v1815, %v1967
        %v1969 = vpop.f32.mrf.mxu0
        %1970 = vmatprep.mubr.bf16.mxu0 %v939
        %1971 = vmatmul.mubr.bf16.gmra.mxu0 %v917
        %v1972 = vpop.f32.mrf.mxu0
        %v1973 = vadd.f32 %v1820, %v1972
        %v1974 = vpop.f32.mrf.mxu0
        %v1975 = vpop.f32.mrf.mxu0
        %v1976 = vadd.f32 %v1823, %v1975
        %v1977 = vpop.f32.mrf.mxu0
        %1978 = vmatprep.mubr.bf16.mxu0 %v940
        %1979 = vmatmul.mubr.bf16.gmra.mxu0 %v918
        %v1980 = vpop.f32.mrf.mxu0
        %v1981 = vadd.f32 %v1828, %v1980
        %v1982 = vpop.f32.mrf.mxu0
        %v1983 = vpop.f32.mrf.mxu0
        %v1984 = vadd.f32 %v1831, %v1983
        %v1985 = vpop.f32.mrf.mxu0
        %1986 = vmatprep.mubr.bf16.mxu0 %v941
        %1987 = vmatmul.mubr.bf16.gmra.mxu0 %v919
        %v1988 = vpop.f32.mrf.mxu0
        %v1989 = vadd.f32 %v1836, %v1988
        %v1990 = vpop.f32.mrf.mxu0
        %v1991 = vpop.f32.mrf.mxu0
        %v1992 = vadd.f32 %v1839, %v1991
        %v1993 = vpop.f32.mrf.mxu0
        %1994 = vmatprep.mubr.bf16.mxu0 %v942
        %1995 = vmatmul.mubr.bf16.gmra.mxu0 %v920
        %v1996 = vpop.f32.mrf.mxu0
        %v1997 = vadd.f32 %v1844, %v1996
        %v1998 = vpop.f32.mrf.mxu0
        %v1999 = vpop.f32.mrf.mxu0
        %v2000 = vadd.f32 %v1847, %v1999
        %v2001 = vpop.f32.mrf.mxu0
        %2002 = vdwg.mxu0
        %2003 = vmatprep.subr.bf16.mxu0 0
        %2004 = vmatpush1.bf16.msra.mxu0 %v1455
        %2005 = vmatprep.subr.bf16.mxu0 0
        %2006 = vmatpush1.bf16.msra.mxu0 %v1454
        %2007 = vmatprep.subr.bf16.mxu0 0
        %2008 = vmatpush1.bf16.msra.mxu0 %v1453
        %2009 = vmatprep.subr.bf16.mxu0 0
        %2010 = vmatpush1.bf16.msra.mxu0 %v1452
        %2011 = vmatprep.subr.bf16.mxu0 0
        %2012 = vmatpush1.bf16.msra.mxu0 %v1451
        %2013 = vmatprep.subr.bf16.mxu0 0
        %2014 = vmatpush1.bf16.msra.mxu0 %v1450
        %2015 = vmatprep.subr.bf16.mxu0 0
        %2016 = vmatpush1.bf16.msra.mxu0 %v1449
        %2017 = vmatprep.subr.bf16.mxu0 0
        %2018 = vmatpush1.bf16.msra.mxu0 %v1448
        %2019 = vmatprep.subr.bf16.mxu0 0
        %2020 = vmatpush2.bf16.msra.mxu0 %v1463
        %2021 = vmatprep.subr.bf16.mxu0 0
        %2022 = vmatpush2.bf16.msra.mxu0 %v1462
        %2023 = vmatprep.subr.bf16.mxu0 0
        %2024 = vmatpush2.bf16.msra.mxu0 %v1461
        %2025 = vmatprep.subr.bf16.mxu0 0
        %2026 = vmatpush2.bf16.msra.mxu0 %v1460
        %2027 = vmatprep.subr.bf16.mxu0 0
        %2028 = vmatpush2.bf16.msra.mxu0 %v1459
        %2029 = vmatprep.subr.bf16.mxu0 0
        %2030 = vmatpush2.bf16.msra.mxu0 %v1458
        %2031 = vmatprep.subr.bf16.mxu0 0
        %2032 = vmatpush2.bf16.msra.mxu0 %v1457
        %2033 = vmatprep.subr.bf16.mxu0 0
        %2034 = vmatpush2.bf16.msra.mxu0 %v1456
        %2035 = vmatprep.mubr.bf16.mxu0 %v796
        %2036 = vmatmul.mubr.bf16.gmra.mxu0 %v950
        %v2037 = vpop.f32.mrf.mxu0
        %v2038 = vadd.f32 %v1885, %v2037
        %v2039 = vpop.f32.mrf.mxu0
        %v2040 = vpop.f32.mrf.mxu0
        %v2041 = vadd.f32 %v1888, %v2040
        %v2042 = vpop.f32.mrf.mxu0
        %2043 = vmatprep.mubr.bf16.mxu0 %v797
        %2044 = vmatmul.mubr.bf16.gmra.mxu0 %v782
        %v2045 = vpop.f32.mrf.mxu0
        %v2046 = vadd.f32 %v1893, %v2045
        %v2047 = vpop.f32.mrf.mxu0
        %v2048 = vpop.f32.mrf.mxu0
        %v2049 = vadd.f32 %v1896, %v2048
        %v2050 = vpop.f32.mrf.mxu0
        %2051 = vmatprep.mubr.bf16.mxu0 %v798
        %2052 = vmatmul.mubr.bf16.gmra.mxu0 %v783
        %v2053 = vpop.f32.mrf.mxu0
        %v2054 = vadd.f32 %v1901, %v2053
        %v2055 = vpop.f32.mrf.mxu0
        %v2056 = vpop.f32.mrf.mxu0
        %v2057 = vadd.f32 %v1904, %v2056
        %v2058 = vpop.f32.mrf.mxu0
        %2059 = vmatprep.mubr.bf16.mxu0 %v799
        %2060 = vmatmul.mubr.bf16.gmra.mxu0 %v784
        %v2061 = vpop.f32.mrf.mxu0
        %v2062 = vadd.f32 %v1909, %v2061
        %v2063 = vpop.f32.mrf.mxu0
        %v2064 = vpop.f32.mrf.mxu0
        %v2065 = vadd.f32 %v1912, %v2064
        %v2066 = vpop.f32.mrf.mxu0
        %2067 = vmatprep.mubr.bf16.mxu0 %v800
        %2068 = vmatmul.mubr.bf16.gmra.mxu0 %v785
        %v2069 = vpop.f32.mrf.mxu0
        %v2070 = vadd.f32 %v1917, %v2069
        %v2071 = vpop.f32.mrf.mxu0
        %v2072 = vpop.f32.mrf.mxu0
        %v2073 = vadd.f32 %v1920, %v2072
        %v2074 = vpop.f32.mrf.mxu0
        %2075 = vmatprep.mubr.bf16.mxu0 %v801
        %2076 = vmatmul.mubr.bf16.gmra.mxu0 %v786
        %v2077 = vpop.f32.mrf.mxu0
        %v2078 = vadd.f32 %v1925, %v2077
        %v2079 = vpop.f32.mrf.mxu0
        %v2080 = vpop.f32.mrf.mxu0
        %v2081 = vadd.f32 %v1928, %v2080
        %v2082 = vpop.f32.mrf.mxu0
        %2083 = vmatprep.mubr.bf16.mxu0 %v802
        %2084 = vmatmul.mubr.bf16.gmra.mxu0 %v787
        %v2085 = vpop.f32.mrf.mxu0
        %v2086 = vadd.f32 %v1933, %v2085
        %v2087 = vpop.f32.mrf.mxu0
        %v2088 = vpop.f32.mrf.mxu0
        %v2089 = vadd.f32 %v1936, %v2088
        %v2090 = vpop.f32.mrf.mxu0
        %2091 = vmatprep.mubr.bf16.mxu0 %v803
        %2092 = vmatmul.mubr.bf16.gmra.mxu0 %v788
        %v2093 = vpop.f32.mrf.mxu0
        %v2094 = vadd.f32 %v1941, %v2093
        %v2095 = vpop.f32.mrf.mxu0
        %v2096 = vpop.f32.mrf.mxu0
        %v2097 = vadd.f32 %v1944, %v2096
        %v2098 = vpop.f32.mrf.mxu0
        %2099 = vmatprep.mubr.bf16.mxu0 %v804
        %2100 = vmatmul.mubr.bf16.gmra.mxu0 %v789
        %v2101 = vpop.f32.mrf.mxu0
        %v2102 = vadd.f32 %v1949, %v2101
        %v2103 = vpop.f32.mrf.mxu0
        %v2104 = vpop.f32.mrf.mxu0
        %v2105 = vadd.f32 %v1952, %v2104
        %v2106 = vpop.f32.mrf.mxu0
        %2107 = vmatprep.mubr.bf16.mxu0 %v805
        %2108 = vmatmul.mubr.bf16.gmra.mxu0 %v790
        %v2109 = vpop.f32.mrf.mxu0
        %v2110 = vadd.f32 %v1957, %v2109
        %v2111 = vpop.f32.mrf.mxu0
        %v2112 = vpop.f32.mrf.mxu0
        %v2113 = vadd.f32 %v1960, %v2112
        %v2114 = vpop.f32.mrf.mxu0
        %2115 = vmatprep.mubr.bf16.mxu0 %v806
        %2116 = vmatmul.mubr.bf16.gmra.mxu0 %v791
        %v2117 = vpop.f32.mrf.mxu0
        %v2118 = vadd.f32 %v1965, %v2117
        %v2119 = vpop.f32.mrf.mxu0
        %v2120 = vpop.f32.mrf.mxu0
        %v2121 = vadd.f32 %v1968, %v2120
        %v2122 = vpop.f32.mrf.mxu0
        %2123 = vmatprep.mubr.bf16.mxu0 %v807
        %2124 = vmatmul.mubr.bf16.gmra.mxu0 %v792
        %v2125 = vpop.f32.mrf.mxu0
        %v2126 = vadd.f32 %v1973, %v2125
        %v2127 = vpop.f32.mrf.mxu0
        %v2128 = vpop.f32.mrf.mxu0
        %v2129 = vadd.f32 %v1976, %v2128
        %v2130 = vpop.f32.mrf.mxu0
        %2131 = vmatprep.mubr.bf16.mxu0 %v954
        %2132 = vmatmul.mubr.bf16.gmra.mxu0 %v951
        %v2133 = vpop.f32.mrf.mxu0
        %v2134 = vadd.f32 %v1981, %v2133
        %v2135 = vpop.f32.mrf.mxu0
        %v2136 = vpop.f32.mrf.mxu0
        %v2137 = vadd.f32 %v1984, %v2136
        %v2138 = vpop.f32.mrf.mxu0
        %2139 = vmatprep.mubr.bf16.mxu0 %v955
        %2140 = vmatmul.mubr.bf16.gmra.mxu0 %v952
        %v2141 = vpop.f32.mrf.mxu0
        %v2142 = vadd.f32 %v1989, %v2141
        %v2143 = vpop.f32.mrf.mxu0
        %v2144 = vpop.f32.mrf.mxu0
        %v2145 = vadd.f32 %v1992, %v2144
        %v2146 = vpop.f32.mrf.mxu0
        %2147 = vmatprep.mubr.bf16.mxu0 %v956
        %2148 = vmatmul.mubr.bf16.gmra.mxu0 %v953
        %v2149 = vpop.f32.mrf.mxu0
        %v2150 = vadd.f32 %v1997, %v2149
        %v2151 = vpop.f32.mrf.mxu0
        %v2152 = vpop.f32.mrf.mxu0
        %v2153 = vadd.f32 %v2000, %v2152
        %v2154 = vpop.f32.mrf.mxu0
        %2155 = vdwg.mxu0
        %2156 = vmatprep.subr.bf16.mxu0 0
        %2157 = vmatpush1.bf16.msra.mxu0 %v1471
        %2158 = vmatprep.subr.bf16.mxu0 0
        %2159 = vmatpush1.bf16.msra.mxu0 %v1470
        %2160 = vmatprep.subr.bf16.mxu0 0
        %2161 = vmatpush1.bf16.msra.mxu0 %v1469
        %2162 = vmatprep.subr.bf16.mxu0 0
        %2163 = vmatpush1.bf16.msra.mxu0 %v1468
        %2164 = vmatprep.subr.bf16.mxu0 0
        %2165 = vmatpush1.bf16.msra.mxu0 %v1467
        %2166 = vmatprep.subr.bf16.mxu0 0
        %2167 = vmatpush1.bf16.msra.mxu0 %v1466
        %2168 = vmatprep.subr.bf16.mxu0 0
        %2169 = vmatpush1.bf16.msra.mxu0 %v1465
        %2170 = vmatprep.subr.bf16.mxu0 0
        %2171 = vmatpush1.bf16.msra.mxu0 %v1464
        %2172 = vmatprep.subr.bf16.mxu0 0
        %2173 = vmatpush2.bf16.msra.mxu0 0
        %2174 = vmatprep.subr.bf16.mxu0 0
        %2175 = vmatpush2.bf16.msra.mxu0 0
        %2176 = vmatprep.subr.bf16.mxu0 0
        %2177 = vmatpush2.bf16.msra.mxu0 0
        %2178 = vmatprep.subr.bf16.mxu0 0
        %2179 = vmatpush2.bf16.msra.mxu0 0
        %2180 = vmatprep.subr.bf16.mxu0 0
        %2181 = vmatpush2.bf16.msra.mxu0 0
        %2182 = vmatprep.subr.bf16.mxu0 0
        %2183 = vmatpush2.bf16.msra.mxu0 0
        %2184 = vmatprep.subr.bf16.mxu0 0
        %2185 = vmatpush2.bf16.msra.mxu0 0
        %2186 = vmatprep.subr.bf16.mxu0 0
        %2187 = vmatpush2.bf16.msra.mxu0 0
        %2188 = vmatprep.mubr.bf16.mxu0 0
        %2189 = vmatmul.mubr.bf16.gmra.mxu0 %v872
        %v2190 = vpop.f32.mrf.mxu0
        %v2191 = vadd.f32 %v2038, %v2190
        %v2192 = vpop.f32.mrf.mxu0
        %v2193 = vpop.f32.mrf.mxu0
        %v2194 = vadd.f32 %v2041, %v2193
        %v2195 = vpop.f32.mrf.mxu0
        %2196 = vmatprep.mubr.bf16.mxu0 0
        %2197 = vmatmul.mubr.bf16.gmra.mxu0 %v873
        %v2198 = vpop.f32.mrf.mxu0
        %v2199 = vadd.f32 %v2046, %v2198
        %v2200 = vpop.f32.mrf.mxu0
        %v2201 = vpop.f32.mrf.mxu0
        %v2202 = vadd.f32 %v2049, %v2201
        %v2203 = vpop.f32.mrf.mxu0
        %2204 = vmatprep.mubr.bf16.mxu0 0
        %2205 = vmatmul.mubr.bf16.gmra.mxu0 %v874
        %v2206 = vpop.f32.mrf.mxu0
        %v2207 = vadd.f32 %v2054, %v2206
        %v2208 = vpop.f32.mrf.mxu0
        %v2209 = vpop.f32.mrf.mxu0
        %v2210 = vadd.f32 %v2057, %v2209
        %v2211 = vpop.f32.mrf.mxu0
        %2212 = vmatprep.mubr.bf16.mxu0 0
        %2213 = vmatmul.mubr.bf16.gmra.mxu0 %v875
        %v2214 = vpop.f32.mrf.mxu0
        %v2215 = vadd.f32 %v2062, %v2214
        %v2216 = vpop.f32.mrf.mxu0
        %v2217 = vpop.f32.mrf.mxu0
        %v2218 = vadd.f32 %v2065, %v2217
        %v2219 = vpop.f32.mrf.mxu0
        %2220 = vmatprep.mubr.bf16.mxu0 0
        %2221 = vmatmul.mubr.bf16.gmra.mxu0 %v876
        %v2222 = vpop.f32.mrf.mxu0
        %v2223 = vadd.f32 %v2070, %v2222
        %v2224 = vpop.f32.mrf.mxu0
        %v2225 = vpop.f32.mrf.mxu0
        %v2226 = vadd.f32 %v2073, %v2225
        %v2227 = vpop.f32.mrf.mxu0
        %2228 = vmatprep.mubr.bf16.mxu0 0
        %2229 = vmatmul.mubr.bf16.gmra.mxu0 %v877
        %v2230 = vpop.f32.mrf.mxu0
        %v2231 = vadd.f32 %v2078, %v2230
        %v2232 = vpop.f32.mrf.mxu0
        %v2233 = vpop.f32.mrf.mxu0
        %v2234 = vadd.f32 %v2081, %v2233
        %v2235 = vpop.f32.mrf.mxu0
        %2236 = vmatprep.mubr.bf16.mxu0 0
        %2237 = vmatmul.mubr.bf16.gmra.mxu0 %v878
        %v2238 = vpop.f32.mrf.mxu0
        %v2239 = vadd.f32 %v2086, %v2238
        %v2240 = vpop.f32.mrf.mxu0
        %v2241 = vpop.f32.mrf.mxu0
        %v2242 = vadd.f32 %v2089, %v2241
        %v2243 = vpop.f32.mrf.mxu0
        %2244 = vmatprep.mubr.bf16.mxu0 0
        %2245 = vmatmul.mubr.bf16.gmra.mxu0 %v879
        %v2246 = vpop.f32.mrf.mxu0
        %v2247 = vadd.f32 %v2094, %v2246
        %v2248 = vpop.f32.mrf.mxu0
        %v2249 = vpop.f32.mrf.mxu0
        %v2250 = vadd.f32 %v2097, %v2249
        %v2251 = vpop.f32.mrf.mxu0
        %2252 = vmatprep.mubr.bf16.mxu0 0
        %2253 = vmatmul.mubr.bf16.gmra.mxu0 %v880
        %v2254 = vpop.f32.mrf.mxu0
        %v2255 = vadd.f32 %v2102, %v2254
        %v2256 = vpop.f32.mrf.mxu0
        %v2257 = vpop.f32.mrf.mxu0
        %v2258 = vadd.f32 %v2105, %v2257
        %v2259 = vpop.f32.mrf.mxu0
        %2260 = vmatprep.mubr.bf16.mxu0 0
        %2261 = vmatmul.mubr.bf16.gmra.mxu0 %v881
        %v2262 = vpop.f32.mrf.mxu0
        %v2263 = vadd.f32 %v2110, %v2262
        %v2264 = vpop.f32.mrf.mxu0
        %v2265 = vpop.f32.mrf.mxu0
        %v2266 = vadd.f32 %v2113, %v2265
        %v2267 = vpop.f32.mrf.mxu0
        %2268 = vmatprep.mubr.bf16.mxu0 0
        %2269 = vmatmul.mubr.bf16.gmra.mxu0 %v882
        %v2270 = vpop.f32.mrf.mxu0
        %v2271 = vadd.f32 %v2118, %v2270
        %v2272 = vpop.f32.mrf.mxu0
        %v2273 = vpop.f32.mrf.mxu0
        %v2274 = vadd.f32 %v2121, %v2273
        %v2275 = vpop.f32.mrf.mxu0
        %2276 = vmatprep.mubr.bf16.mxu0 0
        %2277 = vmatmul.mubr.bf16.gmra.mxu0 %v964
        %v2278 = vpop.f32.mrf.mxu0
        %v2279 = vadd.f32 %v2126, %v2278
        %v2280 = vpop.f32.mrf.mxu0
        %v2281 = vpop.f32.mrf.mxu0
        %v2282 = vadd.f32 %v2129, %v2281
        %v2283 = vpop.f32.mrf.mxu0
        %2284 = vmatprep.mubr.bf16.mxu0 0
        %2285 = vmatmul.mubr.bf16.gmra.mxu0 %v965
        %v2286 = vpop.f32.mrf.mxu0
        %v2287 = vadd.f32 %v2134, %v2286
        %v2288 = vpop.f32.mrf.mxu0
        %v2289 = vpop.f32.mrf.mxu0
        %v2290 = vadd.f32 %v2137, %v2289
        %v2291 = vpop.f32.mrf.mxu0
        %2292 = vmatprep.mubr.bf16.mxu0 0
        %2293 = vmatmul.mubr.bf16.gmra.mxu0 %v966
        %v2294 = vpop.f32.mrf.mxu0
        %v2295 = vadd.f32 %v2142, %v2294
        %v2296 = vpop.f32.mrf.mxu0
        %v2297 = vpop.f32.mrf.mxu0
        %v2298 = vadd.f32 %v2145, %v2297
        %v2299 = vpop.f32.mrf.mxu0
        %2300 = vmatprep.mubr.bf16.mxu0 0
        %2301 = vmatmul.mubr.bf16.gmra.mxu0 %v967
        %v2302 = vpop.f32.mrf.mxu0
        %v2303 = vadd.f32 %v2150, %v2302
        %v2304 = vpop.f32.mrf.mxu0
        %v2305 = vpop.f32.mrf.mxu0
        %v2306 = vadd.f32 %v2153, %v2305
        %v2307 = vpop.f32.mrf.mxu0
        %2308 = vdwg.mxu0
        %v2309 = vmin.f32 %v2191, 20.0
        %v2310 = vmin.f32 %v2194, 20.0
        %v2311 = vmin.f32 %v2199, 20.0
        %v2312 = vmin.f32 %v2202, 20.0
        %v2313 = vmin.f32 %v2207, 20.0
        %v2314 = vmin.f32 %v2210, 20.0
        %v2315 = vmin.f32 %v2215, 20.0
        %v2316 = vmin.f32 %v2218, 20.0
        %v2317 = vmin.f32 %v2223, 20.0
        %v2318 = vmin.f32 %v2226, 20.0
        %v2319 = vmin.f32 %v2231, 20.0
        %v2320 = vmin.f32 %v2234, 20.0
        %v2321 = vmin.f32 %v2239, 20.0
        %v2322 = vmin.f32 %v2242, 20.0
        %v2323 = vmin.f32 %v2247, 20.0
        %v2324 = vmin.f32 %v2250, 20.0
        %v2325 = vmin.f32 %v2255, 20.0
        %v2326 = vmin.f32 %v2258, 20.0
        %v2327 = vmin.f32 %v2263, 20.0
        %v2328 = vmin.f32 %v2266, 20.0
        %v2329 = vmin.f32 %v2271, 20.0
        %v2330 = vmin.f32 %v2274, 20.0
        %v2331 = vmin.f32 %v2279, 20.0
        %v2332 = vmin.f32 %v2282, 20.0
        %v2333 = vmin.f32 %v2287, 20.0
        %v2334 = vmin.f32 %v2290, 20.0
        %v2335 = vmin.f32 %v2295, 20.0
        %v2336 = vmin.f32 %v2298, 20.0
        %v2337 = vmin.f32 %v2303, 20.0
        %v2338 = vmin.f32 %v2306, 20.0
        %v2339 = vmul.f32 %v2309, 1.442695
        %v2340 = vpow.pop %v2339
        %v2341 = vmul.f32 %v2310, 1.442695
        %v2342 = vpow.pop %v2341
        %v2343 = vmul.f32 %v2311, 1.442695
        %v2344 = vpow.pop %v2343
        %v2345 = vmul.f32 %v2312, 1.442695
        %v2346 = vpow.pop %v2345
        %v2347 = vmul.f32 %v2313, 1.442695
        %v2348 = vpow.pop %v2347
        %v2349 = vmul.f32 %v2314, 1.442695
        %v2350 = vpow.pop %v2349
        %v2351 = vmul.f32 %v2315, 1.442695
        %v2352 = vpow.pop %v2351
        %v2353 = vmul.f32 %v2316, 1.442695
        %v2354 = vpow.pop %v2353
        %v2355 = vmul.f32 %v2317, 1.442695
        %v2356 = vpow.pop %v2355
        %v2357 = vmul.f32 %v2318, 1.442695
        %v2358 = vpow.pop %v2357
        %v2359 = vmul.f32 %v2319, 1.442695
        %v2360 = vpow.pop %v2359
        %v2361 = vmul.f32 %v2320, 1.442695
        %v2362 = vpow.pop %v2361
        %v2363 = vmul.f32 %v2321, 1.442695
        %v2364 = vpow.pop %v2363
        %v2365 = vmul.f32 %v2322, 1.442695
        %v2366 = vpow.pop %v2365
        %v2367 = vmul.f32 %v2323, 1.442695
        %v2368 = vpow.pop %v2367
        %v2369 = vmul.f32 %v2324, 1.442695
        %v2370 = vpow.pop %v2369
        %v2371 = vmul.f32 %v2325, 1.442695
        %v2372 = vpow.pop %v2371
        %v2373 = vmul.f32 %v2326, 1.442695
        %v2374 = vpow.pop %v2373
        %v2375 = vmul.f32 %v2327, 1.442695
        %v2376 = vpow.pop %v2375
        %v2377 = vmul.f32 %v2328, 1.442695
        %v2378 = vpow.pop %v2377
        %v2379 = vmul.f32 %v2329, 1.442695
        %v2380 = vpow.pop %v2379
        %v2381 = vmul.f32 %v2330, 1.442695
        %v2382 = vpow.pop %v2381
        %v2383 = vmul.f32 %v2331, 1.442695
        %v2384 = vpow.pop %v2383
        %v2385 = vmul.f32 %v2332, 1.442695
        %v2386 = vpow.pop %v2385
        %v2387 = vmul.f32 %v2333, 1.442695
        %v2388 = vpow.pop %v2387
        %v2389 = vmul.f32 %v2334, 1.442695
        %v2390 = vpow.pop %v2389
        %v2391 = vmul.f32 %v2335, 1.442695
        %v2392 = vpow.pop %v2391
        %v2393 = vmul.f32 %v2336, 1.442695
        %v2394 = vpow.pop %v2393
        %v2395 = vmul.f32 %v2337, 1.442695
        %v2396 = vpow.pop %v2395
        %v2397 = vmul.f32 %v2338, 1.442695
        %v2398 = vpow.pop %v2397
        %v2399 = vadd.f32 %v2340, 1.0
        %v2400 = vadd.f32 %v2342, 1.0
        %v2401 = vadd.f32 %v2344, 1.0
        %v2402 = vadd.f32 %v2346, 1.0
        %v2403 = vadd.f32 %v2348, 1.0
        %v2404 = vadd.f32 %v2350, 1.0
        %v2405 = vadd.f32 %v2352, 1.0
        %v2406 = vadd.f32 %v2354, 1.0
        %v2407 = vadd.f32 %v2356, 1.0
        %v2408 = vadd.f32 %v2358, 1.0
        %v2409 = vadd.f32 %v2360, 1.0
        %v2410 = vadd.f32 %v2362, 1.0
        %v2411 = vadd.f32 %v2364, 1.0
        %v2412 = vadd.f32 %v2366, 1.0
        %v2413 = vadd.f32 %v2368, 1.0
        %v2414 = vadd.f32 %v2370, 1.0
        %v2415 = vadd.f32 %v2372, 1.0
        %v2416 = vadd.f32 %v2374, 1.0
        %v2417 = vadd.f32 %v2376, 1.0
        %v2418 = vadd.f32 %v2378, 1.0
        %v2419 = vadd.f32 %v2380, 1.0
        %v2420 = vadd.f32 %v2382, 1.0
        %v2421 = vadd.f32 %v2384, 1.0
        %v2422 = vadd.f32 %v2386, 1.0
        %v2423 = vadd.f32 %v2388, 1.0
        %v2424 = vadd.f32 %v2390, 1.0
        %v2425 = vadd.f32 %v2392, 1.0
        %v2426 = vadd.f32 %v2394, 1.0
        %v2427 = vadd.f32 %v2396, 1.0
        %v2428 = vadd.f32 %v2398, 1.0
        %v2429 = vmul.f32 %v2399, %v2399
        %v2430 = vmul.f32 %v2400, %v2400
        %v2431 = vmul.f32 %v2401, %v2401
        %v2432 = vmul.f32 %v2402, %v2402
        %v2433 = vmul.f32 %v2403, %v2403
        %v2434 = vmul.f32 %v2404, %v2404
        %v2435 = vmul.f32 %v2405, %v2405
        %v2436 = vmul.f32 %v2406, %v2406
        %v2437 = vmul.f32 %v2407, %v2407
        %v2438 = vmul.f32 %v2408, %v2408
        %v2439 = vmul.f32 %v2409, %v2409
        %v2440 = vmul.f32 %v2410, %v2410
        %v2441 = vmul.f32 %v2411, %v2411
        %v2442 = vmul.f32 %v2412, %v2412
        %v2443 = vmul.f32 %v2413, %v2413
        %v2444 = vmul.f32 %v2414, %v2414
        %v2445 = vmul.f32 %v2415, %v2415
        %v2446 = vmul.f32 %v2416, %v2416
        %v2447 = vmul.f32 %v2417, %v2417
        %v2448 = vmul.f32 %v2418, %v2418
        %v2449 = vmul.f32 %v2419, %v2419
        %v2450 = vmul.f32 %v2420, %v2420
        %v2451 = vmul.f32 %v2421, %v2421
        %v2452 = vmul.f32 %v2422, %v2422
        %v2453 = vmul.f32 %v2423, %v2423
        %v2454 = vmul.f32 %v2424, %v2424
        %v2455 = vmul.f32 %v2425, %v2425
        %v2456 = vmul.f32 %v2426, %v2426
        %v2457 = vmul.f32 %v2427, %v2427
        %v2458 = vmul.f32 %v2428, %v2428
        %v2459 = vsub.f32 %v2429, 1.0
        %v2460 = vsub.f32 %v2430, 1.0
        %v2461 = vsub.f32 %v2431, 1.0
        %v2462 = vsub.f32 %v2432, 1.0
        %v2463 = vsub.f32 %v2433, 1.0
        %v2464 = vsub.f32 %v2434, 1.0
        %v2465 = vsub.f32 %v2435, 1.0
        %v2466 = vsub.f32 %v2436, 1.0
        %v2467 = vsub.f32 %v2437, 1.0
        %v2468 = vsub.f32 %v2438, 1.0
        %v2469 = vsub.f32 %v2439, 1.0
        %v2470 = vsub.f32 %v2440, 1.0
        %v2471 = vsub.f32 %v2441, 1.0
        %v2472 = vsub.f32 %v2442, 1.0
        %v2473 = vsub.f32 %v2443, 1.0
        %v2474 = vsub.f32 %v2444, 1.0
        %v2475 = vsub.f32 %v2445, 1.0
        %v2476 = vsub.f32 %v2446, 1.0
        %v2477 = vsub.f32 %v2447, 1.0
        %v2478 = vsub.f32 %v2448, 1.0
        %v2479 = vsub.f32 %v2449, 1.0
        %v2480 = vsub.f32 %v2450, 1.0
        %v2481 = vsub.f32 %v2451, 1.0
        %v2482 = vsub.f32 %v2452, 1.0
        %v2483 = vsub.f32 %v2453, 1.0
        %v2484 = vsub.f32 %v2454, 1.0
        %v2485 = vsub.f32 %v2455, 1.0
        %v2486 = vsub.f32 %v2456, 1.0
        %v2487 = vsub.f32 %v2457, 1.0
        %v2488 = vsub.f32 %v2458, 1.0
        %v2489 = vmul.f32 %v2191, %v2459
        %v2490 = vmul.f32 %v2194, %v2460
        %v2491 = vmul.f32 %v2199, %v2461
        %v2492 = vmul.f32 %v2202, %v2462
        %v2493 = vmul.f32 %v2207, %v2463
        %v2494 = vmul.f32 %v2210, %v2464
        %v2495 = vmul.f32 %v2215, %v2465
        %v2496 = vmul.f32 %v2218, %v2466
        %v2497 = vmul.f32 %v2223, %v2467
        %v2498 = vmul.f32 %v2226, %v2468
        %v2499 = vmul.f32 %v2231, %v2469
        %v2500 = vmul.f32 %v2234, %v2470
        %v2501 = vmul.f32 %v2239, %v2471
        %v2502 = vmul.f32 %v2242, %v2472
        %v2503 = vmul.f32 %v2247, %v2473
        %v2504 = vmul.f32 %v2250, %v2474
        %v2505 = vmul.f32 %v2255, %v2475
        %v2506 = vmul.f32 %v2258, %v2476
        %v2507 = vmul.f32 %v2263, %v2477
        %v2508 = vmul.f32 %v2266, %v2478
        %v2509 = vmul.f32 %v2271, %v2479
        %v2510 = vmul.f32 %v2274, %v2480
        %v2511 = vmul.f32 %v2279, %v2481
        %v2512 = vmul.f32 %v2282, %v2482
        %v2513 = vmul.f32 %v2287, %v2483
        %v2514 = vmul.f32 %v2290, %v2484
        %v2515 = vmul.f32 %v2295, %v2485
        %v2516 = vmul.f32 %v2298, %v2486
        %v2517 = vmul.f32 %v2303, %v2487
        %v2518 = vmul.f32 %v2306, %v2488
        %v2519 = vadd.f32 %v2429, 1.0
        %v2520 = vadd.f32 %v2430, 1.0
        %v2521 = vadd.f32 %v2431, 1.0
        %v2522 = vadd.f32 %v2432, 1.0
        %v2523 = vadd.f32 %v2433, 1.0
        %v2524 = vadd.f32 %v2434, 1.0
        %v2525 = vadd.f32 %v2435, 1.0
        %v2526 = vadd.f32 %v2436, 1.0
        %v2527 = vadd.f32 %v2437, 1.0
        %v2528 = vadd.f32 %v2438, 1.0
        %v2529 = vadd.f32 %v2439, 1.0
        %v2530 = vadd.f32 %v2440, 1.0
        %v2531 = vadd.f32 %v2441, 1.0
        %v2532 = vadd.f32 %v2442, 1.0
        %v2533 = vadd.f32 %v2443, 1.0
        %v2534 = vadd.f32 %v2444, 1.0
        %v2535 = vadd.f32 %v2445, 1.0
        %v2536 = vadd.f32 %v2446, 1.0
        %v2537 = vadd.f32 %v2447, 1.0
        %v2538 = vadd.f32 %v2448, 1.0
        %v2539 = vadd.f32 %v2449, 1.0
        %v2540 = vadd.f32 %v2450, 1.0
        %v2541 = vadd.f32 %v2451, 1.0
        %v2542 = vadd.f32 %v2452, 1.0
        %v2543 = vadd.f32 %v2453, 1.0
        %v2544 = vadd.f32 %v2454, 1.0
        %v2545 = vadd.f32 %v2455, 1.0
        %v2546 = vadd.f32 %v2456, 1.0
        %v2547 = vadd.f32 %v2457, 1.0
        %v2548 = vadd.f32 %v2458, 1.0
        %v2549 = vrcp.pop %v2519
        %v2550 = vrcp.pop %v2520
        %v2551 = vrcp.pop %v2521
        %v2552 = vrcp.pop %v2522
        %v2553 = vrcp.pop %v2523
        %v2554 = vrcp.pop %v2524
        %v2555 = vrcp.pop %v2525
        %v2556 = vrcp.pop %v2526
        %v2557 = vrcp.pop %v2527
        %v2558 = vrcp.pop %v2528
        %v2559 = vrcp.pop %v2529
        %v2560 = vrcp.pop %v2530
        %v2561 = vrcp.pop %v2531
        %v2562 = vrcp.pop %v2532
        %v2563 = vrcp.pop %v2533
        %v2564 = vrcp.pop %v2534
        %v2565 = vrcp.pop %v2535
        %v2566 = vrcp.pop %v2536
        %v2567 = vrcp.pop %v2537
        %v2568 = vrcp.pop %v2538
        %v2569 = vrcp.pop %v2539
        %v2570 = vrcp.pop %v2540
        %v2571 = vrcp.pop %v2541
        %v2572 = vrcp.pop %v2542
        %v2573 = vrcp.pop %v2543
        %v2574 = vrcp.pop %v2544
        %v2575 = vrcp.pop %v2545
        %v2576 = vrcp.pop %v2546
        %v2577 = vrcp.pop %v2547
        %v2578 = vrcp.pop %v2548
        %v2579 = vmul.f32 %v2489, %v2549
        %v2580 = vmul.f32 %v2490, %v2550
        %v2581 = vmul.f32 %v2491, %v2551
        %v2582 = vmul.f32 %v2492, %v2552
        %v2583 = vmul.f32 %v2493, %v2553
        %v2584 = vmul.f32 %v2494, %v2554
        %v2585 = vmul.f32 %v2495, %v2555
        %v2586 = vmul.f32 %v2496, %v2556
        %v2587 = vmul.f32 %v2497, %v2557
        %v2588 = vmul.f32 %v2498, %v2558
        %v2589 = vmul.f32 %v2499, %v2559
        %v2590 = vmul.f32 %v2500, %v2560
        %v2591 = vmul.f32 %v2501, %v2561
        %v2592 = vmul.f32 %v2502, %v2562
        %v2593 = vmul.f32 %v2503, %v2563
        %v2594 = vmul.f32 %v2504, %v2564
        %v2595 = vmul.f32 %v2505, %v2565
        %v2596 = vmul.f32 %v2506, %v2566
        %v2597 = vmul.f32 %v2507, %v2567
        %v2598 = vmul.f32 %v2508, %v2568
        %v2599 = vmul.f32 %v2509, %v2569
        %v2600 = vmul.f32 %v2510, %v2570
        %v2601 = vmul.f32 %v2511, %v2571
        %v2602 = vmul.f32 %v2512, %v2572
        %v2603 = vmul.f32 %v2513, %v2573
        %v2604 = vmul.f32 %v2514, %v2574
        %v2605 = vmul.f32 %v2515, %v2575
        %v2606 = vmul.f32 %v2516, %v2576
        %v2607 = vmul.f32 %v2517, %v2577
        %v2608 = vmul.f32 %v2518, %v2578
        %2609 = vst [vmem:[#allocation3] sm:$0xff] %v2579
        %2610 = vst [vmem:[#allocation3 + $0x8] sm:$0xff] %v2580
        %2611 = vst [vmem:[#allocation3 + $0x10] sm:$0xff] %v2581
        %2612 = vst [vmem:[#allocation3 + $0x18] sm:$0xff] %v2582
        %2613 = vst [vmem:[#allocation3 + $0x20] sm:$0xff] %v2583
        %2614 = vst [vmem:[#allocation3 + $0x28] sm:$0xff] %v2584
        %2615 = vst [vmem:[#allocation3 + $0x30] sm:$0xff] %v2585
        %2616 = vst [vmem:[#allocation3 + $0x38] sm:$0xff] %v2586
        %2617 = vst [vmem:[#allocation3 + $0x40] sm:$0xff] %v2587
        %2618 = vst [vmem:[#allocation3 + $0x48] sm:$0xff] %v2588
        %2619 = vst [vmem:[#allocation3 + $0x50] sm:$0xff] %v2589
        %2620 = vst [vmem:[#allocation3 + $0x58] sm:$0xff] %v2590
        %2621 = vst [vmem:[#allocation3 + $0x60] sm:$0xff] %v2591
        %2622 = vst [vmem:[#allocation3 + $0x68] sm:$0xff] %v2592
        %2623 = vst [vmem:[#allocation3 + $0x70] sm:$0xff] %v2593
        %2624 = vst [vmem:[#allocation3 + $0x78] sm:$0xff] %v2594
        %2625 = vst [vmem:[#allocation3 + $0x80] sm:$0xff] %v2595
        %2626 = vst [vmem:[#allocation3 + $0x88] sm:$0xff] %v2596
        %2627 = vst [vmem:[#allocation3 + $0x90] sm:$0xff] %v2597
        %2628 = vst [vmem:[#allocation3 + $0x98] sm:$0xff] %v2598
        %2629 = vst [vmem:[#allocation3 + $0xa0] sm:$0xff] %v2599
        %2630 = vst [vmem:[#allocation3 + $0xa8] sm:$0xff] %v2600
        %2631 = vst [vmem:[#allocation3 + $0xb0] sm:$0xff] %v2601
        %2632 = vst [vmem:[#allocation3 + $0xb8] sm:$0xff] %v2602
        %2633 = vst [vmem:[#allocation3 + $0xc0] sm:$0xff] %v2603
        %2634 = vst [vmem:[#allocation3 + $0xc8] sm:$0xff] %v2604
        %2635 = vst [vmem:[#allocation3 + $0xd0] sm:$0xff] %v2605
        %2636 = vst [vmem:[#allocation3 + $0xd8] sm:$0xff] %v2606
        %2637 = vst [vmem:[#allocation3 + $0xe0] sm:$0xff] %v2607
        %2638 = vst [vmem:[#allocation3 + $0xe8] sm:$0xff] %v2608
        // Predicated region
        $region61: #{tpu_custom_call.1} parent=31 // pred_check
          %p2639 = pneg %p223
        $region62: #{tpu_custom_call.1} parent=31 // pred_check_branch
          %2641 = sbr.rel (%p2639) target = $region64
        $region63: #{tpu_custom_call.1} parent=31 // pred_region
          %s2642 = scalar_lea.vmem [#allocation3], 48
          %v2643 = vld [vmem:[%s2642] sm:$0xff]
          %v2644 = vld [vmem:[%s2642 + $0x8] sm:$0xff]
          %v2645 = vld [vmem:[%s2642 + $0x10] sm:$0xff]
          %2646 = vst [vmem:[#allocation3] sm:$0xff] %v2643
          %2647 = vst [vmem:[#allocation3 + $0x8] sm:$0xff] %v2644
          %2648 = vst [vmem:[#allocation3 + $0x10] sm:$0xff] %v2645
        $region64: #{tpu_custom_call.1} parent=31 // pred_fallthru
          _
        %p2649 = scmp.eq.s32.totalorder %s25, 1
        // Predicated region
        $region65: #{tpu_custom_call.1} parent=31 // pred_check
          %p2650 = pneg %p2649
        $region66: #{tpu_custom_call.1} parent=31 // pred_check_branch
          %2652 = sbr.rel (%p2650) target = $region68
        $region67: #{tpu_custom_call.1} parent=31 // pred_region
          %s2653 = scalar_lea.vmem [#allocation3], 168
          %v2654 = vld [vmem:[%s2653] sm:$0xff]
          %v2655 = vld [vmem:[%s2653 + $0x8] sm:$0xff]
          %v2656 = vld [vmem:[%s2653 + $0x10] sm:$0xff]
          %s2657 = scalar_lea.vmem [#allocation3], 216
          %2658 = vst [vmem:[%s2657] sm:$0xff] %v2654
          %2659 = vst [vmem:[%s2657 + $0x8] sm:$0xff] %v2655
          %2660 = vst [vmem:[%s2657 + $0x10] sm:$0xff] %v2656
        $region68: #{tpu_custom_call.1} parent=31 // pred_fallthru
          _
        %v2661 = vld [vmem:[#allocation3 + $0x2] sm:$0x1]
        %v2662 = vld [vmem:[#allocation3 + $0x1a] sm:$0x1]
        %v2663 = vld [vmem:[#allocation3 + $0x32] sm:$0x1]
        %v2664 = vld [vmem:[#allocation3 + $0x4a] sm:$0x1]
        %v2665 = vld [vmem:[#allocation3 + $0x62] sm:$0x1]
        %v2666 = vld [vmem:[#allocation3 + $0x7a] sm:$0x1]
        %v2667 = vld [vmem:[#allocation3 + $0x92] sm:$0x1]
        %v2668 = vld [vmem:[#allocation3 + $0xaa] sm:$0x1]
        %v2669 = vld [vmem:[#allocation3 + $0xc2] sm:$0x1]
        %v2670 = vld [vmem:[#allocation3 + $0xda] sm:$0x1]
        %2671 = vst [vmem:[#allocation3] sm:$0x1] %v2661
        %2672 = vst [vmem:[#allocation3 + $0x18] sm:$0x1] %v2662
        %2673 = vst [vmem:[#allocation3 + $0x30] sm:$0x1] %v2663
        %2674 = vst [vmem:[#allocation3 + $0x48] sm:$0x1] %v2664
        %2675 = vst [vmem:[#allocation3 + $0x60] sm:$0x1] %v2665
        %2676 = vst [vmem:[#allocation3 + $0x78] sm:$0x1] %v2666
        %2677 = vst [vmem:[#allocation3 + $0x90] sm:$0x1] %v2667
        %2678 = vst [vmem:[#allocation3 + $0xa8] sm:$0x1] %v2668
        %2679 = vst [vmem:[#allocation3 + $0xc0] sm:$0x1] %v2669
        %2680 = vst [vmem:[#allocation3 + $0xd8] sm:$0x1] %v2670
        %v2681 = vld [vmem:[#allocation3 + $0xf] sm:$0x1]
        %v2682 = vld [vmem:[#allocation3 + $0x27] sm:$0x1]
        %v2683 = vld [vmem:[#allocation3 + $0x3f] sm:$0x1]
        %v2684 = vld [vmem:[#allocation3 + $0x57] sm:$0x1]
        %v2685 = vld [vmem:[#allocation3 + $0x6f] sm:$0x1]
        %v2686 = vld [vmem:[#allocation3 + $0x87] sm:$0x1]
        %v2687 = vld [vmem:[#allocation3 + $0x9f] sm:$0x1]
        %v2688 = vld [vmem:[#allocation3 + $0xb7] sm:$0x1]
        %v2689 = vld [vmem:[#allocation3 + $0xcf] sm:$0x1]
        %v2690 = vld [vmem:[#allocation3 + $0xe7] sm:$0x1]
        %2691 = vst [vmem:[#allocation3 + $0x11] sm:$0x1] %v2681
        %2692 = vst [vmem:[#allocation3 + $0x29] sm:$0x1] %v2682
        %2693 = vst [vmem:[#allocation3 + $0x41] sm:$0x1] %v2683
        %2694 = vst [vmem:[#allocation3 + $0x59] sm:$0x1] %v2684
        %2695 = vst [vmem:[#allocation3 + $0x71] sm:$0x1] %v2685
        %2696 = vst [vmem:[#allocation3 + $0x89] sm:$0x1] %v2686
        %2697 = vst [vmem:[#allocation3 + $0xa1] sm:$0x1] %v2687
        %2698 = vst [vmem:[#allocation3 + $0xb9] sm:$0x1] %v2688
        %2699 = vst [vmem:[#allocation3 + $0xd1] sm:$0x1] %v2689
        %2700 = vst [vmem:[#allocation3 + $0xe9] sm:$0x1] %v2690
        %v2701 = vld [vmem:[#allocation3] sm:$0xff]
        %v2702 = vld [vmem:[#allocation3 + $0x8] sm:$0xff]
        %v2703 = vld [vmem:[#allocation3 + $0x10] sm:$0xff]
        %v2704 = vld [vmem:[#allocation3 + $0x18] sm:$0xff]
        %v2705 = vld [vmem:[#allocation3 + $0x20] sm:$0xff]
        %v2706 = vld [vmem:[#allocation3 + $0x28] sm:$0xff]
        %v2707 = vld [vmem:[#allocation3 + $0x30] sm:$0xff]
        %v2708 = vld [vmem:[#allocation3 + $0x38] sm:$0xff]
        %v2709 = vld [vmem:[#allocation3 + $0x40] sm:$0xff]
        %v2710 = vld [vmem:[#allocation3 + $0x48] sm:$0xff]
        %v2711 = vld [vmem:[#allocation3 + $0x50] sm:$0xff]
        %v2712 = vld [vmem:[#allocation3 + $0x58] sm:$0xff]
        %v2713 = vld [vmem:[#allocation3 + $0x60] sm:$0xff]
        %v2714 = vld [vmem:[#allocation3 + $0x68] sm:$0xff]
        %v2715 = vld [vmem:[#allocation3 + $0x70] sm:$0xff]
        %v2716 = vld [vmem:[#allocation3 + $0x78] sm:$0xff]
        %v2717 = vld [vmem:[#allocation3 + $0x80] sm:$0xff]
        %v2718 = vld [vmem:[#allocation3 + $0x88] sm:$0xff]
        %v2719 = vld [vmem:[#allocation3 + $0x90] sm:$0xff]
        %v2720 = vld [vmem:[#allocation3 + $0x98] sm:$0xff]
        %v2721 = vld [vmem:[#allocation3 + $0xa0] sm:$0xff]
        %v2722 = vld [vmem:[#allocation3 + $0xa8] sm:$0xff]
        %v2723 = vld [vmem:[#allocation3 + $0xb0] sm:$0xff]
        %v2724 = vld [vmem:[#allocation3 + $0xb8] sm:$0xff]
        %v2725 = vld [vmem:[#allocation3 + $0xc0] sm:$0xff]
        %v2726 = vld [vmem:[#allocation3 + $0xc8] sm:$0xff]
        %v2727 = vld [vmem:[#allocation3 + $0xd0] sm:$0xff]
        %v2728 = vld [vmem:[#allocation3 + $0xd8] sm:$0xff]
        %v2729 = vld [vmem:[#allocation3 + $0xe0] sm:$0xff]
        %v2730 = vld [vmem:[#allocation3 + $0xe8] sm:$0xff]
        %v2731 = vrot.slane %v2701, 7
        %v2732 = vrot.slane %v2702, 7
        %v2733 = vrot.slane %v2703, 7
        %v2734 = vrot.slane %v2704, 7
        %v2735 = vrot.slane %v2705, 7
        %v2736 = vrot.slane %v2706, 7
        %v2737 = vrot.slane %v2707, 7
        %v2738 = vrot.slane %v2708, 7
        %v2739 = vrot.slane %v2709, 7
        %v2740 = vrot.slane %v2710, 7
        %v2741 = vrot.slane %v2711, 7
        %v2742 = vrot.slane %v2712, 7
        %v2743 = vrot.slane %v2713, 7
        %v2744 = vrot.slane %v2714, 7
        %v2745 = vrot.slane %v2715, 7
        %v2746 = vrot.slane %v2716, 7
        %v2747 = vrot.slane %v2717, 7
        %v2748 = vrot.slane %v2718, 7
        %v2749 = vrot.slane %v2719, 7
        %v2750 = vrot.slane %v2720, 7
        %v2751 = vrot.slane %v2721, 7
        %v2752 = vrot.slane %v2722, 7
        %v2753 = vrot.slane %v2723, 7
        %v2754 = vrot.slane %v2724, 7
        %v2755 = vsel %vm747, %v2753, %v2754
        %v2756 = vsel %vm747, %v2752, %v2753
        %v2757 = vsel %vm747, %v2751, %v2752
        %v2758 = vsel %vm747, %v2750, %v2751
        %v2759 = vsel %vm747, %v2749, %v2750
        %v2760 = vsel %vm747, %v2748, %v2749
        %v2761 = vsel %vm747, %v2747, %v2748
        %v2762 = vsel %vm747, %v2746, %v2747
        %v2763 = vsel %vm747, %v2745, %v2746
        %v2764 = vsel %vm747, %v2744, %v2745
        %v2765 = vsel %vm747, %v2743, %v2744
        %v2766 = vsel %vm747, %v2742, %v2743
        %v2767 = vsel %vm747, %v2741, %v2742
        %v2768 = vsel %vm747, %v2740, %v2741
        %v2769 = vsel %vm747, %v2739, %v2740
        %v2770 = vsel %vm747, %v2738, %v2739
        %v2771 = vsel %vm747, %v2737, %v2738
        %v2772 = vsel %vm747, %v2736, %v2737
        %v2773 = vsel %vm747, %v2735, %v2736
        %v2774 = vsel %vm747, %v2734, %v2735
        %v2775 = vsel %vm747, %v2733, %v2734
        %v2776 = vsel %vm747, %v2732, %v2733
        %v2777 = vsel %vm747, %v2731, %v2732
        %v2778 = vsel %vm747, %v2754, %v2731
        %v2779 = vpack.c.bf16 %v2777, %v2778
        %v2780 = vpack.c.bf16 %v2775, %v2776
        %v2781 = vpack.c.bf16 %v2773, %v2774
        %v2782 = vpack.c.bf16 %v2771, %v2772
        %v2783 = vpack.c.bf16 %v2769, %v2770
        %v2784 = vpack.c.bf16 %v2767, %v2768
        %v2785 = vpack.c.bf16 %v2765, %v2766
        %v2786 = vpack.c.bf16 %v2763, %v2764
        %v2787 = vpack.c.bf16 %v2761, %v2762
        %v2788 = vpack.c.bf16 %v2759, %v2760
        %v2789 = vpack.c.bf16 %v2757, %v2758
        %v2790 = vpack.c.bf16 %v2755, %v2756
        %v2791 = vpack.c.bf16 %v2702, %v2701
        %v2792 = vpack.c.bf16 %v2704, %v2703
        %v2793 = vpack.c.bf16 %v2706, %v2705
        %v2794 = vpack.c.bf16 %v2708, %v2707
        %v2795 = vpack.c.bf16 %v2710, %v2709
        %v2796 = vpack.c.bf16 %v2712, %v2711
        %v2797 = vpack.c.bf16 %v2714, %v2713
        %v2798 = vpack.c.bf16 %v2716, %v2715
        %v2799 = vpack.c.bf16 %v2718, %v2717
        %v2800 = vpack.c.bf16 %v2720, %v2719
        %v2801 = vpack.c.bf16 %v2722, %v2721
        %v2802 = vpack.c.bf16 %v2724, %v2723
        %v2803 = vrot.slane %v2701, 1
        %v2804 = vrot.slane %v2702, 1
        %v2805 = vrot.slane %v2703, 1
        %v2806 = vrot.slane %v2704, 1
        %v2807 = vrot.slane %v2705, 1
        %v2808 = vrot.slane %v2706, 1
        %v2809 = vrot.slane %v2707, 1
        %v2810 = vrot.slane %v2708, 1
        %v2811 = vrot.slane %v2709, 1
        %v2812 = vrot.slane %v2710, 1
        %v2813 = vrot.slane %v2711, 1
        %v2814 = vrot.slane %v2712, 1
        %v2815 = vrot.slane %v2713, 1
        %v2816 = vrot.slane %v2714, 1
        %v2817 = vrot.slane %v2715, 1
        %v2818 = vrot.slane %v2716, 1
        %v2819 = vrot.slane %v2717, 1
        %v2820 = vrot.slane %v2718, 1
        %v2821 = vrot.slane %v2719, 1
        %v2822 = vrot.slane %v2720, 1
        %v2823 = vrot.slane %v2721, 1
        %v2824 = vrot.slane %v2722, 1
        %v2825 = vrot.slane %v2723, 1
        %v2826 = vrot.slane %v2724, 1
        %v2827 = vsel %vm838, %v2825, %v2826
        %v2828 = vsel %vm838, %v2824, %v2825
        %v2829 = vsel %vm838, %v2823, %v2824
        %v2830 = vsel %vm838, %v2822, %v2823
        %v2831 = vsel %vm838, %v2821, %v2822
        %v2832 = vsel %vm838, %v2820, %v2821
        %v2833 = vsel %vm838, %v2819, %v2820
        %v2834 = vsel %vm838, %v2818, %v2819
        %v2835 = vsel %vm838, %v2817, %v2818
        %v2836 = vsel %vm838, %v2816, %v2817
        %v2837 = vsel %vm838, %v2815, %v2816
        %v2838 = vsel %vm838, %v2814, %v2815
        %v2839 = vsel %vm838, %v2813, %v2814
        %v2840 = vsel %vm838, %v2812, %v2813
        %v2841 = vsel %vm838, %v2811, %v2812
        %v2842 = vsel %vm838, %v2810, %v2811
        %v2843 = vsel %vm838, %v2809, %v2810
        %v2844 = vsel %vm838, %v2808, %v2809
        %v2845 = vsel %vm838, %v2807, %v2808
        %v2846 = vsel %vm838, %v2806, %v2807
        %v2847 = vsel %vm838, %v2805, %v2806
        %v2848 = vsel %vm838, %v2804, %v2805
        %v2849 = vsel %vm838, %v2803, %v2804
        %v2850 = vsel %vm838, %v2826, %v2803
        %v2851 = vpack.c.bf16 %v2848, %v2849
        %v2852 = vpack.c.bf16 %v2846, %v2847
        %v2853 = vpack.c.bf16 %v2844, %v2845
        %v2854 = vpack.c.bf16 %v2842, %v2843
        %v2855 = vpack.c.bf16 %v2840, %v2841
        %v2856 = vpack.c.bf16 %v2838, %v2839
        %v2857 = vpack.c.bf16 %v2836, %v2837
        %v2858 = vpack.c.bf16 %v2834, %v2835
        %v2859 = vpack.c.bf16 %v2832, %v2833
        %v2860 = vpack.c.bf16 %v2830, %v2831
        %v2861 = vpack.c.bf16 %v2828, %v2829
        %v2862 = vpack.c.bf16 %v2850, %v2827
        %v2863 = vrot.slane %v2725, 7
        %v2864 = vrot.slane %v2726, 7
        %v2865 = vrot.slane %v2727, 7
        %v2866 = vsel %vm747, %v2864, %v2865
        %v2867 = vsel %vm747, %v2863, %v2864
        %v2868 = vsel %vm747, %v2754, %v2863
        %v2869 = vsel %vm747, %v2865, %v2734
        %v2870 = vpack.c.bf16 %v2774, %v2869
        %v2871 = vpack.c.bf16 %v2772, %v2773
        %v2872 = vpack.c.bf16 %v2770, %v2771
        %v2873 = vpack.c.bf16 %v2768, %v2769
        %v2874 = vpack.c.bf16 %v2766, %v2767
        %v2875 = vpack.c.bf16 %v2764, %v2765
        %v2876 = vpack.c.bf16 %v2762, %v2763
        %v2877 = vpack.c.bf16 %v2760, %v2761
        %v2878 = vpack.c.bf16 %v2758, %v2759
        %v2879 = vpack.c.bf16 %v2756, %v2757
        %v2880 = vpack.c.bf16 %v2868, %v2755
        %v2881 = vpack.c.bf16 %v2866, %v2867
        %v2882 = vpack.c.bf16 %v2705, %v2704
        %v2883 = vpack.c.bf16 %v2707, %v2706
        %v2884 = vpack.c.bf16 %v2709, %v2708
        %v2885 = vpack.c.bf16 %v2711, %v2710
        %v2886 = vpack.c.bf16 %v2713, %v2712
        %v2887 = vpack.c.bf16 %v2715, %v2714
        %v2888 = vpack.c.bf16 %v2717, %v2716
        %v2889 = vpack.c.bf16 %v2719, %v2718
        %v2890 = vpack.c.bf16 %v2721, %v2720
        %v2891 = vpack.c.bf16 %v2723, %v2722
        %v2892 = vpack.c.bf16 %v2725, %v2724
        %v2893 = vpack.c.bf16 %v2727, %v2726
        %v2894 = vrot.slane %v2725, 1
        %v2895 = vrot.slane %v2726, 1
        %v2896 = vrot.slane %v2727, 1
        %v2897 = vsel %vm838, %v2895, %v2896
        %v2898 = vsel %vm838, %v2894, %v2895
        %v2899 = vsel %vm838, %v2826, %v2894
        %v2900 = vsel %vm838, %v2896, %v2806
        %v2901 = vpack.c.bf16 %v2845, %v2846
        %v2902 = vpack.c.bf16 %v2843, %v2844
        %v2903 = vpack.c.bf16 %v2841, %v2842
        %v2904 = vpack.c.bf16 %v2839, %v2840
        %v2905 = vpack.c.bf16 %v2837, %v2838
        %v2906 = vpack.c.bf16 %v2835, %v2836
        %v2907 = vpack.c.bf16 %v2833, %v2834
        %v2908 = vpack.c.bf16 %v2831, %v2832
        %v2909 = vpack.c.bf16 %v2829, %v2830
        %v2910 = vpack.c.bf16 %v2827, %v2828
        %v2911 = vpack.c.bf16 %v2898, %v2899
        %v2912 = vpack.c.bf16 %v2900, %v2897
        %v2913 = vrot.slane %v2728, 7
        %v2914 = vrot.slane %v2729, 7
        %v2915 = vrot.slane %v2730, 7
        %v2916 = vsel %vm747, %v2914, %v2915
        %v2917 = vsel %vm747, %v2913, %v2914
        %v2918 = vsel %vm747, %v2865, %v2913
        %v2919 = vsel %vm747, %v2915, %v2737
        %v2920 = vpack.c.bf16 %v2771, %v2919
        %v2921 = vpack.c.bf16 %v2867, %v2868
        %v2922 = vpack.c.bf16 %v2918, %v2866
        %v2923 = vpack.c.bf16 %v2916, %v2917
        %v2924 = vpack.c.bf16 %v2726, %v2725
        %v2925 = vpack.c.bf16 %v2728, %v2727
        %v2926 = vpack.c.bf16 %v2730, %v2729
        %v2927 = vrot.slane %v2728, 1
        %v2928 = vrot.slane %v2729, 1
        %v2929 = vrot.slane %v2730, 1
        %v2930 = vsel %vm838, %v2928, %v2929
        %v2931 = vsel %vm838, %v2927, %v2928
        %v2932 = vsel %vm838, %v2896, %v2927
        %v2933 = vsel %vm838, %v2929, %v2809
        %v2934 = vpack.c.bf16 %v2899, %v2827
        %v2935 = vpack.c.bf16 %v2897, %v2898
        %v2936 = vpack.c.bf16 %v2931, %v2932
        %v2937 = vpack.c.bf16 %v2933, %v2930
        %v2938 = vld [vmem:[#allocation8] sm:$0xf]
        %v2939 = vld [vmem:[#allocation8 + $0x4] sm:$0xf]
        %v2940 = vld [vmem:[#allocation8 + $0x8] sm:$0xf]
        %v2941 = vld [vmem:[#allocation8 + $0xc] sm:$0xf]
        %v2942 = vld [vmem:[#allocation8 + $0x10] sm:$0xf]
        %v2943 = vld [vmem:[#allocation8 + $0x14] sm:$0xf]
        %v2944 = vld [vmem:[#allocation8 + $0x18] sm:$0xf]
        %v2945 = vld [vmem:[#allocation8 + $0x1c] sm:$0xf]
        %v2946 = vld [vmem:[#allocation8 + $0x20] sm:$0xf]
        %v2947 = vld [vmem:[#allocation8 + $0x24] sm:$0xf]
        %v2948 = vld [vmem:[#allocation8 + $0x28] sm:$0xf]
        %v2949 = vld [vmem:[#allocation8 + $0x2c] sm:$0xf]
        %v2950 = vld [vmem:[#allocation8 + $0x30] sm:$0xf]
        %v2951 = vld [vmem:[#allocation8 + $0x34] sm:$0xf]
        %v2952 = vld [vmem:[#allocation8 + $0x38] sm:$0xf]
        %v2953 = vld [vmem:[#allocation8 + $0x3c] sm:$0xf]
        %v2954 = vld [vmem:[#allocation8 + $0x40] sm:$0xf]
        %v2955 = vld [vmem:[#allocation8 + $0x44] sm:$0xf]
        %v2956 = vld [vmem:[#allocation8 + $0x48] sm:$0xf]
        %v2957 = vld [vmem:[#allocation8 + $0x4c] sm:$0xf]
        %v2958 = vld [vmem:[#allocation8 + $0x50] sm:$0xf]
        %v2959 = vld [vmem:[#allocation8 + $0x54] sm:$0xf]
        %v2960 = vld [vmem:[#allocation8 + $0x58] sm:$0xf]
        %v2961 = vld [vmem:[#allocation8 + $0x5c] sm:$0xf]
        %v2962 = vld [vmem:[#allocation8 + $0x60] sm:$0xf]
        %v2963 = vld [vmem:[#allocation8 + $0x64] sm:$0xf]
        %v2964 = vld [vmem:[#allocation8 + $0x68] sm:$0xf]
        %v2965 = vld [vmem:[#allocation8 + $0x6c] sm:$0xf]
        %v2966 = vld [vmem:[#allocation8 + $0x70] sm:$0xf]
        %v2967 = vld [vmem:[#allocation8 + $0x74] sm:$0xf]
        %v2968 = vld [vmem:[#allocation8 + $0x78] sm:$0xf]
        %v2969 = vld [vmem:[#allocation8 + $0x7c] sm:$0xf]
        %v2970 = vld [vmem:[#allocation8 + $0x80] sm:$0xf]
        %v2971 = vld [vmem:[#allocation8 + $0x84] sm:$0xf]
        %v2972 = vld [vmem:[#allocation8 + $0x88] sm:$0xf]
        %v2973 = vld [vmem:[#allocation8 + $0x8c] sm:$0xf]
        %v2974 = vld [vmem:[#allocation8 + $0x90] sm:$0xf]
        %v2975 = vld [vmem:[#allocation8 + $0x94] sm:$0xf]
        %v2976 = vld [vmem:[#allocation8 + $0x98] sm:$0xf]
        %v2977 = vld [vmem:[#allocation8 + $0x9c] sm:$0xf]
        %v2978 = vld [vmem:[#allocation8 + $0xa0] sm:$0xf]
        %v2979 = vld [vmem:[#allocation8 + $0xa4] sm:$0xf]
        %v2980 = vld [vmem:[#allocation8 + $0xa8] sm:$0xf]
        %v2981 = vld [vmem:[#allocation8 + $0xac] sm:$0xf]
        %v2982 = vld [vmem:[#allocation8 + $0xb0] sm:$0xf]
        %v2983 = vld [vmem:[#allocation8 + $0xb4] sm:$0xf]
        %v2984 = vld [vmem:[#allocation8 + $0xb8] sm:$0xf]
        %v2985 = vld [vmem:[#allocation8 + $0xbc] sm:$0xf]
        %v2986 = vld [vmem:[#allocation8 + $0xc0] sm:$0xf]
        %v2987 = vld [vmem:[#allocation8 + $0xc4] sm:$0xf]
        %v2988 = vld [vmem:[#allocation8 + $0xc8] sm:$0xf]
        %v2989 = vld [vmem:[#allocation8 + $0xcc] sm:$0xf]
        %v2990 = vld [vmem:[#allocation8 + $0xd0] sm:$0xf]
        %v2991 = vld [vmem:[#allocation8 + $0xd4] sm:$0xf]
        %v2992 = vld [vmem:[#allocation8 + $0xd8] sm:$0xf]
        %v2993 = vld [vmem:[#allocation8 + $0xdc] sm:$0xf]
        %v2994 = vld [vmem:[#allocation8 + $0xe0] sm:$0xf]
        %v2995 = vld [vmem:[#allocation8 + $0xe4] sm:$0xf]
        %v2996 = vld [vmem:[#allocation8 + $0xe8] sm:$0xf]
        %v2997 = vld [vmem:[#allocation8 + $0xec] sm:$0xf]
        %v2998 = vld [vmem:[#allocation8 + $0xf0] sm:$0xf]
        %v2999 = vld [vmem:[#allocation8 + $0xf4] sm:$0xf]
        %v3000 = vld [vmem:[#allocation8 + $0xf8] sm:$0xf]
        %v3001 = vld [vmem:[#allocation8 + $0xfc] sm:$0xf]
        %v3002 = vld [vmem:[#allocation8 + $0x100] sm:$0xf]
        %v3003 = vld [vmem:[#allocation8 + $0x104] sm:$0xf]
        %v3004 = vld [vmem:[#allocation8 + $0x108] sm:$0xf]
        %v3005 = vld [vmem:[#allocation8 + $0x10c] sm:$0xf]
        %v3006 = vld [vmem:[#allocation8 + $0x110] sm:$0xf]
        %v3007 = vld [vmem:[#allocation8 + $0x114] sm:$0xf]
        %v3008 = vld [vmem:[#allocation8 + $0x118] sm:$0xf]
        %v3009 = vld [vmem:[#allocation8 + $0x11c] sm:$0xf]
        %v3010 = vld [vmem:[#allocation8 + $0x120] sm:$0xf]
        %v3011 = vld [vmem:[#allocation8 + $0x124] sm:$0xf]
        %v3012 = vld [vmem:[#allocation8 + $0x128] sm:$0xf]
        %v3013 = vld [vmem:[#allocation8 + $0x12c] sm:$0xf]
        %v3014 = vld [vmem:[#allocation8 + $0x130] sm:$0xf]
        %v3015 = vld [vmem:[#allocation8 + $0x134] sm:$0xf]
        %v3016 = vld [vmem:[#allocation8 + $0x138] sm:$0xf]
        %v3017 = vld [vmem:[#allocation8 + $0x13c] sm:$0xf]
        %v3018 = vld [vmem:[#allocation8 + $0x140] sm:$0xf]
        %v3019 = vld [vmem:[#allocation8 + $0x144] sm:$0xf]
        %v3020 = vld [vmem:[#allocation8 + $0x148] sm:$0xf]
        %v3021 = vld [vmem:[#allocation8 + $0x14c] sm:$0xf]
        %v3022 = vld [vmem:[#allocation8 + $0x150] sm:$0xf]
        %v3023 = vld [vmem:[#allocation8 + $0x154] sm:$0xf]
        %v3024 = vld [vmem:[#allocation8 + $0x158] sm:$0xf]
        %v3025 = vld [vmem:[#allocation8 + $0x15c] sm:$0xf]
        %v3026 = vld [vmem:[#allocation8 + $0x160] sm:$0xf]
        %v3027 = vld [vmem:[#allocation8 + $0x164] sm:$0xf]
        %v3028 = vld [vmem:[#allocation8 + $0x168] sm:$0xf]
        %v3029 = vld [vmem:[#allocation8 + $0x16c] sm:$0xf]
        %v3030 = vld [vmem:[#allocation8 + $0x170] sm:$0xf]
        %v3031 = vld [vmem:[#allocation8 + $0x174] sm:$0xf]
        %v3032 = vld [vmem:[#allocation8 + $0x178] sm:$0xf]
        %v3033 = vld [vmem:[#allocation8 + $0x17c] sm:$0xf]
        %v3034 = vld [vmem:[#allocation8 + $0x180] sm:$0xf]
        %v3035 = vld [vmem:[#allocation8 + $0x184] sm:$0xf]
        %v3036 = vld [vmem:[#allocation8 + $0x188] sm:$0xf]
        %v3037 = vld [vmem:[#allocation8 + $0x18c] sm:$0xf]
        %v3038 = vld [vmem:[#allocation8 + $0x190] sm:$0xf]
        %v3039 = vld [vmem:[#allocation8 + $0x194] sm:$0xf]
        %v3040 = vld [vmem:[#allocation8 + $0x198] sm:$0xf]
        %v3041 = vld [vmem:[#allocation8 + $0x19c] sm:$0xf]
        %v3042 = vld [vmem:[#allocation8 + $0x1a0] sm:$0xf]
        %v3043 = vld [vmem:[#allocation8 + $0x1a4] sm:$0xf]
        %v3044 = vld [vmem:[#allocation8 + $0x1a8] sm:$0xf]
        %v3045 = vld [vmem:[#allocation8 + $0x1ac] sm:$0xf]
        %v3046 = vld [vmem:[#allocation8 + $0x1b0] sm:$0xf]
        %v3047 = vld [vmem:[#allocation8 + $0x1b4] sm:$0xf]
        %v3048 = vld [vmem:[#allocation8 + $0x1b8] sm:$0xf]
        %v3049 = vld [vmem:[#allocation8 + $0x1bc] sm:$0xf]
        %v3050 = vld [vmem:[#allocation8 + $0x1c0] sm:$0xf]
        %v3051 = vld [vmem:[#allocation8 + $0x1c4] sm:$0xf]
        %v3052 = vld [vmem:[#allocation8 + $0x1c8] sm:$0xf]
        %v3053 = vld [vmem:[#allocation8 + $0x1cc] sm:$0xf]
        %v3054 = vld [vmem:[#allocation8 + $0x1d0] sm:$0xf]
        %v3055 = vld [vmem:[#allocation8 + $0x1d4] sm:$0xf]
        %v3056 = vld [vmem:[#allocation8 + $0x1d8] sm:$0xf]
        %v3057 = vld [vmem:[#allocation8 + $0x1dc] sm:$0xf]
        %v3058 = vld [vmem:[#allocation8 + $0x1e0] sm:$0xf]
        %v3059 = vld [vmem:[#allocation8 + $0x1e4] sm:$0xf]
        %v3060 = vld [vmem:[#allocation8 + $0x1e8] sm:$0xf]
        %v3061 = vld [vmem:[#allocation8 + $0x1ec] sm:$0xf]
        %v3062 = vld [vmem:[#allocation8 + $0x1f0] sm:$0xf]
        %v3063 = vld [vmem:[#allocation8 + $0x1f4] sm:$0xf]
        %v3064 = vld [vmem:[#allocation8 + $0x1f8] sm:$0xf]
        %v3065 = vld [vmem:[#allocation8 + $0x1fc] sm:$0xf]
        %v3066 = vld [vmem:[#allocation8 + $0x200] sm:$0xf]
        %v3067 = vld [vmem:[#allocation8 + $0x204] sm:$0xf]
        %v3068 = vld [vmem:[#allocation8 + $0x208] sm:$0xf]
        %v3069 = vld [vmem:[#allocation8 + $0x20c] sm:$0xf]
        %v3070 = vld [vmem:[#allocation8 + $0x210] sm:$0xf]
        %v3071 = vld [vmem:[#allocation8 + $0x214] sm:$0xf]
        %v3072 = vld [vmem:[#allocation8 + $0x218] sm:$0xf]
        %v3073 = vld [vmem:[#allocation8 + $0x21c] sm:$0xf]
        %v3074 = vld [vmem:[#allocation8 + $0x220] sm:$0xf]
        %v3075 = vld [vmem:[#allocation8 + $0x224] sm:$0xf]
        %v3076 = vld [vmem:[#allocation8 + $0x228] sm:$0xf]
        %v3077 = vld [vmem:[#allocation8 + $0x22c] sm:$0xf]
        %v3078 = vld [vmem:[#allocation8 + $0x230] sm:$0xf]
        %v3079 = vld [vmem:[#allocation8 + $0x234] sm:$0xf]
        %v3080 = vld [vmem:[#allocation8 + $0x238] sm:$0xf]
        %v3081 = vld [vmem:[#allocation8 + $0x23c] sm:$0xf]
        %v3082 = vld [vmem:[#allocation10] sm:$0xf]
        %v3083 = vld [vmem:[#allocation10 + $0x4] sm:$0xf]
        %v3084 = vld [vmem:[#allocation10 + $0x8] sm:$0xf]
        %v3085 = vld [vmem:[#allocation10 + $0xc] sm:$0xf]
        %v3086 = vld [vmem:[#allocation10 + $0x10] sm:$0xf]
        %v3087 = vld [vmem:[#allocation10 + $0x14] sm:$0xf]
        %v3088 = vld [vmem:[#allocation10 + $0x18] sm:$0xf]
        %v3089 = vld [vmem:[#allocation10 + $0x1c] sm:$0xf]
        %v3090 = vld [vmem:[#allocation10 + $0x20] sm:$0xf]
        %v3091 = vld [vmem:[#allocation10 + $0x24] sm:$0xf]
        %v3092 = vld [vmem:[#allocation10 + $0x28] sm:$0xf]
        %v3093 = vld [vmem:[#allocation10 + $0x2c] sm:$0xf]
        %v3094 = vld [vmem:[#allocation10 + $0x30] sm:$0xf]
        %v3095 = vld [vmem:[#allocation10 + $0x34] sm:$0xf]
        %v3096 = vld [vmem:[#allocation10 + $0x38] sm:$0xf]
        %v3097 = vld [vmem:[#allocation10 + $0x3c] sm:$0xf]
        %v3122 = vunpack.c.l.b16 %v289
        %v3123 = vunpack.c.l.b16 %v290
        %v3124 = vunpack.c.l.b16 %v291
        %v3125 = vunpack.c.l.b16 %v292
        %v3126 = vunpack.c.l.b16 %v293
        %v3127 = vunpack.c.l.b16 %v294
        %v3128 = vunpack.c.l.b16 %v295
        %v3129 = vunpack.c.l.b16 %v296
        %v3130 = vunpack.c.l.b16 %v297
        %v3131 = vunpack.c.l.b16 %v298
        %v3132 = vunpack.c.l.b16 %v299
        %v3133 = vunpack.c.l.b16 %v300
        %v3134 = vunpack.c.l.b16 %v301
        %v3135 = vunpack.c.l.b16 %v302
        %v3136 = vunpack.c.l.b16 %v303
        %v3137 = vunpack.c.l.b16 %v304
        %v3138 = vunpack.c.l.b16 %v305
        %v3139 = vunpack.c.l.b16 %v306
        %v3140 = vunpack.c.l.b16 %v307
        %v3141 = vunpack.c.l.b16 %v308
        %v3142 = vunpack.c.l.b16 %v309
        %v3143 = vunpack.c.l.b16 %v310
        %v3144 = vunpack.c.l.b16 %v311
        %v3145 = vunpack.c.l.b16 %v312
        %v3146 = vpack.c.b16 %v3123, %v3122
        %v3147 = vpack.c.b16 %v3125, %v3124
        %v3148 = vpack.c.b16 %v3127, %v3126
        %v3149 = vpack.c.b16 %v3129, %v3128
        %v3150 = vpack.c.b16 %v3131, %v3130
        %v3151 = vpack.c.b16 %v3133, %v3132
        %v3152 = vpack.c.b16 %v3135, %v3134
        %v3153 = vpack.c.b16 %v3137, %v3136
        %v3154 = vpack.c.b16 %v3139, %v3138
        %v3155 = vpack.c.b16 %v3141, %v3140
        %v3156 = vpack.c.b16 %v3143, %v3142
        %v3157 = vpack.c.b16 %v3145, %v3144
        %v3186 = vunpack.c.l.b16 %v3082
        %v3187 = vunpack.c.l.b16 %v3083
        %v3188 = vunpack.c.l.b16 %v3084
        %v3189 = vunpack.c.l.b16 %v3085
        %v3190 = vunpack.c.l.b16 %v3086
        %v3191 = vunpack.c.l.b16 %v3087
        %v3192 = vunpack.c.l.b16 %v3088
        %v3193 = vunpack.c.l.b16 %v3089
        %v3194 = vunpack.c.l.b16 %v3090
        %v3195 = vunpack.c.l.b16 %v3091
        %v3196 = vunpack.c.l.b16 %v3092
        %v3197 = vunpack.c.l.b16 %v3093
        %v3198 = vunpack.c.l.b16 %v3094
        %v3199 = vunpack.c.l.b16 %v3095
        %v3200 = vunpack.c.l.b16 %v3096
        %v3201 = vunpack.c.l.b16 %v3097
        %v3202 = vpack.c.b16 %v3187, %v3186
        %v3203 = vpack.c.b16 %v3189, %v3188
        %v3204 = vpack.c.b16 %v3191, %v3190
        %v3205 = vpack.c.b16 %v3193, %v3192
        %v3206 = vpack.c.b16 %v3195, %v3194
        %v3207 = vpack.c.b16 %v3197, %v3196
        %v3208 = vpack.c.b16 %v3199, %v3198
        %v3209 = vpack.c.b16 %v3201, %v3200
        %3218 = vmatprep.subr.bf16.mxu0 0
        %3219 = vmatpush1.bf16.msra.mxu0 %v3209
        %3220 = vmatprep.subr.bf16.mxu0 0
        %3221 = vmatpush1.bf16.msra.mxu0 %v3208
        %3222 = vmatprep.subr.bf16.mxu0 0
        %3223 = vmatpush1.bf16.msra.mxu0 %v3207
        %3224 = vmatprep.subr.bf16.mxu0 0
        %3225 = vmatpush1.bf16.msra.mxu0 %v3206
        %3226 = vmatprep.subr.bf16.mxu0 0
        %3227 = vmatpush1.bf16.msra.mxu0 %v3205
        %3228 = vmatprep.subr.bf16.mxu0 0
        %3229 = vmatpush1.bf16.msra.mxu0 %v3204
        %3230 = vmatprep.subr.bf16.mxu0 0
        %3231 = vmatpush1.bf16.msra.mxu0 %v3203
        %3232 = vmatprep.subr.bf16.mxu0 0
        %3233 = vmatpush1.bf16.msra.mxu0 %v3202
        %3234 = vmatprep.subr.bf16.mxu0 0
        %3235 = vmatpush2.bf16.msra.mxu0 0
        %3236 = vmatprep.subr.bf16.mxu0 0
        %3237 = vmatpush2.bf16.msra.mxu0 0
        %3238 = vmatprep.subr.bf16.mxu0 0
        %3239 = vmatpush2.bf16.msra.mxu0 0
        %3240 = vmatprep.subr.bf16.mxu0 0
        %3241 = vmatpush2.bf16.msra.mxu0 0
        %3242 = vmatprep.subr.bf16.mxu0 0
        %3243 = vmatpush2.bf16.msra.mxu0 0
        %3244 = vmatprep.subr.bf16.mxu0 0
        %3245 = vmatpush2.bf16.msra.mxu0 0
        %3246 = vmatprep.subr.bf16.mxu0 0
        %3247 = vmatpush2.bf16.msra.mxu0 0
        %3248 = vmatprep.subr.bf16.mxu0 0
        %3249 = vmatpush2.bf16.msra.mxu0 0
        %3250 = vmatprep.mubr.bf16.mxu0 0
        %3251 = vmatmul.mubr.bf16.gmra.mxu0 %v3146
        %v3252 = vpop.f32.mrf.mxu0
        %v3253 = vadd.f32 0.0, %v3252
        %v3254 = vpop.f32.mrf.mxu0
        %v3255 = vpop.f32.mrf.mxu0
        %v3256 = vadd.f32 0.0, %v3255
        %v3257 = vpop.f32.mrf.mxu0
        %3258 = vmatprep.mubr.bf16.mxu0 0
        %3259 = vmatmul.mubr.bf16.gmra.mxu0 %v3147
        %v3260 = vpop.f32.mrf.mxu0
        %v3261 = vadd.f32 0.0, %v3260
        %v3262 = vpop.f32.mrf.mxu0
        %v3263 = vpop.f32.mrf.mxu0
        %v3264 = vadd.f32 0.0, %v3263
        %v3265 = vpop.f32.mrf.mxu0
        %3266 = vmatprep.mubr.bf16.mxu0 0
        %3267 = vmatmul.mubr.bf16.gmra.mxu0 %v3148
        %v3268 = vpop.f32.mrf.mxu0
        %v3269 = vadd.f32 0.0, %v3268
        %v3270 = vpop.f32.mrf.mxu0
        %v3271 = vpop.f32.mrf.mxu0
        %v3272 = vadd.f32 0.0, %v3271
        %v3273 = vpop.f32.mrf.mxu0
        %3274 = vmatprep.mubr.bf16.mxu0 0
        %3275 = vmatmul.mubr.bf16.gmra.mxu0 %v3149
        %v3276 = vpop.f32.mrf.mxu0
        %v3277 = vadd.f32 0.0, %v3276
        %v3278 = vpop.f32.mrf.mxu0
        %v3279 = vpop.f32.mrf.mxu0
        %v3280 = vadd.f32 0.0, %v3279
        %v3281 = vpop.f32.mrf.mxu0
        %3282 = vmatprep.mubr.bf16.mxu0 0
        %3283 = vmatmul.mubr.bf16.gmra.mxu0 %v3150
        %v3284 = vpop.f32.mrf.mxu0
        %v3285 = vadd.f32 0.0, %v3284
        %v3286 = vpop.f32.mrf.mxu0
        %v3287 = vpop.f32.mrf.mxu0
        %v3288 = vadd.f32 0.0, %v3287
        %v3289 = vpop.f32.mrf.mxu0
        %3290 = vmatprep.mubr.bf16.mxu0 0
        %3291 = vmatmul.mubr.bf16.gmra.mxu0 %v3151
        %v3292 = vpop.f32.mrf.mxu0
        %v3293 = vadd.f32 0.0, %v3292
        %v3294 = vpop.f32.mrf.mxu0
        %v3295 = vpop.f32.mrf.mxu0
        %v3296 = vadd.f32 0.0, %v3295
        %v3297 = vpop.f32.mrf.mxu0
        %3298 = vmatprep.mubr.bf16.mxu0 0
        %3299 = vmatmul.mubr.bf16.gmra.mxu0 %v3152
        %v3300 = vpop.f32.mrf.mxu0
        %v3301 = vadd.f32 0.0, %v3300
        %v3302 = vpop.f32.mrf.mxu0
        %v3303 = vpop.f32.mrf.mxu0
        %v3304 = vadd.f32 0.0, %v3303
        %v3305 = vpop.f32.mrf.mxu0
        %3306 = vmatprep.mubr.bf16.mxu0 0
        %3307 = vmatmul.mubr.bf16.gmra.mxu0 %v3153
        %v3308 = vpop.f32.mrf.mxu0
        %v3309 = vadd.f32 0.0, %v3308
        %v3310 = vpop.f32.mrf.mxu0
        %v3311 = vpop.f32.mrf.mxu0
        %v3312 = vadd.f32 0.0, %v3311
        %v3313 = vpop.f32.mrf.mxu0
        %3314 = vmatprep.mubr.bf16.mxu0 0
        %3315 = vmatmul.mubr.bf16.gmra.mxu0 %v3154
        %v3316 = vpop.f32.mrf.mxu0
        %v3317 = vadd.f32 0.0, %v3316
        %v3318 = vpop.f32.mrf.mxu0
        %v3319 = vpop.f32.mrf.mxu0
        %v3320 = vadd.f32 0.0, %v3319
        %v3321 = vpop.f32.mrf.mxu0
        %3322 = vmatprep.mubr.bf16.mxu0 0
        %3323 = vmatmul.mubr.bf16.gmra.mxu0 %v3155
        %v3324 = vpop.f32.mrf.mxu0
        %v3325 = vadd.f32 0.0, %v3324
        %v3326 = vpop.f32.mrf.mxu0
        %v3327 = vpop.f32.mrf.mxu0
        %v3328 = vadd.f32 0.0, %v3327
        %v3329 = vpop.f32.mrf.mxu0
        %3330 = vmatprep.mubr.bf16.mxu0 0
        %3331 = vmatmul.mubr.bf16.gmra.mxu0 %v3156
        %v3332 = vpop.f32.mrf.mxu0
        %v3333 = vadd.f32 0.0, %v3332
        %v3334 = vpop.f32.mrf.mxu0
        %v3335 = vpop.f32.mrf.mxu0
        %v3336 = vadd.f32 0.0, %v3335
        %v3337 = vpop.f32.mrf.mxu0
        %3338 = vmatprep.mubr.bf16.mxu0 0
        %3339 = vmatmul.mubr.bf16.gmra.mxu0 %v3157
        %v3340 = vpop.f32.mrf.mxu0
        %v3341 = vadd.f32 0.0, %v3340
        %v3342 = vpop.f32.mrf.mxu0
        %v3343 = vpop.f32.mrf.mxu0
        %v3344 = vadd.f32 0.0, %v3343
        %v3345 = vpop.f32.mrf.mxu0
        %3346 = vdwg.mxu0
        %v3491 = vunpack.c.l.b16 %v2938
        %v3492 = vunpack.c.l.b16 %v2939
        %v3493 = vunpack.c.l.b16 %v2940
        %v3494 = vunpack.c.l.b16 %v2941
        %v3495 = vunpack.c.l.b16 %v2942
        %v3496 = vunpack.c.l.b16 %v2943
        %v3497 = vunpack.c.l.b16 %v2944
        %v3498 = vunpack.c.l.b16 %v2945
        %v3499 = vunpack.c.l.b16 %v2946
        %v3500 = vunpack.c.l.b16 %v2947
        %v3501 = vunpack.c.l.b16 %v2948
        %v3502 = vunpack.c.l.b16 %v2949
        %v3503 = vunpack.c.l.b16 %v2950
        %v3504 = vunpack.c.l.b16 %v2951
        %v3505 = vunpack.c.l.b16 %v2952
        %v3506 = vunpack.c.l.b16 %v2953
        %v3507 = vunpack.c.l.b16 %v2954
        %v3508 = vunpack.c.l.b16 %v2955
        %v3509 = vunpack.c.l.b16 %v2956
        %v3510 = vunpack.c.l.b16 %v2957
        %v3511 = vunpack.c.l.b16 %v2958
        %v3512 = vunpack.c.l.b16 %v2959
        %v3513 = vunpack.c.l.b16 %v2960
        %v3514 = vunpack.c.l.b16 %v2961
        %v3515 = vunpack.c.l.b16 %v2962
        %v3516 = vunpack.c.l.b16 %v2963
        %v3517 = vunpack.c.l.b16 %v2964
        %v3518 = vunpack.c.l.b16 %v2965
        %v3519 = vunpack.c.l.b16 %v2966
        %v3520 = vunpack.c.l.b16 %v2967
        %v3521 = vunpack.c.l.b16 %v2968
        %v3522 = vunpack.c.l.b16 %v2969
        %v3523 = vunpack.c.l.b16 %v2970
        %v3524 = vunpack.c.l.b16 %v2971
        %v3525 = vunpack.c.l.b16 %v2972
        %v3526 = vunpack.c.l.b16 %v2973
        %v3527 = vunpack.c.l.b16 %v2974
        %v3528 = vunpack.c.l.b16 %v2975
        %v3529 = vunpack.c.l.b16 %v2976
        %v3530 = vunpack.c.l.b16 %v2977
        %v3531 = vunpack.c.l.b16 %v2978
        %v3532 = vunpack.c.l.b16 %v2979
        %v3533 = vunpack.c.l.b16 %v2980
        %v3534 = vunpack.c.l.b16 %v2981
        %v3535 = vunpack.c.l.b16 %v2982
        %v3536 = vunpack.c.l.b16 %v2983
        %v3537 = vunpack.c.l.b16 %v2984
        %v3538 = vunpack.c.l.b16 %v2985
        %v3539 = vunpack.c.l.b16 %v2986
        %v3540 = vunpack.c.l.b16 %v2987
        %v3541 = vunpack.c.l.b16 %v2988
        %v3542 = vunpack.c.l.b16 %v2989
        %v3543 = vunpack.c.l.b16 %v2990
        %v3544 = vunpack.c.l.b16 %v2991
        %v3545 = vunpack.c.l.b16 %v2992
        %v3546 = vunpack.c.l.b16 %v2993
        %v3547 = vunpack.c.l.b16 %v2994
        %v3548 = vunpack.c.l.b16 %v2995
        %v3549 = vunpack.c.l.b16 %v2996
        %v3550 = vunpack.c.l.b16 %v2997
        %v3551 = vunpack.c.l.b16 %v2998
        %v3552 = vunpack.c.l.b16 %v2999
        %v3553 = vunpack.c.l.b16 %v3000
        %v3554 = vunpack.c.l.b16 %v3001
        %v3555 = vunpack.c.l.b16 %v3002
        %v3556 = vunpack.c.l.b16 %v3003
        %v3557 = vunpack.c.l.b16 %v3004
        %v3558 = vunpack.c.l.b16 %v3005
        %v3559 = vunpack.c.l.b16 %v3006
        %v3560 = vunpack.c.l.b16 %v3007
        %v3561 = vunpack.c.l.b16 %v3008
        %v3562 = vunpack.c.l.b16 %v3009
        %v3563 = vunpack.c.l.b16 %v3010
        %v3564 = vunpack.c.l.b16 %v3011
        %v3565 = vunpack.c.l.b16 %v3012
        %v3566 = vunpack.c.l.b16 %v3013
        %v3567 = vunpack.c.l.b16 %v3014
        %v3568 = vunpack.c.l.b16 %v3015
        %v3569 = vunpack.c.l.b16 %v3016
        %v3570 = vunpack.c.l.b16 %v3017
        %v3571 = vunpack.c.l.b16 %v3018
        %v3572 = vunpack.c.l.b16 %v3019
        %v3573 = vunpack.c.l.b16 %v3020
        %v3574 = vunpack.c.l.b16 %v3021
        %v3575 = vunpack.c.l.b16 %v3022
        %v3576 = vunpack.c.l.b16 %v3023
        %v3577 = vunpack.c.l.b16 %v3024
        %v3578 = vunpack.c.l.b16 %v3025
        %v3579 = vunpack.c.l.b16 %v3026
        %v3580 = vunpack.c.l.b16 %v3027
        %v3581 = vunpack.c.l.b16 %v3028
        %v3582 = vunpack.c.l.b16 %v3029
        %v3583 = vunpack.c.l.b16 %v3030
        %v3584 = vunpack.c.l.b16 %v3031
        %v3585 = vunpack.c.l.b16 %v3032
        %v3586 = vunpack.c.l.b16 %v3033
        %v3587 = vunpack.c.l.b16 %v3034
        %v3588 = vunpack.c.l.b16 %v3035
        %v3589 = vunpack.c.l.b16 %v3036
        %v3590 = vunpack.c.l.b16 %v3037
        %v3591 = vunpack.c.l.b16 %v3038
        %v3592 = vunpack.c.l.b16 %v3039
        %v3593 = vunpack.c.l.b16 %v3040
        %v3594 = vunpack.c.l.b16 %v3041
        %v3595 = vunpack.c.l.b16 %v3042
        %v3596 = vunpack.c.l.b16 %v3043
        %v3597 = vunpack.c.l.b16 %v3044
        %v3598 = vunpack.c.l.b16 %v3045
        %v3599 = vunpack.c.l.b16 %v3046
        %v3600 = vunpack.c.l.b16 %v3047
        %v3601 = vunpack.c.l.b16 %v3048
        %v3602 = vunpack.c.l.b16 %v3049
        %v3603 = vunpack.c.l.b16 %v3050
        %v3604 = vunpack.c.l.b16 %v3051
        %v3605 = vunpack.c.l.b16 %v3052
        %v3606 = vunpack.c.l.b16 %v3053
        %v3607 = vunpack.c.l.b16 %v3054
        %v3608 = vunpack.c.l.b16 %v3055
        %v3609 = vunpack.c.l.b16 %v3056
        %v3610 = vunpack.c.l.b16 %v3057
        %v3611 = vunpack.c.l.b16 %v3058
        %v3612 = vunpack.c.l.b16 %v3059
        %v3613 = vunpack.c.l.b16 %v3060
        %v3614 = vunpack.c.l.b16 %v3061
        %v3615 = vunpack.c.l.b16 %v3062
        %v3616 = vunpack.c.l.b16 %v3063
        %v3617 = vunpack.c.l.b16 %v3064
        %v3618 = vunpack.c.l.b16 %v3065
        %v3619 = vunpack.c.l.b16 %v3066
        %v3620 = vunpack.c.l.b16 %v3067
        %v3621 = vunpack.c.l.b16 %v3068
        %v3622 = vunpack.c.l.b16 %v3069
        %v3623 = vunpack.c.l.b16 %v3070
        %v3624 = vunpack.c.l.b16 %v3071
        %v3625 = vunpack.c.l.b16 %v3072
        %v3626 = vunpack.c.l.b16 %v3073
        %v3627 = vunpack.c.l.b16 %v3074
        %v3628 = vunpack.c.l.b16 %v3075
        %v3629 = vunpack.c.l.b16 %v3076
        %v3630 = vunpack.c.l.b16 %v3077
        %v3631 = vunpack.c.l.b16 %v3078
        %v3632 = vunpack.c.l.b16 %v3079
        %v3633 = vunpack.c.l.b16 %v3080
        %v3634 = vunpack.c.l.b16 %v3081
        %v3635 = vpack.c.b16 %v3492, %v3491
        %v3636 = vpack.c.b16 %v3494, %v3493
        %v3637 = vpack.c.b16 %v3496, %v3495
        %v3638 = vpack.c.b16 %v3498, %v3497
        %v3639 = vpack.c.b16 %v3500, %v3499
        %v3640 = vpack.c.b16 %v3502, %v3501
        %v3641 = vpack.c.b16 %v3504, %v3503
        %v3642 = vpack.c.b16 %v3506, %v3505
        %v3643 = vpack.c.b16 %v3508, %v3507
        %v3644 = vpack.c.b16 %v3510, %v3509
        %v3645 = vpack.c.b16 %v3512, %v3511
        %v3646 = vpack.c.b16 %v3514, %v3513
        %v3647 = vpack.c.b16 %v3516, %v3515
        %v3648 = vpack.c.b16 %v3518, %v3517
        %v3649 = vpack.c.b16 %v3520, %v3519
        %v3650 = vpack.c.b16 %v3522, %v3521
        %v3651 = vpack.c.b16 %v3524, %v3523
        %v3652 = vpack.c.b16 %v3526, %v3525
        %v3653 = vpack.c.b16 %v3528, %v3527
        %v3654 = vpack.c.b16 %v3530, %v3529
        %v3655 = vpack.c.b16 %v3532, %v3531
        %v3656 = vpack.c.b16 %v3534, %v3533
        %v3657 = vpack.c.b16 %v3536, %v3535
        %v3658 = vpack.c.b16 %v3538, %v3537
        %v3659 = vpack.c.b16 %v3540, %v3539
        %v3660 = vpack.c.b16 %v3542, %v3541
        %v3661 = vpack.c.b16 %v3544, %v3543
        %v3662 = vpack.c.b16 %v3546, %v3545
        %v3663 = vpack.c.b16 %v3548, %v3547
        %v3664 = vpack.c.b16 %v3550, %v3549
        %v3665 = vpack.c.b16 %v3552, %v3551
        %v3666 = vpack.c.b16 %v3554, %v3553
        %v3667 = vpack.c.b16 %v3556, %v3555
        %v3668 = vpack.c.b16 %v3558, %v3557
        %v3669 = vpack.c.b16 %v3560, %v3559
        %v3670 = vpack.c.b16 %v3562, %v3561
        %v3671 = vpack.c.b16 %v3564, %v3563
        %v3672 = vpack.c.b16 %v3566, %v3565
        %v3673 = vpack.c.b16 %v3568, %v3567
        %v3674 = vpack.c.b16 %v3570, %v3569
        %v3675 = vpack.c.b16 %v3572, %v3571
        %v3676 = vpack.c.b16 %v3574, %v3573
        %v3677 = vpack.c.b16 %v3576, %v3575
        %v3678 = vpack.c.b16 %v3578, %v3577
        %v3679 = vpack.c.b16 %v3580, %v3579
        %v3680 = vpack.c.b16 %v3582, %v3581
        %v3681 = vpack.c.b16 %v3584, %v3583
        %v3682 = vpack.c.b16 %v3586, %v3585
        %v3683 = vpack.c.b16 %v3588, %v3587
        %v3684 = vpack.c.b16 %v3590, %v3589
        %v3685 = vpack.c.b16 %v3592, %v3591
        %v3686 = vpack.c.b16 %v3594, %v3593
        %v3687 = vpack.c.b16 %v3596, %v3595
        %v3688 = vpack.c.b16 %v3598, %v3597
        %v3689 = vpack.c.b16 %v3600, %v3599
        %v3690 = vpack.c.b16 %v3602, %v3601
        %v3691 = vpack.c.b16 %v3604, %v3603
        %v3692 = vpack.c.b16 %v3606, %v3605
        %v3693 = vpack.c.b16 %v3608, %v3607
        %v3694 = vpack.c.b16 %v3610, %v3609
        %v3695 = vpack.c.b16 %v3612, %v3611
        %v3696 = vpack.c.b16 %v3614, %v3613
        %v3697 = vpack.c.b16 %v3616, %v3615
        %v3698 = vpack.c.b16 %v3618, %v3617
        %v3699 = vpack.c.b16 %v3620, %v3619
        %v3700 = vpack.c.b16 %v3622, %v3621
        %v3701 = vpack.c.b16 %v3624, %v3623
        %v3702 = vpack.c.b16 %v3626, %v3625
        %v3703 = vpack.c.b16 %v3628, %v3627
        %v3704 = vpack.c.b16 %v3630, %v3629
        %v3705 = vpack.c.b16 %v3632, %v3631
        %v3706 = vpack.c.b16 %v3634, %v3633
        %3779 = vmatprep.subr.bf16.mxu0 0
        %3780 = vmatpush1.bf16.msra.mxu0 %v3642
        %3781 = vmatprep.subr.bf16.mxu0 0
        %3782 = vmatpush1.bf16.msra.mxu0 %v3641
        %3783 = vmatprep.subr.bf16.mxu0 0
        %3784 = vmatpush1.bf16.msra.mxu0 %v3640
        %3785 = vmatprep.subr.bf16.mxu0 0
        %3786 = vmatpush1.bf16.msra.mxu0 %v3639
        %3787 = vmatprep.subr.bf16.mxu0 0
        %3788 = vmatpush1.bf16.msra.mxu0 %v3638
        %3789 = vmatprep.subr.bf16.mxu0 0
        %3790 = vmatpush1.bf16.msra.mxu0 %v3637
        %3791 = vmatprep.subr.bf16.mxu0 0
        %3792 = vmatpush1.bf16.msra.mxu0 %v3636
        %3793 = vmatprep.subr.bf16.mxu0 0
        %3794 = vmatpush1.bf16.msra.mxu0 %v3635
        %3795 = vmatprep.subr.bf16.mxu0 0
        %3796 = vmatpush2.bf16.msra.mxu0 %v3650
        %3797 = vmatprep.subr.bf16.mxu0 0
        %3798 = vmatpush2.bf16.msra.mxu0 %v3649
        %3799 = vmatprep.subr.bf16.mxu0 0
        %3800 = vmatpush2.bf16.msra.mxu0 %v3648
        %3801 = vmatprep.subr.bf16.mxu0 0
        %3802 = vmatpush2.bf16.msra.mxu0 %v3647
        %3803 = vmatprep.subr.bf16.mxu0 0
        %3804 = vmatpush2.bf16.msra.mxu0 %v3646
        %3805 = vmatprep.subr.bf16.mxu0 0
        %3806 = vmatpush2.bf16.msra.mxu0 %v3645
        %3807 = vmatprep.subr.bf16.mxu0 0
        %3808 = vmatpush2.bf16.msra.mxu0 %v3644
        %3809 = vmatprep.subr.bf16.mxu0 0
        %3810 = vmatpush2.bf16.msra.mxu0 %v3643
        %3811 = vmatprep.mubr.bf16.mxu0 %v2791
        %3812 = vmatmul.mubr.bf16.gmra.mxu0 %v2779
        %v3813 = vpop.f32.mrf.mxu0
        %v3814 = vadd.f32 %v3253, %v3813
        %v3815 = vpop.f32.mrf.mxu0
        %v3816 = vpop.f32.mrf.mxu0
        %v3817 = vadd.f32 %v3256, %v3816
        %v3818 = vpop.f32.mrf.mxu0
        %3819 = vmatprep.mubr.bf16.mxu0 %v2792
        %3820 = vmatmul.mubr.bf16.gmra.mxu0 %v2780
        %v3821 = vpop.f32.mrf.mxu0
        %v3822 = vadd.f32 %v3261, %v3821
        %v3823 = vpop.f32.mrf.mxu0
        %v3824 = vpop.f32.mrf.mxu0
        %v3825 = vadd.f32 %v3264, %v3824
        %v3826 = vpop.f32.mrf.mxu0
        %3827 = vmatprep.mubr.bf16.mxu0 %v2793
        %3828 = vmatmul.mubr.bf16.gmra.mxu0 %v2781
        %v3829 = vpop.f32.mrf.mxu0
        %v3830 = vadd.f32 %v3269, %v3829
        %v3831 = vpop.f32.mrf.mxu0
        %v3832 = vpop.f32.mrf.mxu0
        %v3833 = vadd.f32 %v3272, %v3832
        %v3834 = vpop.f32.mrf.mxu0
        %3835 = vmatprep.mubr.bf16.mxu0 %v2794
        %3836 = vmatmul.mubr.bf16.gmra.mxu0 %v2782
        %v3837 = vpop.f32.mrf.mxu0
        %v3838 = vadd.f32 %v3277, %v3837
        %v3839 = vpop.f32.mrf.mxu0
        %v3840 = vpop.f32.mrf.mxu0
        %v3841 = vadd.f32 %v3280, %v3840
        %v3842 = vpop.f32.mrf.mxu0
        %3843 = vmatprep.mubr.bf16.mxu0 %v2795
        %3844 = vmatmul.mubr.bf16.gmra.mxu0 %v2783
        %v3845 = vpop.f32.mrf.mxu0
        %v3846 = vadd.f32 %v3285, %v3845
        %v3847 = vpop.f32.mrf.mxu0
        %v3848 = vpop.f32.mrf.mxu0
        %v3849 = vadd.f32 %v3288, %v3848
        %v3850 = vpop.f32.mrf.mxu0
        %3851 = vmatprep.mubr.bf16.mxu0 %v2796
        %3852 = vmatmul.mubr.bf16.gmra.mxu0 %v2784
        %v3853 = vpop.f32.mrf.mxu0
        %v3854 = vadd.f32 %v3293, %v3853
        %v3855 = vpop.f32.mrf.mxu0
        %v3856 = vpop.f32.mrf.mxu0
        %v3857 = vadd.f32 %v3296, %v3856
        %v3858 = vpop.f32.mrf.mxu0
        %3859 = vmatprep.mubr.bf16.mxu0 %v2797
        %3860 = vmatmul.mubr.bf16.gmra.mxu0 %v2785
        %v3861 = vpop.f32.mrf.mxu0
        %v3862 = vadd.f32 %v3301, %v3861
        %v3863 = vpop.f32.mrf.mxu0
        %v3864 = vpop.f32.mrf.mxu0
        %v3865 = vadd.f32 %v3304, %v3864
        %v3866 = vpop.f32.mrf.mxu0
        %3867 = vmatprep.mubr.bf16.mxu0 %v2798
        %3868 = vmatmul.mubr.bf16.gmra.mxu0 %v2786
        %v3869 = vpop.f32.mrf.mxu0
        %v3870 = vadd.f32 %v3309, %v3869
        %v3871 = vpop.f32.mrf.mxu0
        %v3872 = vpop.f32.mrf.mxu0
        %v3873 = vadd.f32 %v3312, %v3872
        %v3874 = vpop.f32.mrf.mxu0
        %3875 = vmatprep.mubr.bf16.mxu0 %v2799
        %3876 = vmatmul.mubr.bf16.gmra.mxu0 %v2787
        %v3877 = vpop.f32.mrf.mxu0
        %v3878 = vadd.f32 %v3317, %v3877
        %v3879 = vpop.f32.mrf.mxu0
        %v3880 = vpop.f32.mrf.mxu0
        %v3881 = vadd.f32 %v3320, %v3880
        %v3882 = vpop.f32.mrf.mxu0
        %3883 = vmatprep.mubr.bf16.mxu0 %v2800
        %3884 = vmatmul.mubr.bf16.gmra.mxu0 %v2788
        %v3885 = vpop.f32.mrf.mxu0
        %v3886 = vadd.f32 %v3325, %v3885
        %v3887 = vpop.f32.mrf.mxu0
        %v3888 = vpop.f32.mrf.mxu0
        %v3889 = vadd.f32 %v3328, %v3888
        %v3890 = vpop.f32.mrf.mxu0
        %3891 = vmatprep.mubr.bf16.mxu0 %v2801
        %3892 = vmatmul.mubr.bf16.gmra.mxu0 %v2789
        %v3893 = vpop.f32.mrf.mxu0
        %v3894 = vadd.f32 %v3333, %v3893
        %v3895 = vpop.f32.mrf.mxu0
        %v3896 = vpop.f32.mrf.mxu0
        %v3897 = vadd.f32 %v3336, %v3896
        %v3898 = vpop.f32.mrf.mxu0
        %3899 = vmatprep.mubr.bf16.mxu0 %v2802
        %3900 = vmatmul.mubr.bf16.gmra.mxu0 %v2790
        %v3901 = vpop.f32.mrf.mxu0
        %v3902 = vadd.f32 %v3341, %v3901
        %v3903 = vpop.f32.mrf.mxu0
        %v3904 = vpop.f32.mrf.mxu0
        %v3905 = vadd.f32 %v3344, %v3904
        %v3906 = vpop.f32.mrf.mxu0
        %3907 = vdwg.mxu0
        %3908 = vmatprep.subr.bf16.mxu0 0
        %3909 = vmatpush1.bf16.msra.mxu0 %v3658
        %3910 = vmatprep.subr.bf16.mxu0 0
        %3911 = vmatpush1.bf16.msra.mxu0 %v3657
        %3912 = vmatprep.subr.bf16.mxu0 0
        %3913 = vmatpush1.bf16.msra.mxu0 %v3656
        %3914 = vmatprep.subr.bf16.mxu0 0
        %3915 = vmatpush1.bf16.msra.mxu0 %v3655
        %3916 = vmatprep.subr.bf16.mxu0 0
        %3917 = vmatpush1.bf16.msra.mxu0 %v3654
        %3918 = vmatprep.subr.bf16.mxu0 0
        %3919 = vmatpush1.bf16.msra.mxu0 %v3653
        %3920 = vmatprep.subr.bf16.mxu0 0
        %3921 = vmatpush1.bf16.msra.mxu0 %v3652
        %3922 = vmatprep.subr.bf16.mxu0 0
        %3923 = vmatpush1.bf16.msra.mxu0 %v3651
        %3924 = vmatprep.subr.bf16.mxu0 0
        %3925 = vmatpush2.bf16.msra.mxu0 %v3666
        %3926 = vmatprep.subr.bf16.mxu0 0
        %3927 = vmatpush2.bf16.msra.mxu0 %v3665
        %3928 = vmatprep.subr.bf16.mxu0 0
        %3929 = vmatpush2.bf16.msra.mxu0 %v3664
        %3930 = vmatprep.subr.bf16.mxu0 0
        %3931 = vmatpush2.bf16.msra.mxu0 %v3663
        %3932 = vmatprep.subr.bf16.mxu0 0
        %3933 = vmatpush2.bf16.msra.mxu0 %v3662
        %3934 = vmatprep.subr.bf16.mxu0 0
        %3935 = vmatpush2.bf16.msra.mxu0 %v3661
        %3936 = vmatprep.subr.bf16.mxu0 0
        %3937 = vmatpush2.bf16.msra.mxu0 %v3660
        %3938 = vmatprep.subr.bf16.mxu0 0
        %3939 = vmatpush2.bf16.msra.mxu0 %v3659
        %3940 = vmatprep.mubr.bf16.mxu0 %v2870
        %3941 = vmatmul.mubr.bf16.gmra.mxu0 %v2851
        %v3942 = vpop.f32.mrf.mxu0
        %v3943 = vadd.f32 %v3814, %v3942
        %v3944 = vpop.f32.mrf.mxu0
        %v3945 = vpop.f32.mrf.mxu0
        %v3946 = vadd.f32 %v3817, %v3945
        %v3947 = vpop.f32.mrf.mxu0
        %3948 = vmatprep.mubr.bf16.mxu0 %v2871
        %3949 = vmatmul.mubr.bf16.gmra.mxu0 %v2852
        %v3950 = vpop.f32.mrf.mxu0
        %v3951 = vadd.f32 %v3822, %v3950
        %v3952 = vpop.f32.mrf.mxu0
        %v3953 = vpop.f32.mrf.mxu0
        %v3954 = vadd.f32 %v3825, %v3953
        %v3955 = vpop.f32.mrf.mxu0
        %3956 = vmatprep.mubr.bf16.mxu0 %v2872
        %3957 = vmatmul.mubr.bf16.gmra.mxu0 %v2853
        %v3958 = vpop.f32.mrf.mxu0
        %v3959 = vadd.f32 %v3830, %v3958
        %v3960 = vpop.f32.mrf.mxu0
        %v3961 = vpop.f32.mrf.mxu0
        %v3962 = vadd.f32 %v3833, %v3961
        %v3963 = vpop.f32.mrf.mxu0
        %3964 = vmatprep.mubr.bf16.mxu0 %v2873
        %3965 = vmatmul.mubr.bf16.gmra.mxu0 %v2854
        %v3966 = vpop.f32.mrf.mxu0
        %v3967 = vadd.f32 %v3838, %v3966
        %v3968 = vpop.f32.mrf.mxu0
        %v3969 = vpop.f32.mrf.mxu0
        %v3970 = vadd.f32 %v3841, %v3969
        %v3971 = vpop.f32.mrf.mxu0
        %3972 = vmatprep.mubr.bf16.mxu0 %v2874
        %3973 = vmatmul.mubr.bf16.gmra.mxu0 %v2855
        %v3974 = vpop.f32.mrf.mxu0
        %v3975 = vadd.f32 %v3846, %v3974
        %v3976 = vpop.f32.mrf.mxu0
        %v3977 = vpop.f32.mrf.mxu0
        %v3978 = vadd.f32 %v3849, %v3977
        %v3979 = vpop.f32.mrf.mxu0
        %3980 = vmatprep.mubr.bf16.mxu0 %v2875
        %3981 = vmatmul.mubr.bf16.gmra.mxu0 %v2856
        %v3982 = vpop.f32.mrf.mxu0
        %v3983 = vadd.f32 %v3854, %v3982
        %v3984 = vpop.f32.mrf.mxu0
        %v3985 = vpop.f32.mrf.mxu0
        %v3986 = vadd.f32 %v3857, %v3985
        %v3987 = vpop.f32.mrf.mxu0
        %3988 = vmatprep.mubr.bf16.mxu0 %v2876
        %3989 = vmatmul.mubr.bf16.gmra.mxu0 %v2857
        %v3990 = vpop.f32.mrf.mxu0
        %v3991 = vadd.f32 %v3862, %v3990
        %v3992 = vpop.f32.mrf.mxu0
        %v3993 = vpop.f32.mrf.mxu0
        %v3994 = vadd.f32 %v3865, %v3993
        %v3995 = vpop.f32.mrf.mxu0
        %3996 = vmatprep.mubr.bf16.mxu0 %v2877
        %3997 = vmatmul.mubr.bf16.gmra.mxu0 %v2858
        %v3998 = vpop.f32.mrf.mxu0
        %v3999 = vadd.f32 %v3870, %v3998
        %v4000 = vpop.f32.mrf.mxu0
        %v4001 = vpop.f32.mrf.mxu0
        %v4002 = vadd.f32 %v3873, %v4001
        %v4003 = vpop.f32.mrf.mxu0
        %4004 = vmatprep.mubr.bf16.mxu0 %v2878
        %4005 = vmatmul.mubr.bf16.gmra.mxu0 %v2859
        %v4006 = vpop.f32.mrf.mxu0
        %v4007 = vadd.f32 %v3878, %v4006
        %v4008 = vpop.f32.mrf.mxu0
        %v4009 = vpop.f32.mrf.mxu0
        %v4010 = vadd.f32 %v3881, %v4009
        %v4011 = vpop.f32.mrf.mxu0
        %4012 = vmatprep.mubr.bf16.mxu0 %v2879
        %4013 = vmatmul.mubr.bf16.gmra.mxu0 %v2860
        %v4014 = vpop.f32.mrf.mxu0
        %v4015 = vadd.f32 %v3886, %v4014
        %v4016 = vpop.f32.mrf.mxu0
        %v4017 = vpop.f32.mrf.mxu0
        %v4018 = vadd.f32 %v3889, %v4017
        %v4019 = vpop.f32.mrf.mxu0
        %4020 = vmatprep.mubr.bf16.mxu0 %v2880
        %4021 = vmatmul.mubr.bf16.gmra.mxu0 %v2861
        %v4022 = vpop.f32.mrf.mxu0
        %v4023 = vadd.f32 %v3894, %v4022
        %v4024 = vpop.f32.mrf.mxu0
        %v4025 = vpop.f32.mrf.mxu0
        %v4026 = vadd.f32 %v3897, %v4025
        %v4027 = vpop.f32.mrf.mxu0
        %4028 = vmatprep.mubr.bf16.mxu0 %v2881
        %4029 = vmatmul.mubr.bf16.gmra.mxu0 %v2862
        %v4030 = vpop.f32.mrf.mxu0
        %v4031 = vadd.f32 %v3902, %v4030
        %v4032 = vpop.f32.mrf.mxu0
        %v4033 = vpop.f32.mrf.mxu0
        %v4034 = vadd.f32 %v3905, %v4033
        %v4035 = vpop.f32.mrf.mxu0
        %4036 = vdwg.mxu0
        %4037 = vmatprep.subr.bf16.mxu0 0
        %4038 = vmatpush1.bf16.msra.mxu0 %v3674
        %4039 = vmatprep.subr.bf16.mxu0 0
        %4040 = vmatpush1.bf16.msra.mxu0 %v3673
        %4041 = vmatprep.subr.bf16.mxu0 0
        %4042 = vmatpush1.bf16.msra.mxu0 %v3672
        %4043 = vmatprep.subr.bf16.mxu0 0
        %4044 = vmatpush1.bf16.msra.mxu0 %v3671
        %4045 = vmatprep.subr.bf16.mxu0 0
        %4046 = vmatpush1.bf16.msra.mxu0 %v3670
        %4047 = vmatprep.subr.bf16.mxu0 0
        %4048 = vmatpush1.bf16.msra.mxu0 %v3669
        %4049 = vmatprep.subr.bf16.mxu0 0
        %4050 = vmatpush1.bf16.msra.mxu0 %v3668
        %4051 = vmatprep.subr.bf16.mxu0 0
        %4052 = vmatpush1.bf16.msra.mxu0 %v3667
        %4053 = vmatprep.subr.bf16.mxu0 0
        %4054 = vmatpush2.bf16.msra.mxu0 %v3682
        %4055 = vmatprep.subr.bf16.mxu0 0
        %4056 = vmatpush2.bf16.msra.mxu0 %v3681
        %4057 = vmatprep.subr.bf16.mxu0 0
        %4058 = vmatpush2.bf16.msra.mxu0 %v3680
        %4059 = vmatprep.subr.bf16.mxu0 0
        %4060 = vmatpush2.bf16.msra.mxu0 %v3679
        %4061 = vmatprep.subr.bf16.mxu0 0
        %4062 = vmatpush2.bf16.msra.mxu0 %v3678
        %4063 = vmatprep.subr.bf16.mxu0 0
        %4064 = vmatpush2.bf16.msra.mxu0 %v3677
        %4065 = vmatprep.subr.bf16.mxu0 0
        %4066 = vmatpush2.bf16.msra.mxu0 %v3676
        %4067 = vmatprep.subr.bf16.mxu0 0
        %4068 = vmatpush2.bf16.msra.mxu0 %v3675
        %4069 = vmatprep.mubr.bf16.mxu0 %v2901
        %4070 = vmatmul.mubr.bf16.gmra.mxu0 %v2882
        %v4071 = vpop.f32.mrf.mxu0
        %v4072 = vadd.f32 %v3943, %v4071
        %v4073 = vpop.f32.mrf.mxu0
        %v4074 = vpop.f32.mrf.mxu0
        %v4075 = vadd.f32 %v3946, %v4074
        %v4076 = vpop.f32.mrf.mxu0
        %4077 = vmatprep.mubr.bf16.mxu0 %v2902
        %4078 = vmatmul.mubr.bf16.gmra.mxu0 %v2883
        %v4079 = vpop.f32.mrf.mxu0
        %v4080 = vadd.f32 %v3951, %v4079
        %v4081 = vpop.f32.mrf.mxu0
        %v4082 = vpop.f32.mrf.mxu0
        %v4083 = vadd.f32 %v3954, %v4082
        %v4084 = vpop.f32.mrf.mxu0
        %4085 = vmatprep.mubr.bf16.mxu0 %v2903
        %4086 = vmatmul.mubr.bf16.gmra.mxu0 %v2884
        %v4087 = vpop.f32.mrf.mxu0
        %v4088 = vadd.f32 %v3959, %v4087
        %v4089 = vpop.f32.mrf.mxu0
        %v4090 = vpop.f32.mrf.mxu0
        %v4091 = vadd.f32 %v3962, %v4090
        %v4092 = vpop.f32.mrf.mxu0
        %4093 = vmatprep.mubr.bf16.mxu0 %v2904
        %4094 = vmatmul.mubr.bf16.gmra.mxu0 %v2885
        %v4095 = vpop.f32.mrf.mxu0
        %v4096 = vadd.f32 %v3967, %v4095
        %v4097 = vpop.f32.mrf.mxu0
        %v4098 = vpop.f32.mrf.mxu0
        %v4099 = vadd.f32 %v3970, %v4098
        %v4100 = vpop.f32.mrf.mxu0
        %4101 = vmatprep.mubr.bf16.mxu0 %v2905
        %4102 = vmatmul.mubr.bf16.gmra.mxu0 %v2886
        %v4103 = vpop.f32.mrf.mxu0
        %v4104 = vadd.f32 %v3975, %v4103
        %v4105 = vpop.f32.mrf.mxu0
        %v4106 = vpop.f32.mrf.mxu0
        %v4107 = vadd.f32 %v3978, %v4106
        %v4108 = vpop.f32.mrf.mxu0
        %4109 = vmatprep.mubr.bf16.mxu0 %v2906
        %4110 = vmatmul.mubr.bf16.gmra.mxu0 %v2887
        %v4111 = vpop.f32.mrf.mxu0
        %v4112 = vadd.f32 %v3983, %v4111
        %v4113 = vpop.f32.mrf.mxu0
        %v4114 = vpop.f32.mrf.mxu0
        %v4115 = vadd.f32 %v3986, %v4114
        %v4116 = vpop.f32.mrf.mxu0
        %4117 = vmatprep.mubr.bf16.mxu0 %v2907
        %4118 = vmatmul.mubr.bf16.gmra.mxu0 %v2888
        %v4119 = vpop.f32.mrf.mxu0
        %v4120 = vadd.f32 %v3991, %v4119
        %v4121 = vpop.f32.mrf.mxu0
        %v4122 = vpop.f32.mrf.mxu0
        %v4123 = vadd.f32 %v3994, %v4122
        %v4124 = vpop.f32.mrf.mxu0
        %4125 = vmatprep.mubr.bf16.mxu0 %v2908
        %4126 = vmatmul.mubr.bf16.gmra.mxu0 %v2889
        %v4127 = vpop.f32.mrf.mxu0
        %v4128 = vadd.f32 %v3999, %v4127
        %v4129 = vpop.f32.mrf.mxu0
        %v4130 = vpop.f32.mrf.mxu0
        %v4131 = vadd.f32 %v4002, %v4130
        %v4132 = vpop.f32.mrf.mxu0
        %4133 = vmatprep.mubr.bf16.mxu0 %v2909
        %4134 = vmatmul.mubr.bf16.gmra.mxu0 %v2890
        %v4135 = vpop.f32.mrf.mxu0
        %v4136 = vadd.f32 %v4007, %v4135
        %v4137 = vpop.f32.mrf.mxu0
        %v4138 = vpop.f32.mrf.mxu0
        %v4139 = vadd.f32 %v4010, %v4138
        %v4140 = vpop.f32.mrf.mxu0
        %4141 = vmatprep.mubr.bf16.mxu0 %v2910
        %4142 = vmatmul.mubr.bf16.gmra.mxu0 %v2891
        %v4143 = vpop.f32.mrf.mxu0
        %v4144 = vadd.f32 %v4015, %v4143
        %v4145 = vpop.f32.mrf.mxu0
        %v4146 = vpop.f32.mrf.mxu0
        %v4147 = vadd.f32 %v4018, %v4146
        %v4148 = vpop.f32.mrf.mxu0
        %4149 = vmatprep.mubr.bf16.mxu0 %v2911
        %4150 = vmatmul.mubr.bf16.gmra.mxu0 %v2892
        %v4151 = vpop.f32.mrf.mxu0
        %v4152 = vadd.f32 %v4023, %v4151
        %v4153 = vpop.f32.mrf.mxu0
        %v4154 = vpop.f32.mrf.mxu0
        %v4155 = vadd.f32 %v4026, %v4154
        %v4156 = vpop.f32.mrf.mxu0
        %4157 = vmatprep.mubr.bf16.mxu0 %v2912
        %4158 = vmatmul.mubr.bf16.gmra.mxu0 %v2893
        %v4159 = vpop.f32.mrf.mxu0
        %v4160 = vadd.f32 %v4031, %v4159
        %v4161 = vpop.f32.mrf.mxu0
        %v4162 = vpop.f32.mrf.mxu0
        %v4163 = vadd.f32 %v4034, %v4162
        %v4164 = vpop.f32.mrf.mxu0
        %4165 = vdwg.mxu0
        %4166 = vmatprep.subr.bf16.mxu0 0
        %4167 = vmatpush1.bf16.msra.mxu0 %v3690
        %4168 = vmatprep.subr.bf16.mxu0 0
        %4169 = vmatpush1.bf16.msra.mxu0 %v3689
        %4170 = vmatprep.subr.bf16.mxu0 0
        %4171 = vmatpush1.bf16.msra.mxu0 %v3688
        %4172 = vmatprep.subr.bf16.mxu0 0
        %4173 = vmatpush1.bf16.msra.mxu0 %v3687
        %4174 = vmatprep.subr.bf16.mxu0 0
        %4175 = vmatpush1.bf16.msra.mxu0 %v3686
        %4176 = vmatprep.subr.bf16.mxu0 0
        %4177 = vmatpush1.bf16.msra.mxu0 %v3685
        %4178 = vmatprep.subr.bf16.mxu0 0
        %4179 = vmatpush1.bf16.msra.mxu0 %v3684
        %4180 = vmatprep.subr.bf16.mxu0 0
        %4181 = vmatpush1.bf16.msra.mxu0 %v3683
        %4182 = vmatprep.subr.bf16.mxu0 0
        %4183 = vmatpush2.bf16.msra.mxu0 %v3698
        %4184 = vmatprep.subr.bf16.mxu0 0
        %4185 = vmatpush2.bf16.msra.mxu0 %v3697
        %4186 = vmatprep.subr.bf16.mxu0 0
        %4187 = vmatpush2.bf16.msra.mxu0 %v3696
        %4188 = vmatprep.subr.bf16.mxu0 0
        %4189 = vmatpush2.bf16.msra.mxu0 %v3695
        %4190 = vmatprep.subr.bf16.mxu0 0
        %4191 = vmatpush2.bf16.msra.mxu0 %v3694
        %4192 = vmatprep.subr.bf16.mxu0 0
        %4193 = vmatpush2.bf16.msra.mxu0 %v3693
        %4194 = vmatprep.subr.bf16.mxu0 0
        %4195 = vmatpush2.bf16.msra.mxu0 %v3692
        %4196 = vmatprep.subr.bf16.mxu0 0
        %4197 = vmatpush2.bf16.msra.mxu0 %v3691
        %4198 = vmatprep.mubr.bf16.mxu0 %v2794
        %4199 = vmatmul.mubr.bf16.gmra.mxu0 %v2920
        %v4200 = vpop.f32.mrf.mxu0
        %v4201 = vadd.f32 %v4072, %v4200
        %v4202 = vpop.f32.mrf.mxu0
        %v4203 = vpop.f32.mrf.mxu0
        %v4204 = vadd.f32 %v4075, %v4203
        %v4205 = vpop.f32.mrf.mxu0
        %4206 = vmatprep.mubr.bf16.mxu0 %v2795
        %4207 = vmatmul.mubr.bf16.gmra.mxu0 %v2783
        %v4208 = vpop.f32.mrf.mxu0
        %v4209 = vadd.f32 %v4080, %v4208
        %v4210 = vpop.f32.mrf.mxu0
        %v4211 = vpop.f32.mrf.mxu0
        %v4212 = vadd.f32 %v4083, %v4211
        %v4213 = vpop.f32.mrf.mxu0
        %4214 = vmatprep.mubr.bf16.mxu0 %v2796
        %4215 = vmatmul.mubr.bf16.gmra.mxu0 %v2784
        %v4216 = vpop.f32.mrf.mxu0
        %v4217 = vadd.f32 %v4088, %v4216
        %v4218 = vpop.f32.mrf.mxu0
        %v4219 = vpop.f32.mrf.mxu0
        %v4220 = vadd.f32 %v4091, %v4219
        %v4221 = vpop.f32.mrf.mxu0
        %4222 = vmatprep.mubr.bf16.mxu0 %v2797
        %4223 = vmatmul.mubr.bf16.gmra.mxu0 %v2785
        %v4224 = vpop.f32.mrf.mxu0
        %v4225 = vadd.f32 %v4096, %v4224
        %v4226 = vpop.f32.mrf.mxu0
        %v4227 = vpop.f32.mrf.mxu0
        %v4228 = vadd.f32 %v4099, %v4227
        %v4229 = vpop.f32.mrf.mxu0
        %4230 = vmatprep.mubr.bf16.mxu0 %v2798
        %4231 = vmatmul.mubr.bf16.gmra.mxu0 %v2786
        %v4232 = vpop.f32.mrf.mxu0
        %v4233 = vadd.f32 %v4104, %v4232
        %v4234 = vpop.f32.mrf.mxu0
        %v4235 = vpop.f32.mrf.mxu0
        %v4236 = vadd.f32 %v4107, %v4235
        %v4237 = vpop.f32.mrf.mxu0
        %4238 = vmatprep.mubr.bf16.mxu0 %v2799
        %4239 = vmatmul.mubr.bf16.gmra.mxu0 %v2787
        %v4240 = vpop.f32.mrf.mxu0
        %v4241 = vadd.f32 %v4112, %v4240
        %v4242 = vpop.f32.mrf.mxu0
        %v4243 = vpop.f32.mrf.mxu0
        %v4244 = vadd.f32 %v4115, %v4243
        %v4245 = vpop.f32.mrf.mxu0
        %4246 = vmatprep.mubr.bf16.mxu0 %v2800
        %4247 = vmatmul.mubr.bf16.gmra.mxu0 %v2788
        %v4248 = vpop.f32.mrf.mxu0
        %v4249 = vadd.f32 %v4120, %v4248
        %v4250 = vpop.f32.mrf.mxu0
        %v4251 = vpop.f32.mrf.mxu0
        %v4252 = vadd.f32 %v4123, %v4251
        %v4253 = vpop.f32.mrf.mxu0
        %4254 = vmatprep.mubr.bf16.mxu0 %v2801
        %4255 = vmatmul.mubr.bf16.gmra.mxu0 %v2789
        %v4256 = vpop.f32.mrf.mxu0
        %v4257 = vadd.f32 %v4128, %v4256
        %v4258 = vpop.f32.mrf.mxu0
        %v4259 = vpop.f32.mrf.mxu0
        %v4260 = vadd.f32 %v4131, %v4259
        %v4261 = vpop.f32.mrf.mxu0
        %4262 = vmatprep.mubr.bf16.mxu0 %v2802
        %4263 = vmatmul.mubr.bf16.gmra.mxu0 %v2790
        %v4264 = vpop.f32.mrf.mxu0
        %v4265 = vadd.f32 %v4136, %v4264
        %v4266 = vpop.f32.mrf.mxu0
        %v4267 = vpop.f32.mrf.mxu0
        %v4268 = vadd.f32 %v4139, %v4267
        %v4269 = vpop.f32.mrf.mxu0
        %4270 = vmatprep.mubr.bf16.mxu0 %v2924
        %4271 = vmatmul.mubr.bf16.gmra.mxu0 %v2921
        %v4272 = vpop.f32.mrf.mxu0
        %v4273 = vadd.f32 %v4144, %v4272
        %v4274 = vpop.f32.mrf.mxu0
        %v4275 = vpop.f32.mrf.mxu0
        %v4276 = vadd.f32 %v4147, %v4275
        %v4277 = vpop.f32.mrf.mxu0
        %4278 = vmatprep.mubr.bf16.mxu0 %v2925
        %4279 = vmatmul.mubr.bf16.gmra.mxu0 %v2922
        %v4280 = vpop.f32.mrf.mxu0
        %v4281 = vadd.f32 %v4152, %v4280
        %v4282 = vpop.f32.mrf.mxu0
        %v4283 = vpop.f32.mrf.mxu0
        %v4284 = vadd.f32 %v4155, %v4283
        %v4285 = vpop.f32.mrf.mxu0
        %4286 = vmatprep.mubr.bf16.mxu0 %v2926
        %4287 = vmatmul.mubr.bf16.gmra.mxu0 %v2923
        %v4288 = vpop.f32.mrf.mxu0
        %v4289 = vadd.f32 %v4160, %v4288
        %v4290 = vpop.f32.mrf.mxu0
        %v4291 = vpop.f32.mrf.mxu0
        %v4292 = vadd.f32 %v4163, %v4291
        %v4293 = vpop.f32.mrf.mxu0
        %4294 = vdwg.mxu0
        %4295 = vmatprep.subr.bf16.mxu0 0
        %4296 = vmatpush1.bf16.msra.mxu0 %v3706
        %4297 = vmatprep.subr.bf16.mxu0 0
        %4298 = vmatpush1.bf16.msra.mxu0 %v3705
        %4299 = vmatprep.subr.bf16.mxu0 0
        %4300 = vmatpush1.bf16.msra.mxu0 %v3704
        %4301 = vmatprep.subr.bf16.mxu0 0
        %4302 = vmatpush1.bf16.msra.mxu0 %v3703
        %4303 = vmatprep.subr.bf16.mxu0 0
        %4304 = vmatpush1.bf16.msra.mxu0 %v3702
        %4305 = vmatprep.subr.bf16.mxu0 0
        %4306 = vmatpush1.bf16.msra.mxu0 %v3701
        %4307 = vmatprep.subr.bf16.mxu0 0
        %4308 = vmatpush1.bf16.msra.mxu0 %v3700
        %4309 = vmatprep.subr.bf16.mxu0 0
        %4310 = vmatpush1.bf16.msra.mxu0 %v3699
        %4311 = vmatprep.subr.bf16.mxu0 0
        %4312 = vmatpush2.bf16.msra.mxu0 0
        %4313 = vmatprep.subr.bf16.mxu0 0
        %4314 = vmatpush2.bf16.msra.mxu0 0
        %4315 = vmatprep.subr.bf16.mxu0 0
        %4316 = vmatpush2.bf16.msra.mxu0 0
        %4317 = vmatprep.subr.bf16.mxu0 0
        %4318 = vmatpush2.bf16.msra.mxu0 0
        %4319 = vmatprep.subr.bf16.mxu0 0
        %4320 = vmatpush2.bf16.msra.mxu0 0
        %4321 = vmatprep.subr.bf16.mxu0 0
        %4322 = vmatpush2.bf16.msra.mxu0 0
        %4323 = vmatprep.subr.bf16.mxu0 0
        %4324 = vmatpush2.bf16.msra.mxu0 0
        %4325 = vmatprep.subr.bf16.mxu0 0
        %4326 = vmatpush2.bf16.msra.mxu0 0
        %4327 = vmatprep.mubr.bf16.mxu0 0
        %4328 = vmatmul.mubr.bf16.gmra.mxu0 %v2854
        %v4329 = vpop.f32.mrf.mxu0
        %v4330 = vadd.f32 %v4201, %v4329
        %v4331 = vpop.f32.mrf.mxu0
        %v4332 = vpop.f32.mrf.mxu0
        %v4333 = vadd.f32 %v4204, %v4332
        %v4334 = vpop.f32.mrf.mxu0
        %4335 = vmatprep.mubr.bf16.mxu0 0
        %4336 = vmatmul.mubr.bf16.gmra.mxu0 %v2855
        %v4337 = vpop.f32.mrf.mxu0
        %v4338 = vadd.f32 %v4209, %v4337
        %v4339 = vpop.f32.mrf.mxu0
        %v4340 = vpop.f32.mrf.mxu0
        %v4341 = vadd.f32 %v4212, %v4340
        %v4342 = vpop.f32.mrf.mxu0
        %4343 = vmatprep.mubr.bf16.mxu0 0
        %4344 = vmatmul.mubr.bf16.gmra.mxu0 %v2856
        %v4345 = vpop.f32.mrf.mxu0
        %v4346 = vadd.f32 %v4217, %v4345
        %v4347 = vpop.f32.mrf.mxu0
        %v4348 = vpop.f32.mrf.mxu0
        %v4349 = vadd.f32 %v4220, %v4348
        %v4350 = vpop.f32.mrf.mxu0
        %4351 = vmatprep.mubr.bf16.mxu0 0
        %4352 = vmatmul.mubr.bf16.gmra.mxu0 %v2857
        %v4353 = vpop.f32.mrf.mxu0
        %v4354 = vadd.f32 %v4225, %v4353
        %v4355 = vpop.f32.mrf.mxu0
        %v4356 = vpop.f32.mrf.mxu0
        %v4357 = vadd.f32 %v4228, %v4356
        %v4358 = vpop.f32.mrf.mxu0
        %4359 = vmatprep.mubr.bf16.mxu0 0
        %4360 = vmatmul.mubr.bf16.gmra.mxu0 %v2858
        %v4361 = vpop.f32.mrf.mxu0
        %v4362 = vadd.f32 %v4233, %v4361
        %v4363 = vpop.f32.mrf.mxu0
        %v4364 = vpop.f32.mrf.mxu0
        %v4365 = vadd.f32 %v4236, %v4364
        %v4366 = vpop.f32.mrf.mxu0
        %4367 = vmatprep.mubr.bf16.mxu0 0
        %4368 = vmatmul.mubr.bf16.gmra.mxu0 %v2859
        %v4369 = vpop.f32.mrf.mxu0
        %v4370 = vadd.f32 %v4241, %v4369
        %v4371 = vpop.f32.mrf.mxu0
        %v4372 = vpop.f32.mrf.mxu0
        %v4373 = vadd.f32 %v4244, %v4372
        %v4374 = vpop.f32.mrf.mxu0
        %4375 = vmatprep.mubr.bf16.mxu0 0
        %4376 = vmatmul.mubr.bf16.gmra.mxu0 %v2860
        %v4377 = vpop.f32.mrf.mxu0
        %v4378 = vadd.f32 %v4249, %v4377
        %v4379 = vpop.f32.mrf.mxu0
        %v4380 = vpop.f32.mrf.mxu0
        %v4381 = vadd.f32 %v4252, %v4380
        %v4382 = vpop.f32.mrf.mxu0
        %4383 = vmatprep.mubr.bf16.mxu0 0
        %4384 = vmatmul.mubr.bf16.gmra.mxu0 %v2861
        %v4385 = vpop.f32.mrf.mxu0
        %v4386 = vadd.f32 %v4257, %v4385
        %v4387 = vpop.f32.mrf.mxu0
        %v4388 = vpop.f32.mrf.mxu0
        %v4389 = vadd.f32 %v4260, %v4388
        %v4390 = vpop.f32.mrf.mxu0
        %4391 = vmatprep.mubr.bf16.mxu0 0
        %4392 = vmatmul.mubr.bf16.gmra.mxu0 %v2934
        %v4393 = vpop.f32.mrf.mxu0
        %v4394 = vadd.f32 %v4265, %v4393
        %v4395 = vpop.f32.mrf.mxu0
        %v4396 = vpop.f32.mrf.mxu0
        %v4397 = vadd.f32 %v4268, %v4396
        %v4398 = vpop.f32.mrf.mxu0
        %4399 = vmatprep.mubr.bf16.mxu0 0
        %4400 = vmatmul.mubr.bf16.gmra.mxu0 %v2935
        %v4401 = vpop.f32.mrf.mxu0
        %v4402 = vadd.f32 %v4273, %v4401
        %v4403 = vpop.f32.mrf.mxu0
        %v4404 = vpop.f32.mrf.mxu0
        %v4405 = vadd.f32 %v4276, %v4404
        %v4406 = vpop.f32.mrf.mxu0
        %4407 = vmatprep.mubr.bf16.mxu0 0
        %4408 = vmatmul.mubr.bf16.gmra.mxu0 %v2936
        %v4409 = vpop.f32.mrf.mxu0
        %v4410 = vadd.f32 %v4281, %v4409
        %v4411 = vpop.f32.mrf.mxu0
        %v4412 = vpop.f32.mrf.mxu0
        %v4413 = vadd.f32 %v4284, %v4412
        %v4414 = vpop.f32.mrf.mxu0
        %4415 = vmatprep.mubr.bf16.mxu0 0
        %4416 = vmatmul.mubr.bf16.gmra.mxu0 %v2937
        %v4417 = vpop.f32.mrf.mxu0
        %v4418 = vadd.f32 %v4289, %v4417
        %v4419 = vpop.f32.mrf.mxu0
        %v4420 = vpop.f32.mrf.mxu0
        %v4421 = vadd.f32 %v4292, %v4420
        %v4422 = vpop.f32.mrf.mxu0
        %4423 = vdwg.mxu0
        %4424 = vst [vmem:[%s207] sm:$0xff] %v4330
        %4425 = vst [vmem:[%s207 + $0x8] sm:$0xff] %v4333
        %4426 = vst [vmem:[%s207 + $0x10] sm:$0xff] %v4338
        %4427 = vst [vmem:[%s207 + $0x18] sm:$0xff] %v4341
        %4428 = vst [vmem:[%s207 + $0x20] sm:$0xff] %v4346
        %4429 = vst [vmem:[%s207 + $0x28] sm:$0xff] %v4349
        %4430 = vst [vmem:[%s207 + $0x30] sm:$0xff] %v4354
        %4431 = vst [vmem:[%s207 + $0x38] sm:$0xff] %v4357
        %4432 = vst [vmem:[%s207 + $0x40] sm:$0xff] %v4362
        %4433 = vst [vmem:[%s207 + $0x48] sm:$0xff] %v4365
        %4434 = vst [vmem:[%s207 + $0x50] sm:$0xff] %v4370
        %4435 = vst [vmem:[%s207 + $0x58] sm:$0xff] %v4373
        %4436 = vst [vmem:[%s207 + $0x60] sm:$0xff] %v4378
        %4437 = vst [vmem:[%s207 + $0x68] sm:$0xff] %v4381
        %4438 = vst [vmem:[%s207 + $0x70] sm:$0xff] %v4386
        %4439 = vst [vmem:[%s207 + $0x78] sm:$0xff] %v4389
        %4440 = vst [vmem:[%s207 + $0x80] sm:$0xff] %v4394
        %4441 = vst [vmem:[%s207 + $0x88] sm:$0xff] %v4397
        %4442 = vst [vmem:[%s207 + $0x90] sm:$0xff] %v4402
        %4443 = vst [vmem:[%s207 + $0x98] sm:$0xff] %v4405
        %4444 = vst [vmem:[%s207 + $0xa0] sm:$0xff] %v4410
        %4445 = vst [vmem:[%s207 + $0xa8] sm:$0xff] %v4413
        %4446 = vst [vmem:[%s207 + $0xb0] sm:$0xff] %v4418
        %4447 = vst [vmem:[%s207 + $0xb8] sm:$0xff] %v4421
        %s4448 = sand.u32 %s105, 1
        %s4449 = scalar_lea.sflag [#allocation7], %s4448
        %s4450 = sand.u32 %s105, 1
        %s4451 = smul.addr %s4450, 192
        %s4452 = scalar_lea.vmem [#allocation11], %s4451
        // Predicated region
        $region69: #{tpu_custom_call.1} parent=31 // pred_check
          %p4453 = pneg %p115
        $region70: #{tpu_custom_call.1} parent=31 // pred_check_branch
          %4455 = sbr.rel (%p4453) target = $region72
        $region71: #{tpu_custom_call.1} parent=31 // pred_region
          %s4456 = smul.u32 8, %s25
          %s4458 = ssub.s32 3072, 3072
          %4459 = vsyncadd %s4449, %s4458
          %s4460 = smul.addr %s4456, 3
          %s4461 = smul.addr %s24, 48
          %s4462 = sadd.s32 %s4460, %s4461
          %s4463 = smul.addr %s4462, 128
          %s4464 = scalar_lea.hbm %s4, %s4463
          %s4465 = sshll.u32 %s4452, 4
          %s4466 = int_to_ptr.vmem [resolvable:$true] %s4465
          %4471 = dma.vmem_to_hbm [thread:$0]  %s4466, 3072, %s4464, %s4449, 128, 128, 8
        $region72: #{tpu_custom_call.1} parent=31 // pred_fallthru
          _
      $region32: #{tpu_custom_call.1} parent=5 // pred_fallthru
        _
      %p4472 = scmp.le.s32.totalorder 2, %s15
      // Predicated region
      $region73: #{tpu_custom_call.1} parent=5 // pred_check
        %p4473 = pneg %p4472
      $region74: #{tpu_custom_call.1} parent=5 // pred_check_branch
        %4475 = sbr.rel (%p4473) target = $region76
      $region75: #{tpu_custom_call.1} parent=5 // pred_region
        %s4476 = ssub.s32 %s15, 2
        // Predicated region
        $region77: #{tpu_custom_call.1} parent=75 // pred_check
          %p4477 = pneg %p121
        $region78: #{tpu_custom_call.1} parent=75 // pred_check_branch
          %4479 = sbr.rel (%p4477) target = $region80
        $region79: #{tpu_custom_call.1} parent=75 // pred_region
          %s4480 = sand.u32 %s106, 1
          %s4481 = scalar_lea.sflag [#allocation7], %s4480
          %s4482 = sand.u32 %s106, 1
          %s4483 = smul.addr %s4482, 192
          %s4484 = scalar_lea.vmem [#allocation11], %s4483
          %4485 = dma.done %s4481, 3072
        $region80: #{tpu_custom_call.1} parent=75 // pred_fallthru
          _
      $region76: #{tpu_custom_call.1} parent=5 // pred_fallthru
        _
    $region6: #{tpu_custom_call.1} parent=1 // loop_footer
      %s19 = sadd.s32 1, %s15
    $region7: #{tpu_custom_call.1} parent=1 // loop_footer_branch
      %14 = sbr.rel target = $region3
    $region8: #{tpu_custom_call.1} parent=1 // loop_exit
      _
    %4486 = vsyncpa [#allocation6], 1
    %s4487 = scalar_lea.sflag [#allocation6], 1
    %4488 = vsyncpa %s4487, 1
    %4489 = vsyncpa [#allocation9], 1
    %4490 = vsyncpa [#allocation7], 1
    %s4491 = scalar_lea.sflag [#allocation7], 1
    %4492 = vsyncpa %s4491, 1
  %4493 = vsyncmov [#allocation4]
  %s4494 = vpop.sfrf %4493
  %p4495 = scmp.eq.s32.totalorder %s4494, 0
  %p4496 = pneg %p4495
  %4498 = shalt.err (%p4496)
  %s4499 = scalar_lea.sflag [#allocation4], 1
  %4500 = vsyncmov %s4499
  %s4501 = vpop.sfrf %4500
  %p4502 = scmp.eq.s32.totalorder %s4501, 0
  %p4503 = pneg %p4502
  %4505 = shalt.err (%p4503)

</llo_original>
